<compile_context>
chip_gen: v7x
topology: tpu7x:2x2x1
jax: 0.10.0
libtpu: 0.0.40
codegen_flags: <defaults>
</compile_context>

<pallas_src>
import math

import jax
import jax.numpy as jnp
from jax import lax
from jax.experimental import pallas as pl
from jax.experimental.pallas import tpu as pltpu

# ----------------------------- small config ---------------------------------
B = 2            # batch (number of text strings)
CTX = 16         # context_length
VOCAB = 64       # vocab_size
WIDTH = 128      # transformer_width  (lane-dense)
HEADS = 4        # transformer_heads
LAYERS = 2       # transformer_layers
EMBED = 128      # embed_dim          (lane-dense)
EPS = 1e-5       # LayerNorm eps (PyTorch default)
HEAD_DIM = WIDTH // HEADS
NEG_INF = -1e30  # finite stand-in for -inf above the diagonal


def _layernorm(v, g, b):
    mu = jnp.mean(v, axis=-1, keepdims=True)
    var = jnp.mean((v - mu) ** 2, axis=-1, keepdims=True)
    return (v - mu) * lax.rsqrt(var + EPS) * g + b


# ---------------------- fused transformer + epilogue kernel -----------------
def fused_text_transformer_kernel(
        x_in, mask, sel, lnf_g, lnf_b, tproj,                     # resident
        ln1_g, ln1_b, wqkv, bqkv, wo, bo,                         # per-layer
        ln2_g, ln2_b, wfc, bfc, wproj, bproj,                     # per-layer
        xtmp_ref, xout_ref,                                       # outputs
        xs):                                                      # VMEM scratch
    layer = pl.program_id(0)
    n_layers = pl.num_programs(0)
    scale = 1.0 / math.sqrt(HEAD_DIM)

    @pl.when(layer == 0)
    def _():
        xs[...] = x_in[...]                       # load activations once

    x = xs[...]                                   # [B*CTX, W]

    # ---- x = x + attn(ln_1(x)) ----
    xn = _layernorm(x, ln1_g[0], ln1_b[0])
    qkv = jnp.dot(xn, wqkv[0], preferred_element_type=jnp.float32) + bqkv[0]
    q = (qkv[:, :WIDTH] * scale).reshape(B, CTX, WIDTH)
    k = qkv[:, WIDTH:2 * WIDTH].reshape(B, CTX, WIDTH)
    v = qkv[:, 2 * WIDTH:].reshape(B, CTX, WIDTH)
    neg_mask = mask[...][None, :, :]              # [1, CTX, CTX], hoisted const
    wo_l = wo[0]                                  # [W, W], loaded once

    attn = jnp.zeros((B * CTX, WIDTH), jnp.float32)
    for h in range(HEADS):                        # static unroll over heads
        lo, hi = h * HEAD_DIM, (h + 1) * HEAD_DIM
        qh, kh, vh = q[:, :, lo:hi], k[:, :, lo:hi], v[:, :, lo:hi]
        s = jnp.einsum('bqd,bkd->bqk', qh, kh,
                       preferred_element_type=jnp.float32) + neg_mask
        s = s - jnp.max(s, axis=-1, keepdims=True)
        p = jnp.exp(s)
        p = p * pl.reciprocal(jnp.sum(p, axis=-1, keepdims=True), approx=True)
        oh = jnp.einsum('bqk,bkd->bqd', p, vh,
                        preferred_element_type=jnp.float32)       # [B, CTX, hd]
        # accumulate through out-projection rows for this head (no lane concat)
        attn = attn + jnp.dot(oh.reshape(B * CTX, HEAD_DIM), wo_l[lo:hi, :],
                              preferred_element_type=jnp.float32)
    x1 = x + attn + bo[0]

    # ---- x = x + mlp(ln_2(x)) ----  (c_fc -> QuickGELU -> c_proj)
    xn2 = _layernorm(x1, ln2_g[0], ln2_b[0])
    hmid = jnp.dot(xn2, wfc[0], preferred_element_type=jnp.float32) + bfc[0]
    hmid = hmid * jax.nn.sigmoid(1.702 * hmid)    # QuickGELU
    x2 = x1 + jnp.dot(hmid, wproj[0], preferred_element_type=jnp.float32) + bproj[0]
    xs[...] = x2

    # ---- epilogue: ln_final + EOT-row select + text projection ----
    @pl.when(layer == n_layers - 1)
    def _():
        xf = _layernorm(x2, lnf_g[...], lnf_b[...])               # [B*CTX, W]
        xtmp_ref[...] = xf
        x_eot = jnp.dot(sel[...], xf, preferred_element_type=jnp.float32)  # [B, W]
        xout_ref[...] = jnp.dot(x_eot, tproj[...],
                                preferred_element_type=jnp.float32)        # [B, E]


# ----------------------------- pallas_call wrapper ---------------------------
LAYER_PARAM_ORDER = ["ln1_g", "ln1_b", "wqkv", "bqkv", "wo", "bo",
                     "ln2_g", "ln2_b", "wfc", "bfc", "wproj", "bproj"]


def _const_spec(a):
    nd = a.ndim
    return pl.BlockSpec(a.shape, lambda l, _nd=nd: (0,) * _nd)


def _layer_spec(a):
    nd = a.ndim
    return pl.BlockSpec((1,) + a.shape[1:],
                        lambda l, _nd=nd: (l,) + (0,) * (_nd - 1))


def fused_text_transformer(x_flat, neg_mask, sel, params):
    n_rows = B * CTX
    const_arrays = [x_flat, neg_mask, sel,
                    params["ln_final_g"], params["ln_final_b"],
                    params["text_projection"]]
    layer_arrays = [params[name] for name in LAYER_PARAM_ORDER]
    in_specs = ([_const_spec(a) for a in const_arrays]
                + [_layer_spec(a) for a in layer_arrays])
    grid_spec = pltpu.PrefetchScalarGridSpec(
        num_scalar_prefetch=0,
        grid=(LAYERS,),
        in_specs=in_specs,
        out_specs=[pl.BlockSpec((n_rows, WIDTH), lambda l: (0, 0)),
                   pl.BlockSpec((B, EMBED), lambda l: (0, 0))],
        scratch_shapes=[pltpu.VMEM((n_rows, WIDTH), jnp.float32)],
    )
    return pl.pallas_call(
        fused_text_transformer_kernel,
        out_shape=(jax.ShapeDtypeStruct((n_rows, WIDTH), jnp.float32),
                   jax.ShapeDtypeStruct((B, EMBED), jnp.float32)),
        grid_spec=grid_spec,
        compiler_params=pltpu.CompilerParams(
            dimension_semantics=("arbitrary",)),
    )(*const_arrays, *layer_arrays)


# ----------------------------- parameter init -------------------------------
def init_params(key):
    ks = iter(jax.random.split(key, 12))
    nxt = lambda: next(ks)
    wstd = WIDTH ** -0.5
    return {
        "token_embedding": 0.02 * jax.random.normal(nxt(), (VOCAB, WIDTH), jnp.float32),
        "positional_embedding": 0.01 * jax.random.normal(nxt(), (CTX, WIDTH), jnp.float32),
        "ln_final_g": jnp.ones((1, WIDTH), jnp.float32),
        "ln_final_b": jnp.zeros((1, WIDTH), jnp.float32),
        "text_projection": wstd * jax.random.normal(nxt(), (WIDTH, EMBED), jnp.float32),
        # per-layer params stacked on a leading layer axis (streamed by BlockSpec)
        "ln1_g": jnp.ones((LAYERS, 1, WIDTH), jnp.float32),
        "ln1_b": jnp.zeros((LAYERS, 1, WIDTH), jnp.float32),
        "wqkv": wstd * jax.random.normal(nxt(), (LAYERS, WIDTH, 3 * WIDTH), jnp.float32),
        "bqkv": 0.01 * jax.random.normal(nxt(), (LAYERS, 1, 3 * WIDTH), jnp.float32),
        "wo": wstd * jax.random.normal(nxt(), (LAYERS, WIDTH, WIDTH), jnp.float32),
        "bo": 0.01 * jax.random.normal(nxt(), (LAYERS, 1, WIDTH), jnp.float32),
        "ln2_g": jnp.ones((LAYERS, 1, WIDTH), jnp.float32),
        "ln2_b": jnp.zeros((LAYERS, 1, WIDTH), jnp.float32),
        "wfc": wstd * jax.random.normal(nxt(), (LAYERS, WIDTH, 4 * WIDTH), jnp.float32),
        "bfc": 0.01 * jax.random.normal(nxt(), (LAYERS, 1, 4 * WIDTH), jnp.float32),
        "wproj": ((4 * WIDTH) ** -0.5)
        * jax.random.normal(nxt(), (LAYERS, 4 * WIDTH, WIDTH), jnp.float32),
        "bproj": 0.01 * jax.random.normal(nxt(), (LAYERS, 1, WIDTH), jnp.float32),
    }


# ------------------------------- forward ------------------------------------
@jax.jit
def clip_text_encoder_forward(text, params):
    # token_embedding(text) + positional_embedding   (glue: gather + add)
    x = jnp.take(params["token_embedding"], text, axis=0)          # [B, L, W]
    x = x + params["positional_embedding"][None, :, :]
    x_flat = x.reshape(B * CTX, WIDTH).astype(jnp.float32)

    # build_attention_mask(): masked strictly above the diagonal (hoisted once)
    row = lax.broadcasted_iota(jnp.int32, (CTX, CTX), 0)
    col = lax.broadcasted_iota(jnp.int32, (CTX, CTX), 1)
    neg_mask = jnp.where(col > row, NEG_INF, 0.0).astype(jnp.float32)

    # EOT-row selection as a one-hot matrix (gather becomes an in-kernel matmul)
    eot_idx = jnp.argmax(text, axis=-1)                            # [B]
    flat_idx = jnp.arange(B) * CTX + eot_idx
    sel = jax.nn.one_hot(flat_idx, B * CTX, dtype=jnp.float32)     # [B, B*CTX]

    # single fused kernel: layers + ln_final + EOT gather + text_projection
    x_tmp_flat, x_out = fused_text_transformer(x_flat, neg_mask, sel, params)
    x_tmp = x_tmp_flat.reshape(B, CTX, WIDTH)
    return x_out, x_tmp
    # TODO(synk): tokenize() is host-side string processing (BPE) — not a kernel.


# --------------------------- pure-JAX reference ------------------------------
def reference_forward(text, params):
    hp = lax.Precision.HIGHEST
    x = jnp.take(params["token_embedding"], text, axis=0)
    x = x + params["positional_embedding"][None, :, :]
    row = lax.broadcasted_iota(jnp.int32, (CTX, CTX), 0)
    col = lax.broadcasted_iota(jnp.int32, (CTX, CTX), 1)
    mask = jnp.where(col > row, NEG_INF, 0.0).astype(jnp.float32)
    scale = 1.0 / math.sqrt(HEAD_DIM)
    for l in range(LAYERS):
        xn = _layernorm(x, params["ln1_g"][l, 0], params["ln1_b"][l, 0])
        qkv = jnp.einsum("bld,de->ble", xn, params["wqkv"][l], precision=hp) \
            + params["bqkv"][l, 0]
        q, k, v = jnp.split(qkv, 3, axis=-1)
        q = (q * scale).reshape(B, CTX, HEADS, HEAD_DIM)
        k = k.reshape(B, CTX, HEADS, HEAD_DIM)
        v = v.reshape(B, CTX, HEADS, HEAD_DIM)
        s = jnp.einsum("bqhd,bkhd->bhqk", q, k, precision=hp) + mask[None, None]
        p = jax.nn.softmax(s, axis=-1)
        o = jnp.einsum("bhqk,bkhd->bqhd", p, v, precision=hp).reshape(B, CTX, WIDTH)
        x = x + jnp.einsum("bld,de->ble", o, params["wo"][l], precision=hp) \
            + params["bo"][l, 0]
        xn2 = _layernorm(x, params["ln2_g"][l, 0], params["ln2_b"][l, 0])
        h = jnp.einsum("bld,de->ble", xn2, params["wfc"][l], precision=hp) \
            + params["bfc"][l, 0]
        h = h * jax.nn.sigmoid(1.702 * h)
        x = x + jnp.einsum("bld,de->ble", h, params["wproj"][l], precision=hp) \
            + params["bproj"][l, 0]
    xf = _layernorm(x, params["ln_final_g"][0], params["ln_final_b"][0])
    eot = jnp.argmax(text, axis=-1)
    x_eot = xf[jnp.arange(B), eot]
    x_out = jnp.einsum("bd,de->be", x_eot, params["text_projection"], precision=hp)
    return x_out, xf


if __name__ == "__main__":
    key = jax.random.PRNGKey(0)
    k_param, k_text = jax.random.split(key)
    params = init_params(k_param)
    text = jax.random.randint(k_text, (B, CTX), 0, VOCAB, dtype=jnp.int32)

    x_out, x_tmp = clip_text_encoder_forward(text, params)
    x_out = jax.block_until_ready(x_out)
    x_tmp = jax.block_until_ready(x_tmp)

    assert x_out.shape == (B, EMBED) and x_tmp.shape == (B, CTX, WIDTH)
    assert bool(jnp.all(jnp.isfinite(x_out))) and bool(jnp.all(jnp.isfinite(x_tmp)))

    # correctness vs pure-JAX reference (loose tol: approx reciprocal in softmax)
    ref_out, ref_tmp = reference_forward(text, params)
    err_out = float(jnp.max(jnp.abs(x_out - ref_out)))
    err_tmp = float(jnp.max(jnp.abs(x_tmp - ref_tmp)))
    assert err_out < 5e-2 and err_tmp < 5e-2, (err_out, err_tmp)

    print("KERNEL_OK")
</pallas_src>

<mosaic_0001>
module attributes {stable_mosaic.version = 11 : i64} {
  func.func @fused_text_transformer_kernel(%arg0: i32, %arg1: memref<32x128xf32, #tpu.memory_space<vmem>>, %arg2: memref<16x16xf32, #tpu.memory_space<vmem>>, %arg3: memref<2x32xf32, #tpu.memory_space<vmem>>, %arg4: memref<1x128xf32, #tpu.memory_space<vmem>>, %arg5: memref<1x128xf32, #tpu.memory_space<vmem>>, %arg6: memref<128x128xf32, #tpu.memory_space<vmem>>, %arg7: memref<1x1x128xf32, #tpu.memory_space<vmem>>, %arg8: memref<1x1x128xf32, #tpu.memory_space<vmem>>, %arg9: memref<1x128x384xf32, #tpu.memory_space<vmem>>, %arg10: memref<1x1x384xf32, #tpu.memory_space<vmem>>, %arg11: memref<1x128x128xf32, #tpu.memory_space<vmem>>, %arg12: memref<1x1x128xf32, #tpu.memory_space<vmem>>, %arg13: memref<1x1x128xf32, #tpu.memory_space<vmem>>, %arg14: memref<1x1x128xf32, #tpu.memory_space<vmem>>, %arg15: memref<1x128x512xf32, #tpu.memory_space<vmem>>, %arg16: memref<1x1x512xf32, #tpu.memory_space<vmem>>, %arg17: memref<1x512x128xf32, #tpu.memory_space<vmem>>, %arg18: memref<1x1x128xf32, #tpu.memory_space<vmem>>, %arg19: memref<32x128xf32, #tpu.memory_space<vmem>>, %arg20: memref<2x128xf32, #tpu.memory_space<vmem>>, %arg21: memref<32x128xf32, #tpu.memory_space<vmem>>) attributes {dimension_semantics = [#tpu.dimension_semantics<arbitrary>], iteration_bounds = array<i64: 2>, scalar_prefetch = 0 : i64, scratch_operands = 1 : i64, tpu.core_type = #tpu.core_type<tc>, window_params = [{pipeline_mode = #tpu.pipeline_mode<synchronous>, transform_indices = @transform_0, window_bounds = array<i64: 32, 128>}, {pipeline_mode = #tpu.pipeline_mode<synchronous>, transform_indices = @transform_1, window_bounds = array<i64: 16, 16>}, {pipeline_mode = #tpu.pipeline_mode<synchronous>, transform_indices = @transform_2, window_bounds = array<i64: 2, 32>}, {pipeline_mode = #tpu.pipeline_mode<synchronous>, transform_indices = @transform_3, window_bounds = array<i64: 1, 128>}, {pipeline_mode = #tpu.pipeline_mode<synchronous>, transform_indices = @transform_4, window_bounds = array<i64: 1, 128>}, {pipeline_mode = #tpu.pipeline_mode<synchronous>, transform_indices = @transform_5, window_bounds = array<i64: 128, 128>}, {transform_indices = @transform_6, window_bounds = array<i64: 1, 1, 128>}, {transform_indices = @transform_7, window_bounds = array<i64: 1, 1, 128>}, {transform_indices = @transform_8, window_bounds = array<i64: 1, 128, 384>}, {transform_indices = @transform_9, window_bounds = array<i64: 1, 1, 384>}, {transform_indices = @transform_10, window_bounds = array<i64: 1, 128, 128>}, {transform_indices = @transform_11, window_bounds = array<i64: 1, 1, 128>}, {transform_indices = @transform_12, window_bounds = array<i64: 1, 1, 128>}, {transform_indices = @transform_13, window_bounds = array<i64: 1, 1, 128>}, {transform_indices = @transform_14, window_bounds = array<i64: 1, 128, 512>}, {transform_indices = @transform_15, window_bounds = array<i64: 1, 1, 512>}, {transform_indices = @transform_16, window_bounds = array<i64: 1, 512, 128>}, {transform_indices = @transform_17, window_bounds = array<i64: 1, 1, 128>}, {pipeline_mode = #tpu.pipeline_mode<synchronous>, transform_indices = @transform_18, window_bounds = array<i64: 32, 128>}, {pipeline_mode = #tpu.pipeline_mode<synchronous>, transform_indices = @transform_19, window_bounds = array<i64: 2, 128>}]} {
    %c0_i32 = arith.constant 0 : i32
    %0 = arith.cmpi eq, %arg0, %c0_i32 : i32
    %1 = arith.extui %0 : i1 to i32
    %c0_i32_0 = arith.constant 0 : i32
    %2 = arith.cmpi ne, %1, %c0_i32_0 : i32
    scf.if %2 {
      %c0_79 = arith.constant 0 : index
      %c0_80 = arith.constant 0 : index
      %192 = vector.load %arg1[%c0_79, %c0_80] : memref<32x128xf32, #tpu.memory_space<vmem>>, vector<32x128xf32>
      %c0_81 = arith.constant 0 : index
      %c0_82 = arith.constant 0 : index
      %193 = vector.load %arg21[%c0_81, %c0_82] : memref<32x128xf32, #tpu.memory_space<vmem>>, vector<32x128xf32>
      tpu.vector_store %arg21[%c0_81, %c0_82], %192 {strides = array<i32>} : memref<32x128xf32, #tpu.memory_space<vmem>>, vector<32x128xf32>,
    } else {
    }
    %c0 = arith.constant 0 : index
    %c0_1 = arith.constant 0 : index
    %3 = vector.load %arg21[%c0, %c0_1] : memref<32x128xf32, #tpu.memory_space<vmem>>, vector<32x128xf32>
    %c0_2 = arith.constant 0 : index
    %c0_3 = arith.constant 0 : index
    %c0_4 = arith.constant 0 : index
    %4 = vector.load %arg7[%c0_2, %c0_3, %c0_4] : memref<1x1x128xf32, #tpu.memory_space<vmem>>, vector<1x1x128xf32>
    %5 = vector.shape_cast %4 : vector<1x1x128xf32> to vector<1x128xf32>
    %c0_5 = arith.constant 0 : index
    %c0_6 = arith.constant 0 : index
    %c0_7 = arith.constant 0 : index
    %6 = vector.load %arg8[%c0_5, %c0_6, %c0_7] : memref<1x1x128xf32, #tpu.memory_space<vmem>>, vector<1x1x128xf32>
    %7 = vector.shape_cast %6 : vector<1x1x128xf32> to vector<1x128xf32>
    %cst = arith.constant dense<0.000000e+00> : vector<32xf32>
    %8 = vector.multi_reduction <add>, %3, %cst [1] : vector<32x128xf32> to vector<32xf32>
    %9 = vector.shape_cast %8 : vector<32xf32> to vector<32x1xf32>
    %cst_8 = arith.constant 1.280000e+02 : f32
    %10 = vector.broadcast %cst_8 : f32 to vector<32x1xf32>
    %11 = arith.divf %9, %10 : vector<32x1xf32>
    %12 = vector.broadcast %11 : vector<32x1xf32> to vector<32x128xf32>
    %13 = arith.subf %3, %12 : vector<32x128xf32>
    %14 = arith.mulf %13, %13 : vector<32x128xf32>
    %cst_9 = arith.constant dense<0.000000e+00> : vector<32xf32>
    %15 = vector.multi_reduction <add>, %14, %cst_9 [1] : vector<32x128xf32> to vector<32xf32>
    %16 = vector.shape_cast %15 : vector<32xf32> to vector<32x1xf32>
    %cst_10 = arith.constant 1.280000e+02 : f32
    %17 = vector.broadcast %cst_10 : f32 to vector<32x1xf32>
    %18 = arith.divf %16, %17 : vector<32x1xf32>
    %19 = vector.broadcast %11 : vector<32x1xf32> to vector<32x128xf32>
    %20 = arith.subf %3, %19 : vector<32x128xf32>
    %cst_11 = arith.constant 9.99999974E-6 : f32
    %21 = vector.broadcast %cst_11 : f32 to vector<32x1xf32>
    %22 = arith.addf %18, %21 : vector<32x1xf32>
    %23 = math.rsqrt %22 : vector<32x1xf32>
    %24 = vector.broadcast %23 : vector<32x1xf32> to vector<32x128xf32>
    %25 = arith.mulf %20, %24 : vector<32x128xf32>
    %26 = vector.broadcast %5 : vector<1x128xf32> to vector<32x128xf32>
    %27 = arith.mulf %25, %26 : vector<32x128xf32>
    %28 = vector.broadcast %7 : vector<1x128xf32> to vector<32x128xf32>
    %29 = arith.addf %27, %28 : vector<32x128xf32>
    %c0_12 = arith.constant 0 : index
    %c0_13 = arith.constant 0 : index
    %c0_14 = arith.constant 0 : index
    %30 = vector.load %arg9[%c0_12, %c0_13, %c0_14] : memref<1x128x384xf32, #tpu.memory_space<vmem>>, vector<1x128x384xf32>
    %31 = vector.shape_cast %30 : vector<1x128x384xf32> to vector<128x384xf32>
    %cst_15 = arith.constant dense<0.000000e+00> : vector<32x384xf32>
    %32 = tpu.matmul %29, %31, %cst_15 {dimension_numbers = #tpu.dot_dimension_numbers<[1], [0], [0], [1], [0, 0, 1, 1], [], []>} : vector<32x128xf32>, vector<128x384xf32>, vector<32x384xf32> -> vector<32x384xf32>
    %c0_16 = arith.constant 0 : index
    %c0_17 = arith.constant 0 : index
    %c0_18 = arith.constant 0 : index
    %33 = vector.load %arg10[%c0_16, %c0_17, %c0_18] : memref<1x1x384xf32, #tpu.memory_space<vmem>>, vector<1x1x384xf32>
    %34 = vector.shape_cast %33 : vector<1x1x384xf32> to vector<1x384xf32>
    %35 = vector.broadcast %34 : vector<1x384xf32> to vector<32x384xf32>
    %36 = arith.addf %32, %35 : vector<32x384xf32>
    %37 = vector.extract_strided_slice %36 {offsets = [0, 0], sizes = [32, 128], strides = [1, 1]} : vector<32x384xf32> to vector<32x128xf32>
    %cst_19 = arith.constant 0.176776692 : f32
    %38 = vector.broadcast %cst_19 : f32 to vector<32x128xf32>
    %39 = arith.mulf %37, %38 : vector<32x128xf32>
    %40 = vector.shape_cast %39 : vector<32x128xf32> to vector<2x16x128xf32>
    %41 = vector.extract_strided_slice %36 {offsets = [0, 128], sizes = [32, 128], strides = [1, 1]} : vector<32x384xf32> to vector<32x128xf32>
    %42 = vector.shape_cast %41 : vector<32x128xf32> to vector<2x16x128xf32>
    %43 = vector.extract_strided_slice %36 {offsets = [0, 256], sizes = [32, 128], strides = [1, 1]} : vector<32x384xf32> to vector<32x128xf32>
    %44 = vector.shape_cast %43 : vector<32x128xf32> to vector<2x16x128xf32>
    %c0_20 = arith.constant 0 : index
    %c0_21 = arith.constant 0 : index
    %45 = vector.load %arg2[%c0_20, %c0_21] : memref<16x16xf32, #tpu.memory_space<vmem>>, vector<16x16xf32>
    %46 = vector.shape_cast %45 : vector<16x16xf32> to vector<1x16x16xf32>
    %c0_22 = arith.constant 0 : index
    %c0_23 = arith.constant 0 : index
    %c0_24 = arith.constant 0 : index
    %47 = vector.load %arg11[%c0_22, %c0_23, %c0_24] : memref<1x128x128xf32, #tpu.memory_space<vmem>>, vector<1x128x128xf32>
    %48 = vector.shape_cast %47 : vector<1x128x128xf32> to vector<128x128xf32>
    %cst_25 = arith.constant 0.000000e+00 : f32
    %49 = vector.broadcast %cst_25 : f32 to vector<32x128xf32>
    %50 = vector.extract_strided_slice %40 {offsets = [0, 0, 0], sizes = [2, 16, 32], strides = [1, 1, 1]} : vector<2x16x128xf32> to vector<2x16x32xf32>
    %51 = vector.extract_strided_slice %42 {offsets = [0, 0, 0], sizes = [2, 16, 32], strides = [1, 1, 1]} : vector<2x16x128xf32> to vector<2x16x32xf32>
    %52 = vector.extract_strided_slice %44 {offsets = [0, 0, 0], sizes = [2, 16, 32], strides = [1, 1, 1]} : vector<2x16x128xf32> to vector<2x16x32xf32>
    "tpu.trace_start"() <{level = 10 : i32, message = "bqd,bkd->bqk"}> : () -> ()
    %cst_26 = arith.constant dense<0.000000e+00> : vector<2x16x16xf32>
    %53 = tpu.matmul %50, %51, %cst_26 {dimension_numbers = #tpu.dot_dimension_numbers<[2], [2], [1], [1], [0, 0, 0, 1, 1, 1], [0], [0]>} : vector<2x16x32xf32>, vector<2x16x32xf32>, vector<2x16x16xf32> -> vector<2x16x16xf32>
    "tpu.trace_stop"() : () -> ()
    %54 = vector.broadcast %46 : vector<1x16x16xf32> to vector<2x16x16xf32>
    %55 = arith.addf %53, %54 : vector<2x16x16xf32>
    %cst_27 = arith.constant dense<0xFF800000> : vector<2x16xf32>
    %56 = vector.multi_reduction <maximumf>, %55, %cst_27 [2] : vector<2x16x16xf32> to vector<2x16xf32>
    %57 = vector.shape_cast %56 : vector<2x16xf32> to vector<2x16x1xf32>
    %58 = vector.broadcast %57 : vector<2x16x1xf32> to vector<2x16x16xf32>
    %59 = arith.subf %55, %58 : vector<2x16x16xf32>
    %60 = math.exp %59 : vector<2x16x16xf32>
    %cst_28 = arith.constant dense<0.000000e+00> : vector<2x16xf32>
    %61 = vector.multi_reduction <add>, %60, %cst_28 [2] : vector<2x16x16xf32> to vector<2x16xf32>
    %62 = vector.shape_cast %61 : vector<2x16xf32> to vector<2x16x1xf32>
    %63 = tpu.reciprocal %62 {approx = true} : vector<2x16x1xf32> -> vector<2x16x1xf32>
    %64 = vector.broadcast %63 : vector<2x16x1xf32> to vector<2x16x16xf32>
    %65 = arith.mulf %60, %64 : vector<2x16x16xf32>
    "tpu.trace_start"() <{level = 10 : i32, message = "bqk,bkd->bqd"}> : () -> ()
    %cst_29 = arith.constant dense<0.000000e+00> : vector<2x16x32xf32>
    %66 = tpu.matmul %65, %52, %cst_29 {dimension_numbers = #tpu.dot_dimension_numbers<[2], [1], [1], [2], [0, 0, 0, 1, 1, 2], [0], [0]>} : vector<2x16x16xf32>, vector<2x16x32xf32>, vector<2x16x32xf32> -> vector<2x16x32xf32>
    "tpu.trace_stop"() : () -> ()
    %67 = vector.shape_cast %66 : vector<2x16x32xf32> to vector<32x32xf32>
    %68 = vector.extract_strided_slice %48 {offsets = [0, 0], sizes = [32, 128], strides = [1, 1]} : vector<128x128xf32> to vector<32x128xf32>
    %cst_30 = arith.constant dense<0.000000e+00> : vector<32x128xf32>
    %69 = tpu.matmul %67, %68, %cst_30 {dimension_numbers = #tpu.dot_dimension_numbers<[1], [0], [0], [1], [0, 0, 1, 1], [], []>} : vector<32x32xf32>, vector<32x128xf32>, vector<32x128xf32> -> vector<32x128xf32>
    %70 = arith.addf %49, %69 : vector<32x128xf32>
    %71 = vector.extract_strided_slice %40 {offsets = [0, 0, 32], sizes = [2, 16, 32], strides = [1, 1, 1]} : vector<2x16x128xf32> to vector<2x16x32xf32>
    %72 = vector.extract_strided_slice %42 {offsets = [0, 0, 32], sizes = [2, 16, 32], strides = [1, 1, 1]} : vector<2x16x128xf32> to vector<2x16x32xf32>
    %73 = vector.extract_strided_slice %44 {offsets = [0, 0, 32], sizes = [2, 16, 32], strides = [1, 1, 1]} : vector<2x16x128xf32> to vector<2x16x32xf32>
    "tpu.trace_start"() <{level = 10 : i32, message = "bqd,bkd->bqk"}> : () -> ()
    %cst_31 = arith.constant dense<0.000000e+00> : vector<2x16x16xf32>
    %74 = tpu.matmul %71, %72, %cst_31 {dimension_numbers = #tpu.dot_dimension_numbers<[2], [2], [1], [1], [0, 0, 0, 1, 1, 1], [0], [0]>} : vector<2x16x32xf32>, vector<2x16x32xf32>, vector<2x16x16xf32> -> vector<2x16x16xf32>
    "tpu.trace_stop"() : () -> ()
    %75 = vector.broadcast %46 : vector<1x16x16xf32> to vector<2x16x16xf32>
    %76 = arith.addf %74, %75 : vector<2x16x16xf32>
    %cst_32 = arith.constant dense<0xFF800000> : vector<2x16xf32>
    %77 = vector.multi_reduction <maximumf>, %76, %cst_32 [2] : vector<2x16x16xf32> to vector<2x16xf32>
    %78 = vector.shape_cast %77 : vector<2x16xf32> to vector<2x16x1xf32>
    %79 = vector.broadcast %78 : vector<2x16x1xf32> to vector<2x16x16xf32>
    %80 = arith.subf %76, %79 : vector<2x16x16xf32>
    %81 = math.exp %80 : vector<2x16x16xf32>
    %cst_33 = arith.constant dense<0.000000e+00> : vector<2x16xf32>
    %82 = vector.multi_reduction <add>, %81, %cst_33 [2] : vector<2x16x16xf32> to vector<2x16xf32>
    %83 = vector.shape_cast %82 : vector<2x16xf32> to vector<2x16x1xf32>
    %84 = tpu.reciprocal %83 {approx = true} : vector<2x16x1xf32> -> vector<2x16x1xf32>
    %85 = vector.broadcast %84 : vector<2x16x1xf32> to vector<2x16x16xf32>
    %86 = arith.mulf %81, %85 : vector<2x16x16xf32>
    "tpu.trace_start"() <{level = 10 : i32, message = "bqk,bkd->bqd"}> : () -> ()
    %cst_34 = arith.constant dense<0.000000e+00> : vector<2x16x32xf32>
    %87 = tpu.matmul %86, %73, %cst_34 {dimension_numbers = #tpu.dot_dimension_numbers<[2], [1], [1], [2], [0, 0, 0, 1, 1, 2], [0], [0]>} : vector<2x16x16xf32>, vector<2x16x32xf32>, vector<2x16x32xf32> -> vector<2x16x32xf32>
    "tpu.trace_stop"() : () -> ()
    %88 = vector.shape_cast %87 : vector<2x16x32xf32> to vector<32x32xf32>
    %89 = vector.extract_strided_slice %48 {offsets = [32, 0], sizes = [32, 128], strides = [1, 1]} : vector<128x128xf32> to vector<32x128xf32>
    %cst_35 = arith.constant dense<0.000000e+00> : vector<32x128xf32>
    %90 = tpu.matmul %88, %89, %cst_35 {dimension_numbers = #tpu.dot_dimension_numbers<[1], [0], [0], [1], [0, 0, 1, 1], [], []>} : vector<32x32xf32>, vector<32x128xf32>, vector<32x128xf32> -> vector<32x128xf32>
    %91 = arith.addf %70, %90 : vector<32x128xf32>
    %92 = vector.extract_strided_slice %40 {offsets = [0, 0, 64], sizes = [2, 16, 32], strides = [1, 1, 1]} : vector<2x16x128xf32> to vector<2x16x32xf32>
    %93 = vector.extract_strided_slice %42 {offsets = [0, 0, 64], sizes = [2, 16, 32], strides = [1, 1, 1]} : vector<2x16x128xf32> to vector<2x16x32xf32>
    %94 = vector.extract_strided_slice %44 {offsets = [0, 0, 64], sizes = [2, 16, 32], strides = [1, 1, 1]} : vector<2x16x128xf32> to vector<2x16x32xf32>
    "tpu.trace_start"() <{level = 10 : i32, message = "bqd,bkd->bqk"}> : () -> ()
    %cst_36 = arith.constant dense<0.000000e+00> : vector<2x16x16xf32>
    %95 = tpu.matmul %92, %93, %cst_36 {dimension_numbers = #tpu.dot_dimension_numbers<[2], [2], [1], [1], [0, 0, 0, 1, 1, 1], [0], [0]>} : vector<2x16x32xf32>, vector<2x16x32xf32>, vector<2x16x16xf32> -> vector<2x16x16xf32>
    "tpu.trace_stop"() : () -> ()
    %96 = vector.broadcast %46 : vector<1x16x16xf32> to vector<2x16x16xf32>
    %97 = arith.addf %95, %96 : vector<2x16x16xf32>
    %cst_37 = arith.constant dense<0xFF800000> : vector<2x16xf32>
    %98 = vector.multi_reduction <maximumf>, %97, %cst_37 [2] : vector<2x16x16xf32> to vector<2x16xf32>
    %99 = vector.shape_cast %98 : vector<2x16xf32> to vector<2x16x1xf32>
    %100 = vector.broadcast %99 : vector<2x16x1xf32> to vector<2x16x16xf32>
    %101 = arith.subf %97, %100 : vector<2x16x16xf32>
    %102 = math.exp %101 : vector<2x16x16xf32>
    %cst_38 = arith.constant dense<0.000000e+00> : vector<2x16xf32>
    %103 = vector.multi_reduction <add>, %102, %cst_38 [2] : vector<2x16x16xf32> to vector<2x16xf32>
    %104 = vector.shape_cast %103 : vector<2x16xf32> to vector<2x16x1xf32>
    %105 = tpu.reciprocal %104 {approx = true} : vector<2x16x1xf32> -> vector<2x16x1xf32>
    %106 = vector.broadcast %105 : vector<2x16x1xf32> to vector<2x16x16xf32>
    %107 = arith.mulf %102, %106 : vector<2x16x16xf32>
    "tpu.trace_start"() <{level = 10 : i32, message = "bqk,bkd->bqd"}> : () -> ()
    %cst_39 = arith.constant dense<0.000000e+00> : vector<2x16x32xf32>
    %108 = tpu.matmul %107, %94, %cst_39 {dimension_numbers = #tpu.dot_dimension_numbers<[2], [1], [1], [2], [0, 0, 0, 1, 1, 2], [0], [0]>} : vector<2x16x16xf32>, vector<2x16x32xf32>, vector<2x16x32xf32> -> vector<2x16x32xf32>
    "tpu.trace_stop"() : () -> ()
    %109 = vector.shape_cast %108 : vector<2x16x32xf32> to vector<32x32xf32>
    %110 = vector.extract_strided_slice %48 {offsets = [64, 0], sizes = [32, 128], strides = [1, 1]} : vector<128x128xf32> to vector<32x128xf32>
    %cst_40 = arith.constant dense<0.000000e+00> : vector<32x128xf32>
    %111 = tpu.matmul %109, %110, %cst_40 {dimension_numbers = #tpu.dot_dimension_numbers<[1], [0], [0], [1], [0, 0, 1, 1], [], []>} : vector<32x32xf32>, vector<32x128xf32>, vector<32x128xf32> -> vector<32x128xf32>
    %112 = arith.addf %91, %111 : vector<32x128xf32>
    %113 = vector.extract_strided_slice %40 {offsets = [0, 0, 96], sizes = [2, 16, 32], strides = [1, 1, 1]} : vector<2x16x128xf32> to vector<2x16x32xf32>
    %114 = vector.extract_strided_slice %42 {offsets = [0, 0, 96], sizes = [2, 16, 32], strides = [1, 1, 1]} : vector<2x16x128xf32> to vector<2x16x32xf32>
    %115 = vector.extract_strided_slice %44 {offsets = [0, 0, 96], sizes = [2, 16, 32], strides = [1, 1, 1]} : vector<2x16x128xf32> to vector<2x16x32xf32>
    "tpu.trace_start"() <{level = 10 : i32, message = "bqd,bkd->bqk"}> : () -> ()
    %cst_41 = arith.constant dense<0.000000e+00> : vector<2x16x16xf32>
    %116 = tpu.matmul %113, %114, %cst_41 {dimension_numbers = #tpu.dot_dimension_numbers<[2], [2], [1], [1], [0, 0, 0, 1, 1, 1], [0], [0]>} : vector<2x16x32xf32>, vector<2x16x32xf32>, vector<2x16x16xf32> -> vector<2x16x16xf32>
    "tpu.trace_stop"() : () -> ()
    %117 = vector.broadcast %46 : vector<1x16x16xf32> to vector<2x16x16xf32>
    %118 = arith.addf %116, %117 : vector<2x16x16xf32>
    %cst_42 = arith.constant dense<0xFF800000> : vector<2x16xf32>
    %119 = vector.multi_reduction <maximumf>, %118, %cst_42 [2] : vector<2x16x16xf32> to vector<2x16xf32>
    %120 = vector.shape_cast %119 : vector<2x16xf32> to vector<2x16x1xf32>
    %121 = vector.broadcast %120 : vector<2x16x1xf32> to vector<2x16x16xf32>
    %122 = arith.subf %118, %121 : vector<2x16x16xf32>
    %123 = math.exp %122 : vector<2x16x16xf32>
    %cst_43 = arith.constant dense<0.000000e+00> : vector<2x16xf32>
    %124 = vector.multi_reduction <add>, %123, %cst_43 [2] : vector<2x16x16xf32> to vector<2x16xf32>
    %125 = vector.shape_cast %124 : vector<2x16xf32> to vector<2x16x1xf32>
    %126 = tpu.reciprocal %125 {approx = true} : vector<2x16x1xf32> -> vector<2x16x1xf32>
    %127 = vector.broadcast %126 : vector<2x16x1xf32> to vector<2x16x16xf32>
    %128 = arith.mulf %123, %127 : vector<2x16x16xf32>
    "tpu.trace_start"() <{level = 10 : i32, message = "bqk,bkd->bqd"}> : () -> ()
    %cst_44 = arith.constant dense<0.000000e+00> : vector<2x16x32xf32>
    %129 = tpu.matmul %128, %115, %cst_44 {dimension_numbers = #tpu.dot_dimension_numbers<[2], [1], [1], [2], [0, 0, 0, 1, 1, 2], [0], [0]>} : vector<2x16x16xf32>, vector<2x16x32xf32>, vector<2x16x32xf32> -> vector<2x16x32xf32>
    "tpu.trace_stop"() : () -> ()
    %130 = vector.shape_cast %129 : vector<2x16x32xf32> to vector<32x32xf32>
    %131 = vector.extract_strided_slice %48 {offsets = [96, 0], sizes = [32, 128], strides = [1, 1]} : vector<128x128xf32> to vector<32x128xf32>
    %cst_45 = arith.constant dense<0.000000e+00> : vector<32x128xf32>
    %132 = tpu.matmul %130, %131, %cst_45 {dimension_numbers = #tpu.dot_dimension_numbers<[1], [0], [0], [1], [0, 0, 1, 1], [], []>} : vector<32x32xf32>, vector<32x128xf32>, vector<32x128xf32> -> vector<32x128xf32>
    %133 = arith.addf %112, %132 : vector<32x128xf32>
    %134 = arith.addf %3, %133 : vector<32x128xf32>
    %c0_46 = arith.constant 0 : index
    %c0_47 = arith.constant 0 : index
    %c0_48 = arith.constant 0 : index
    %135 = vector.load %arg12[%c0_46, %c0_47, %c0_48] : memref<1x1x128xf32, #tpu.memory_space<vmem>>, vector<1x1x128xf32>
    %136 = vector.shape_cast %135 : vector<1x1x128xf32> to vector<1x128xf32>
    %137 = vector.broadcast %136 : vector<1x128xf32> to vector<32x128xf32>
    %138 = arith.addf %134, %137 : vector<32x128xf32>
    %c0_49 = arith.constant 0 : index
    %c0_50 = arith.constant 0 : index
    %c0_51 = arith.constant 0 : index
    %139 = vector.load %arg13[%c0_49, %c0_50, %c0_51] : memref<1x1x128xf32, #tpu.memory_space<vmem>>, vector<1x1x128xf32>
    %140 = vector.shape_cast %139 : vector<1x1x128xf32> to vector<1x128xf32>
    %c0_52 = arith.constant 0 : index
    %c0_53 = arith.constant 0 : index
    %c0_54 = arith.constant 0 : index
    %141 = vector.load %arg14[%c0_52, %c0_53, %c0_54] : memref<1x1x128xf32, #tpu.memory_space<vmem>>, vector<1x1x128xf32>
    %142 = vector.shape_cast %141 : vector<1x1x128xf32> to vector<1x128xf32>
    %cst_55 = arith.constant dense<0.000000e+00> : vector<32xf32>
    %143 = vector.multi_reduction <add>, %138, %cst_55 [1] : vector<32x128xf32> to vector<32xf32>
    %144 = vector.shape_cast %143 : vector<32xf32> to vector<32x1xf32>
    %cst_56 = arith.constant 1.280000e+02 : f32
    %145 = vector.broadcast %cst_56 : f32 to vector<32x1xf32>
    %146 = arith.divf %144, %145 : vector<32x1xf32>
    %147 = vector.broadcast %146 : vector<32x1xf32> to vector<32x128xf32>
    %148 = arith.subf %138, %147 : vector<32x128xf32>
    %149 = arith.mulf %148, %148 : vector<32x128xf32>
    %cst_57 = arith.constant dense<0.000000e+00> : vector<32xf32>
    %150 = vector.multi_reduction <add>, %149, %cst_57 [1] : vector<32x128xf32> to vector<32xf32>
    %151 = vector.shape_cast %150 : vector<32xf32> to vector<32x1xf32>
    %cst_58 = arith.constant 1.280000e+02 : f32
    %152 = vector.broadcast %cst_58 : f32 to vector<32x1xf32>
    %153 = arith.divf %151, %152 : vector<32x1xf32>
    %154 = vector.broadcast %146 : vector<32x1xf32> to vector<32x128xf32>
    %155 = arith.subf %138, %154 : vector<32x128xf32>
    %cst_59 = arith.constant 9.99999974E-6 : f32
    %156 = vector.broadcast %cst_59 : f32 to vector<32x1xf32>
    %157 = arith.addf %153, %156 : vector<32x1xf32>
    %158 = math.rsqrt %157 : vector<32x1xf32>
    %159 = vector.broadcast %158 : vector<32x1xf32> to vector<32x128xf32>
    %160 = arith.mulf %155, %159 : vector<32x128xf32>
    %161 = vector.broadcast %140 : vector<1x128xf32> to vector<32x128xf32>
    %162 = arith.mulf %160, %161 : vector<32x128xf32>
    %163 = vector.broadcast %142 : vector<1x128xf32> to vector<32x128xf32>
    %164 = arith.addf %162, %163 : vector<32x128xf32>
    %c0_60 = arith.constant 0 : index
    %c0_61 = arith.constant 0 : index
    %c0_62 = arith.constant 0 : index
    %165 = vector.load %arg15[%c0_60, %c0_61, %c0_62] : memref<1x128x512xf32, #tpu.memory_space<vmem>>, vector<1x128x512xf32>
    %166 = vector.shape_cast %165 : vector<1x128x512xf32> to vector<128x512xf32>
    %cst_63 = arith.constant dense<0.000000e+00> : vector<32x512xf32>
    %167 = tpu.matmul %164, %166, %cst_63 {dimension_numbers = #tpu.dot_dimension_numbers<[1], [0], [0], [1], [0, 0, 1, 1], [], []>} : vector<32x128xf32>, vector<128x512xf32>, vector<32x512xf32> -> vector<32x512xf32>
    %c0_64 = arith.constant 0 : index
    %c0_65 = arith.constant 0 : index
    %c0_66 = arith.constant 0 : index
    %168 = vector.load %arg16[%c0_64, %c0_65, %c0_66] : memref<1x1x512xf32, #tpu.memory_space<vmem>>, vector<1x1x512xf32>
    %169 = vector.shape_cast %168 : vector<1x1x512xf32> to vector<1x512xf32>
    %170 = vector.broadcast %169 : vector<1x512xf32> to vector<32x512xf32>
    %171 = arith.addf %167, %170 : vector<32x512xf32>
    %cst_67 = arith.constant 1.702000e+00 : f32
    %172 = vector.broadcast %cst_67 : f32 to vector<32x512xf32>
    %173 = arith.mulf %172, %171 : vector<32x512xf32>
    %174 = arith.negf %173 : vector<32x512xf32>
    %175 = math.exp %174 : vector<32x512xf32>
    %cst_68 = arith.constant 1.000000e+00 : f32
    %176 = vector.broadcast %cst_68 : f32 to vector<32x512xf32>
    %177 = arith.addf %176, %175 : vector<32x512xf32>
    %178 = arith.divf %176, %177 : vector<32x512xf32>
    %179 = arith.mulf %171, %178 : vector<32x512xf32>
    %c0_69 = arith.constant 0 : index
    %c0_70 = arith.constant 0 : index
    %c0_71 = arith.constant 0 : index
    %180 = vector.load %arg17[%c0_69, %c0_70, %c0_71] : memref<1x512x128xf32, #tpu.memory_space<vmem>>, vector<1x512x128xf32>
    %181 = vector.shape_cast %180 : vector<1x512x128xf32> to vector<512x128xf32>
    %cst_72 = arith.constant dense<0.000000e+00> : vector<32x128xf32>
    %182 = tpu.matmul %179, %181, %cst_72 {dimension_numbers = #tpu.dot_dimension_numbers<[1], [0], [0], [1], [0, 0, 1, 1], [], []>} : vector<32x512xf32>, vector<512x128xf32>, vector<32x128xf32> -> vector<32x128xf32>
    %183 = arith.addf %138, %182 : vector<32x128xf32>
    %c0_73 = arith.constant 0 : index
    %c0_74 = arith.constant 0 : index
    %c0_75 = arith.constant 0 : index
    %184 = vector.load %arg18[%c0_73, %c0_74, %c0_75] : memref<1x1x128xf32, #tpu.memory_space<vmem>>, vector<1x1x128xf32>
    %185 = vector.shape_cast %184 : vector<1x1x128xf32> to vector<1x128xf32>
    %186 = vector.broadcast %185 : vector<1x128xf32> to vector<32x128xf32>
    %187 = arith.addf %183, %186 : vector<32x128xf32>
    %c0_76 = arith.constant 0 : index
    %c0_77 = arith.constant 0 : index
    %188 = vector.load %arg21[%c0_76, %c0_77] : memref<32x128xf32, #tpu.memory_space<vmem>>, vector<32x128xf32>
    tpu.vector_store %arg21[%c0_76, %c0_77], %187 {strides = array<i32>} : memref<32x128xf32, #tpu.memory_space<vmem>>, vector<32x128xf32>,
    %c1_i32 = arith.constant 1 : i32
    %189 = arith.cmpi eq, %arg0, %c1_i32 : i32
    %190 = arith.extui %189 : i1 to i32
    %c0_i32_78 = arith.constant 0 : i32
    %191 = arith.cmpi ne, %190, %c0_i32_78 : i32
    scf.if %191 {
      %c0_79 = arith.constant 0 : index
      %c0_80 = arith.constant 0 : index
      %192 = vector.load %arg4[%c0_79, %c0_80] : memref<1x128xf32, #tpu.memory_space<vmem>>, vector<1x128xf32>
      %c0_81 = arith.constant 0 : index
      %c0_82 = arith.constant 0 : index
      %193 = vector.load %arg5[%c0_81, %c0_82] : memref<1x128xf32, #tpu.memory_space<vmem>>, vector<1x128xf32>
      %cst_83 = arith.constant dense<0.000000e+00> : vector<32xf32>
      %194 = vector.multi_reduction <add>, %187, %cst_83 [1] : vector<32x128xf32> to vector<32xf32>
      %195 = vector.shape_cast %194 : vector<32xf32> to vector<32x1xf32>
      %cst_84 = arith.constant 1.280000e+02 : f32
      %196 = vector.broadcast %cst_84 : f32 to vector<32x1xf32>
      %197 = arith.divf %195, %196 : vector<32x1xf32>
      %198 = vector.broadcast %197 : vector<32x1xf32> to vector<32x128xf32>
      %199 = arith.subf %187, %198 : vector<32x128xf32>
      %200 = arith.mulf %199, %199 : vector<32x128xf32>
      %cst_85 = arith.constant dense<0.000000e+00> : vector<32xf32>
      %201 = vector.multi_reduction <add>, %200, %cst_85 [1] : vector<32x128xf32> to vector<32xf32>
      %202 = vector.shape_cast %201 : vector<32xf32> to vector<32x1xf32>
      %cst_86 = arith.constant 1.280000e+02 : f32
      %203 = vector.broadcast %cst_86 : f32 to vector<32x1xf32>
      %204 = arith.divf %202, %203 : vector<32x1xf32>
      %205 = vector.broadcast %197 : vector<32x1xf32> to vector<32x128xf32>
      %206 = arith.subf %187, %205 : vector<32x128xf32>
      %cst_87 = arith.constant 9.99999974E-6 : f32
      %207 = vector.broadcast %cst_87 : f32 to vector<32x1xf32>
      %208 = arith.addf %204, %207 : vector<32x1xf32>
      %209 = math.rsqrt %208 : vector<32x1xf32>
      %210 = vector.broadcast %209 : vector<32x1xf32> to vector<32x128xf32>
      %211 = arith.mulf %206, %210 : vector<32x128xf32>
      %212 = vector.broadcast %192 : vector<1x128xf32> to vector<32x128xf32>
      %213 = arith.mulf %211, %212 : vector<32x128xf32>
      %214 = vector.broadcast %193 : vector<1x128xf32> to vector<32x128xf32>
      %215 = arith.addf %213, %214 : vector<32x128xf32>
      %c0_88 = arith.constant 0 : index
      %c0_89 = arith.constant 0 : index
      %216 = vector.load %arg19[%c0_88, %c0_89] : memref<32x128xf32, #tpu.memory_space<vmem>>, vector<32x128xf32>
      tpu.vector_store %arg19[%c0_88, %c0_89], %215 {strides = array<i32>} : memref<32x128xf32, #tpu.memory_space<vmem>>, vector<32x128xf32>,
      %c0_90 = arith.constant 0 : index
      %c0_91 = arith.constant 0 : index
      %217 = vector.load %arg3[%c0_90, %c0_91] : memref<2x32xf32, #tpu.memory_space<vmem>>, vector<2x32xf32>
      %cst_92 = arith.constant dense<0.000000e+00> : vector<2x128xf32>
      %218 = tpu.matmul %217, %215, %cst_92 {dimension_numbers = #tpu.dot_dimension_numbers<[1], [0], [0], [1], [0, 0, 1, 1], [], []>} : vector<2x32xf32>, vector<32x128xf32>, vector<2x128xf32> -> vector<2x128xf32>
      %c0_93 = arith.constant 0 : index
      %c0_94 = arith.constant 0 : index
      %219 = vector.load %arg6[%c0_93, %c0_94] : memref<128x128xf32, #tpu.memory_space<vmem>>, vector<128x128xf32>
      %cst_95 = arith.constant dense<0.000000e+00> : vector<2x128xf32>
      %220 = tpu.matmul %218, %219, %cst_95 {dimension_numbers = #tpu.dot_dimension_numbers<[1], [0], [0], [1], [0, 0, 1, 1], [], []>} : vector<2x128xf32>, vector<128x128xf32>, vector<2x128xf32> -> vector<2x128xf32>
      %c0_96 = arith.constant 0 : index
      %c0_97 = arith.constant 0 : index
      %221 = vector.load %arg20[%c0_96, %c0_97] : memref<2x128xf32, #tpu.memory_space<vmem>>, vector<2x128xf32>
      tpu.vector_store %arg20[%c0_96, %c0_97], %220 {strides = array<i32>} : memref<2x128xf32, #tpu.memory_space<vmem>>, vector<2x128xf32>,
    } else {
    }
    return
  }
  func.func @transform_0(%arg0: i32) -> (i32, i32) {
    %c0_i32 = arith.constant 0 : i32
    %c0_i32_0 = arith.constant 0 : i32
    %c0_i32_1 = arith.constant 0 : i32
    return %c0_i32, %c0_i32_0 : i32, i32
  }
  func.func @transform_1(%arg0: i32) -> (i32, i32) {
    %c0_i32 = arith.constant 0 : i32
    %c0_i32_0 = arith.constant 0 : i32
    %c0_i32_1 = arith.constant 0 : i32
    return %c0_i32, %c0_i32_0 : i32, i32
  }
  func.func @transform_2(%arg0: i32) -> (i32, i32) {
    %c0_i32 = arith.constant 0 : i32
    %c0_i32_0 = arith.constant 0 : i32
    %c0_i32_1 = arith.constant 0 : i32
    return %c0_i32, %c0_i32_0 : i32, i32
  }
  func.func @transform_3(%arg0: i32) -> (i32, i32) {
    %c0_i32 = arith.constant 0 : i32
    %c0_i32_0 = arith.constant 0 : i32
    %c0_i32_1 = arith.constant 0 : i32
    return %c0_i32, %c0_i32_0 : i32, i32
  }
  func.func @transform_4(%arg0: i32) -> (i32, i32) {
    %c0_i32 = arith.constant 0 : i32
    %c0_i32_0 = arith.constant 0 : i32
    %c0_i32_1 = arith.constant 0 : i32
    return %c0_i32, %c0_i32_0 : i32, i32
  }
  func.func @transform_5(%arg0: i32) -> (i32, i32) {
    %c0_i32 = arith.constant 0 : i32
    %c0_i32_0 = arith.constant 0 : i32
    %c0_i32_1 = arith.constant 0 : i32
    return %c0_i32, %c0_i32_0 : i32, i32
  }
  func.func @transform_6(%arg0: i32) -> (i32, i32, i32) {
    %c0_i32 = arith.constant 0 : i32
    %c0_i32_0 = arith.constant 0 : i32
    %c0_i32_1 = arith.constant 0 : i32
    return %arg0, %c0_i32, %c0_i32_0 : i32, i32, i32
  }
  func.func @transform_7(%arg0: i32) -> (i32, i32, i32) {
    %c0_i32 = arith.constant 0 : i32
    %c0_i32_0 = arith.constant 0 : i32
    %c0_i32_1 = arith.constant 0 : i32
    return %arg0, %c0_i32, %c0_i32_0 : i32, i32, i32
  }
  func.func @transform_8(%arg0: i32) -> (i32, i32, i32) {
    %c0_i32 = arith.constant 0 : i32
    %c0_i32_0 = arith.constant 0 : i32
    %c0_i32_1 = arith.constant 0 : i32
    return %arg0, %c0_i32, %c0_i32_0 : i32, i32, i32
  }
  func.func @transform_9(%arg0: i32) -> (i32, i32, i32) {
    %c0_i32 = arith.constant 0 : i32
    %c0_i32_0 = arith.constant 0 : i32
    %c0_i32_1 = arith.constant 0 : i32
    return %arg0, %c0_i32, %c0_i32_0 : i32, i32, i32
  }
  func.func @transform_10(%arg0: i32) -> (i32, i32, i32) {
    %c0_i32 = arith.constant 0 : i32
    %c0_i32_0 = arith.constant 0 : i32
    %c0_i32_1 = arith.constant 0 : i32
    return %arg0, %c0_i32, %c0_i32_0 : i32, i32, i32
  }
  func.func @transform_11(%arg0: i32) -> (i32, i32, i32) {
    %c0_i32 = arith.constant 0 : i32
    %c0_i32_0 = arith.constant 0 : i32
    %c0_i32_1 = arith.constant 0 : i32
    return %arg0, %c0_i32, %c0_i32_0 : i32, i32, i32
  }
  func.func @transform_12(%arg0: i32) -> (i32, i32, i32) {
    %c0_i32 = arith.constant 0 : i32
    %c0_i32_0 = arith.constant 0 : i32
    %c0_i32_1 = arith.constant 0 : i32
    return %arg0, %c0_i32, %c0_i32_0 : i32, i32, i32
  }
  func.func @transform_13(%arg0: i32) -> (i32, i32, i32) {
    %c0_i32 = arith.constant 0 : i32
    %c0_i32_0 = arith.constant 0 : i32
    %c0_i32_1 = arith.constant 0 : i32
    return %arg0, %c0_i32, %c0_i32_0 : i32, i32, i32
  }
  func.func @transform_14(%arg0: i32) -> (i32, i32, i32) {
    %c0_i32 = arith.constant 0 : i32
    %c0_i32_0 = arith.constant 0 : i32
    %c0_i32_1 = arith.constant 0 : i32
    return %arg0, %c0_i32, %c0_i32_0 : i32, i32, i32
  }
  func.func @transform_15(%arg0: i32) -> (i32, i32, i32) {
    %c0_i32 = arith.constant 0 : i32
    %c0_i32_0 = arith.constant 0 : i32
    %c0_i32_1 = arith.constant 0 : i32
    return %arg0, %c0_i32, %c0_i32_0 : i32, i32, i32
  }
  func.func @transform_16(%arg0: i32) -> (i32, i32, i32) {
    %c0_i32 = arith.constant 0 : i32
    %c0_i32_0 = arith.constant 0 : i32
    %c0_i32_1 = arith.constant 0 : i32
    return %arg0, %c0_i32, %c0_i32_0 : i32, i32, i32
  }
  func.func @transform_17(%arg0: i32) -> (i32, i32, i32) {
    %c0_i32 = arith.constant 0 : i32
    %c0_i32_0 = arith.constant 0 : i32
    %c0_i32_1 = arith.constant 0 : i32
    return %arg0, %c0_i32, %c0_i32_0 : i32, i32, i32
  }
  func.func @transform_18(%arg0: i32) -> (i32, i32) {
    %c0_i32 = arith.constant 0 : i32
    %c0_i32_0 = arith.constant 0 : i32
    %c0_i32_1 = arith.constant 0 : i32
    return %c0_i32, %c0_i32_0 : i32, i32
  }
  func.func @transform_19(%arg0: i32) -> (i32, i32) {
    %c0_i32 = arith.constant 0 : i32
    %c0_i32_0 = arith.constant 0 : i32
    %c0_i32_1 = arith.constant 0 : i32
    return %c0_i32, %c0_i32_0 : i32, i32
  }
}

</mosaic_0001>

<llo_original>
// kernel: clip_text_encoder_forward.1
$region0: #{clip_text_encoder_forward.1}
  #allocation0 [shape = 'u32[]', space=smem, size = 0x4, offset = 0x4, fixed_abs, tag = 'smem constant byte address 0x4 - core index']
  #allocation1 [shape = 'u32[144,128]{1,0:T(1,128)}', space=vmem, size = 0x12000, scoped, tag = 'internal scratch']
  #allocation2 [shape = 'f32[32,128]{1,0:T(8,128)}', space=vmem, size = 0x4000, scoped, tag = 'scratch operand']
  %s0 = inlined_call_operand.vmem [shape: f32[32,128], index: 0, kind: input, shape index: {}]
  %s1 = inlined_call_operand.vmem [shape: f32[16,16], index: 1, kind: input, shape index: {}]
  %s2 = inlined_call_operand.vmem [shape: f32[2,32], index: 2, kind: input, shape index: {}]
  %s3 = inlined_call_operand.vmem [shape: f32[1,128], index: 3, kind: input, shape index: {}]
  %s4 = inlined_call_operand.vmem [shape: f32[1,128], index: 4, kind: input, shape index: {}]
  %s5 = inlined_call_operand.vmem [shape: f32[128,128], index: 5, kind: input, shape index: {}]
  %s6 = inlined_call_operand.vmem [shape: f32[2,1,128], index: 6, kind: input, shape index: {}]
  %s7 = inlined_call_operand.vmem [shape: f32[2,1,128], index: 7, kind: input, shape index: {}]
  %s8 = inlined_call_operand.hbm [shape: f32[2,128,384], index: 8, kind: input, shape index: {}]
  %s9 = inlined_call_operand.vmem [shape: f32[2,1,384], index: 9, kind: input, shape index: {}]
  %s10 = inlined_call_operand.vmem [shape: f32[2,128,128], index: 10, kind: input, shape index: {}]
  %s11 = inlined_call_operand.vmem [shape: f32[2,1,128], index: 11, kind: input, shape index: {}]
  %s12 = inlined_call_operand.vmem [shape: f32[2,1,128], index: 12, kind: input, shape index: {}]
  %s13 = inlined_call_operand.vmem [shape: f32[2,1,128], index: 13, kind: input, shape index: {}]
  %s14 = inlined_call_operand.hbm [shape: f32[2,128,512], index: 14, kind: input, shape index: {}]
  %s15 = inlined_call_operand.vmem [shape: f32[2,1,512], index: 15, kind: input, shape index: {}]
  %s16 = inlined_call_operand.hbm [shape: f32[2,512,128], index: 16, kind: input, shape index: {}]
  %s17 = inlined_call_operand.vmem [shape: f32[2,1,128], index: 17, kind: input, shape index: {}]
  %s18 = inlined_call_operand.hbm [shape: f32[32,128], index: 18, kind: output, shape index: {0}]
  %s19 = inlined_call_operand.hbm [shape: f32[2,128], index: 19, kind: output, shape index: {1}]
  %20 = xla_tuple %s18, %s19
  %s21 = sld [smem:[#allocation0]]
  $region133: #{clip_text_encoder_forward.1} parent=0
    _
  %s23 = ssub.s32 1, %s21
  %s24 = scalar_select 0, %s23, %s21
  $region1: #{clip_text_encoder_forward.1} parent=0
    #allocation3 [shape = 'u8[393216]{0}', space=vmem, size = 0x60000, scoped, tag = 'input window, operand 8']
    #allocation4 [shape = 's32[2]{0}', space=sflag, size = 0x8, scoped, tag = 'scoped memory for clip_text_encoder_forward.1']
    #allocation5 [shape = 's32[2]{0}', space=sflag, size = 0x8, scoped, tag = 'scoped memory for clip_text_encoder_forward.1']
    #allocation6 [shape = 'u8[524288]{0}', space=vmem, size = 0x80000, scoped, tag = 'input window, operand 14']
    #allocation7 [shape = 's32[2]{0}', space=sflag, size = 0x8, scoped, tag = 'scoped memory for clip_text_encoder_forward.1']
    #allocation8 [shape = 'u8[524288]{0}', space=vmem, size = 0x80000, scoped, tag = 'input window, operand 16']
    #allocation9 [shape = 'u8[16384]{0}', space=vmem, size = 0x4000, scoped, tag = 'output window, operand 0, single buffered']
    #allocation10 [shape = 'u8[1024]{0}', space=vmem, size = 0x400, scoped, tag = 'output window, operand 1, single buffered']
    #allocation11 [shape = 's32[1]{0}', space=sflag, size = 0x4, scoped, tag = 'scoped memory for clip_text_encoder_forward.1']
    %25 = vsyncpa [#allocation4], 0
    %s26 = scalar_lea.sflag [#allocation4], 1
    %27 = vsyncpa %s26, 0
    %28 = vsyncpa [#allocation7], 0
    %s29 = scalar_lea.sflag [#allocation7], 1
    %30 = vsyncpa %s29, 0
    %31 = vsyncpa [#allocation5], 0
    %32 = vsyncpa [#allocation11], 0
    loop: start=0, step=1, limit=4
    $region2: #{clip_text_encoder_forward.1} parent=1 // loop_pre_header
      _
    $region3: #{clip_text_encoder_forward.1} parent=1 // loop_header
      %s34 = sphi 0, %s38
      %p35 = scmp.ge.s32.totalorder %s34, 4
      %s42 = sphi 0, %s42
      %s44 = sphi 0, %s42
      %s45 = sphi 0, %s44
      %s59 = sphi 0, %s45
      %s63 = sphi 0, %s63
      %s65 = sphi 0, %s63
      %s66 = sphi 0, %s65
      %s80 = sphi 0, %s66
      %s84 = sphi 0, %s84
      %s86 = sphi 0, %s84
      %s87 = sphi 0, %s86
      %s101 = sphi 0, %s87
      %s105 = sphi 0, %s105
      %s107 = sphi 0, %s105
      %s108 = sphi 0, %s107
      %s122 = sphi 0, %s108
      %s126 = sphi 0, %s126
      %s128 = sphi 0, %s126
      %s129 = sphi 0, %s128
      %s143 = sphi 0, %s129
      %s147 = sphi 0, %s147
      %s149 = sphi 0, %s147
      %s150 = sphi 0, %s149
      %s164 = sphi 0, %s150
      %s170 = sphi 0, %s172
      %s173 = sphi 0, %s170
      %s174 = sphi 0, %s173
      %s190 = sphi 0, %s174
      %s196 = sphi 0, %s198
      %s199 = sphi 0, %s196
      %s200 = sphi 0, %s199
      %s216 = sphi 0, %s200
      %s222 = sphi 0, %s224
      %s225 = sphi 0, %s222
      %s226 = sphi 0, %s225
      %s242 = sphi 0, %s226
      %s248 = sphi 0, %s250
      %s251 = sphi 0, %s248
      %s252 = sphi 0, %s251
      %s268 = sphi 0, %s252
      %s274 = sphi 0, %s276
      %s277 = sphi 0, %s274
      %s278 = sphi 0, %s277
      %s294 = sphi 0, %s278
      %s300 = sphi 0, %s302
      %s303 = sphi 0, %s300
      %s304 = sphi 0, %s303
      %s320 = sphi 0, %s304
      %s326 = sphi 0, %s328
      %s329 = sphi 0, %s326
      %s330 = sphi 0, %s329
      %s346 = sphi 0, %s330
      %s352 = sphi 0, %s354
      %s355 = sphi 0, %s352
      %s356 = sphi 0, %s355
      %s372 = sphi 0, %s356
      %s378 = sphi 0, %s380
      %s381 = sphi 0, %s378
      %s382 = sphi 0, %s381
      %s398 = sphi 0, %s382
      %s404 = sphi 0, %s406
      %s407 = sphi 0, %s404
      %s408 = sphi 0, %s407
      %s424 = sphi 0, %s408
      %s430 = sphi 0, %s432
      %s433 = sphi 0, %s430
      %s434 = sphi 0, %s433
      %s450 = sphi 0, %s434
      %s456 = sphi 0, %s458
      %s459 = sphi 0, %s456
      %s460 = sphi 0, %s459
      %s476 = sphi 0, %s460
      %s480 = sphi 0, %s480
      %s482 = sphi 0, %s480
      %s483 = sphi 0, %s482
      %s497 = sphi 0, %s483
      %s501 = sphi 0, %s501
      %s503 = sphi 0, %s501
      %s504 = sphi 0, %s503
      %s518 = sphi 0, %s504
    $region4: #{clip_text_encoder_forward.1} parent=1 // loop_header_branch
      %37 = sbr.rel (%p35) target = $region8
    $region5: #{clip_text_encoder_forward.1} parent=1 // loop_body
      %s39 = ssub.s32 %s34, 1
      %s40 = ssub.s32 %s34, 2
      %s41 = sadd.s32 %s34, 1
      %s43 = sadd.s32 %s42, 1
      %p46 = scmp.eq.s32.totalorder %s34, 1
      %p47 = scmp.ne.s32.totalorder %s42, %s44
      %p48 = scmp.eq.s32.totalorder %s34, 0
      %p49 = por %p47, %p48
      %p50 = scmp.ne.s32.totalorder %s42, %s44
      %p51 = scmp.eq.s32.totalorder %s39, 1
      %p52 = por %p50, %p51
      %p53 = scmp.ne.s32.totalorder %s44, %s45
      %p54 = scmp.eq.s32.totalorder %s39, 0
      %p55 = por %p53, %p54
      %p56 = scmp.ne.s32.totalorder %s44, %s45
      %p57 = scmp.eq.s32.totalorder %s40, 1
      %p58 = por %p56, %p57
      %p60 = scmp.ne.s32.totalorder %s45, %s59
      %p61 = scmp.eq.s32.totalorder %s40, 0
      %p62 = por %p60, %p61
      %s64 = sadd.s32 %s63, 1
      %p67 = scmp.eq.s32.totalorder %s34, 1
      %p68 = scmp.ne.s32.totalorder %s63, %s65
      %p69 = scmp.eq.s32.totalorder %s34, 0
      %p70 = por %p68, %p69
      %p71 = scmp.ne.s32.totalorder %s63, %s65
      %p72 = scmp.eq.s32.totalorder %s39, 1
      %p73 = por %p71, %p72
      %p74 = scmp.ne.s32.totalorder %s65, %s66
      %p75 = scmp.eq.s32.totalorder %s39, 0
      %p76 = por %p74, %p75
      %p77 = scmp.ne.s32.totalorder %s65, %s66
      %p78 = scmp.eq.s32.totalorder %s40, 1
      %p79 = por %p77, %p78
      %p81 = scmp.ne.s32.totalorder %s66, %s80
      %p82 = scmp.eq.s32.totalorder %s40, 0
      %p83 = por %p81, %p82
      %s85 = sadd.s32 %s84, 1
      %p88 = scmp.eq.s32.totalorder %s34, 1
      %p89 = scmp.ne.s32.totalorder %s84, %s86
      %p90 = scmp.eq.s32.totalorder %s34, 0
      %p91 = por %p89, %p90
      %p92 = scmp.ne.s32.totalorder %s84, %s86
      %p93 = scmp.eq.s32.totalorder %s39, 1
      %p94 = por %p92, %p93
      %p95 = scmp.ne.s32.totalorder %s86, %s87
      %p96 = scmp.eq.s32.totalorder %s39, 0
      %p97 = por %p95, %p96
      %p98 = scmp.ne.s32.totalorder %s86, %s87
      %p99 = scmp.eq.s32.totalorder %s40, 1
      %p100 = por %p98, %p99
      %p102 = scmp.ne.s32.totalorder %s87, %s101
      %p103 = scmp.eq.s32.totalorder %s40, 0
      %p104 = por %p102, %p103
      %s106 = sadd.s32 %s105, 1
      %p109 = scmp.eq.s32.totalorder %s34, 1
      %p110 = scmp.ne.s32.totalorder %s105, %s107
      %p111 = scmp.eq.s32.totalorder %s34, 0
      %p112 = por %p110, %p111
      %p113 = scmp.ne.s32.totalorder %s105, %s107
      %p114 = scmp.eq.s32.totalorder %s39, 1
      %p115 = por %p113, %p114
      %p116 = scmp.ne.s32.totalorder %s107, %s108
      %p117 = scmp.eq.s32.totalorder %s39, 0
      %p118 = por %p116, %p117
      %p119 = scmp.ne.s32.totalorder %s107, %s108
      %p120 = scmp.eq.s32.totalorder %s40, 1
      %p121 = por %p119, %p120
      %p123 = scmp.ne.s32.totalorder %s108, %s122
      %p124 = scmp.eq.s32.totalorder %s40, 0
      %p125 = por %p123, %p124
      %s127 = sadd.s32 %s126, 1
      %p130 = scmp.eq.s32.totalorder %s34, 1
      %p131 = scmp.ne.s32.totalorder %s126, %s128
      %p132 = scmp.eq.s32.totalorder %s34, 0
      %p133 = por %p131, %p132
      %p134 = scmp.ne.s32.totalorder %s126, %s128
      %p135 = scmp.eq.s32.totalorder %s39, 1
      %p136 = por %p134, %p135
      %p137 = scmp.ne.s32.totalorder %s128, %s129
      %p138 = scmp.eq.s32.totalorder %s39, 0
      %p139 = por %p137, %p138
      %p140 = scmp.ne.s32.totalorder %s128, %s129
      %p141 = scmp.eq.s32.totalorder %s40, 1
      %p142 = por %p140, %p141
      %p144 = scmp.ne.s32.totalorder %s129, %s143
      %p145 = scmp.eq.s32.totalorder %s40, 0
      %p146 = por %p144, %p145
      %s148 = sadd.s32 %s147, 1
      %p151 = scmp.eq.s32.totalorder %s34, 1
      %p152 = scmp.ne.s32.totalorder %s147, %s149
      %p153 = scmp.eq.s32.totalorder %s34, 0
      %p154 = por %p152, %p153
      %p155 = scmp.ne.s32.totalorder %s147, %s149
      %p156 = scmp.eq.s32.totalorder %s39, 1
      %p157 = por %p155, %p156
      %p158 = scmp.ne.s32.totalorder %s149, %s150
      %p159 = scmp.eq.s32.totalorder %s39, 0
      %p160 = por %p158, %p159
      %p161 = scmp.ne.s32.totalorder %s149, %s150
      %p162 = scmp.eq.s32.totalorder %s40, 1
      %p163 = por %p161, %p162
      %p165 = scmp.ne.s32.totalorder %s150, %s164
      %p166 = scmp.eq.s32.totalorder %s40, 0
      %p167 = por %p165, %p166
      %s168 = ssub.s32 %s34, %s41
      %p169 = scmp.eq.s32.totalorder %s168, 0
      %s171 = sadd.s32 %s170, 1
      %s172 = scalar_select %p169, %s170, %s171
      %p175 = pneg %p169
      %p176 = scmp.eq.s32.totalorder %s34, 1
      %p177 = por %p175, %p176
      %p178 = scmp.ne.s32.totalorder %s170, %s173
      %p179 = scmp.eq.s32.totalorder %s34, 0
      %p180 = por %p178, %p179
      %p181 = scmp.ne.s32.totalorder %s170, %s173
      %p182 = scmp.eq.s32.totalorder %s39, 1
      %p183 = por %p181, %p182
      %p184 = scmp.ne.s32.totalorder %s173, %s174
      %p185 = scmp.eq.s32.totalorder %s39, 0
      %p186 = por %p184, %p185
      %p187 = scmp.ne.s32.totalorder %s173, %s174
      %p188 = scmp.eq.s32.totalorder %s40, 1
      %p189 = por %p187, %p188
      %p191 = scmp.ne.s32.totalorder %s174, %s190
      %p192 = scmp.eq.s32.totalorder %s40, 0
      %p193 = por %p191, %p192
      %s194 = ssub.s32 %s34, %s41
      %p195 = scmp.eq.s32.totalorder %s194, 0
      %s197 = sadd.s32 %s196, 1
      %s198 = scalar_select %p195, %s196, %s197
      %p201 = pneg %p195
      %p202 = scmp.eq.s32.totalorder %s34, 1
      %p203 = por %p201, %p202
      %p204 = scmp.ne.s32.totalorder %s196, %s199
      %p205 = scmp.eq.s32.totalorder %s34, 0
      %p206 = por %p204, %p205
      %p207 = scmp.ne.s32.totalorder %s196, %s199
      %p208 = scmp.eq.s32.totalorder %s39, 1
      %p209 = por %p207, %p208
      %p210 = scmp.ne.s32.totalorder %s199, %s200
      %p211 = scmp.eq.s32.totalorder %s39, 0
      %p212 = por %p210, %p211
      %p213 = scmp.ne.s32.totalorder %s199, %s200
      %p214 = scmp.eq.s32.totalorder %s40, 1
      %p215 = por %p213, %p214
      %p217 = scmp.ne.s32.totalorder %s200, %s216
      %p218 = scmp.eq.s32.totalorder %s40, 0
      %p219 = por %p217, %p218
      %s220 = ssub.s32 %s34, %s41
      %p221 = scmp.eq.s32.totalorder %s220, 0
      %s223 = sadd.s32 %s222, 1
      %s224 = scalar_select %p221, %s222, %s223
      %p227 = pneg %p221
      %p228 = scmp.eq.s32.totalorder %s34, 1
      %p229 = por %p227, %p228
      %p230 = scmp.ne.s32.totalorder %s222, %s225
      %p231 = scmp.eq.s32.totalorder %s34, 0
      %p232 = por %p230, %p231
      %p233 = scmp.ne.s32.totalorder %s222, %s225
      %p234 = scmp.eq.s32.totalorder %s39, 1
      %p235 = por %p233, %p234
      %p236 = scmp.ne.s32.totalorder %s225, %s226
      %p237 = scmp.eq.s32.totalorder %s39, 0
      %p238 = por %p236, %p237
      %p239 = scmp.ne.s32.totalorder %s225, %s226
      %p240 = scmp.eq.s32.totalorder %s40, 1
      %p241 = por %p239, %p240
      %p243 = scmp.ne.s32.totalorder %s226, %s242
      %p244 = scmp.eq.s32.totalorder %s40, 0
      %p245 = por %p243, %p244
      %s246 = ssub.s32 %s34, %s41
      %p247 = scmp.eq.s32.totalorder %s246, 0
      %s249 = sadd.s32 %s248, 1
      %s250 = scalar_select %p247, %s248, %s249
      %p253 = pneg %p247
      %p254 = scmp.eq.s32.totalorder %s34, 1
      %p255 = por %p253, %p254
      %p256 = scmp.ne.s32.totalorder %s248, %s251
      %p257 = scmp.eq.s32.totalorder %s34, 0
      %p258 = por %p256, %p257
      %p259 = scmp.ne.s32.totalorder %s248, %s251
      %p260 = scmp.eq.s32.totalorder %s39, 1
      %p261 = por %p259, %p260
      %p262 = scmp.ne.s32.totalorder %s251, %s252
      %p263 = scmp.eq.s32.totalorder %s39, 0
      %p264 = por %p262, %p263
      %p265 = scmp.ne.s32.totalorder %s251, %s252
      %p266 = scmp.eq.s32.totalorder %s40, 1
      %p267 = por %p265, %p266
      %p269 = scmp.ne.s32.totalorder %s252, %s268
      %p270 = scmp.eq.s32.totalorder %s40, 0
      %p271 = por %p269, %p270
      %s272 = ssub.s32 %s34, %s41
      %p273 = scmp.eq.s32.totalorder %s272, 0
      %s275 = sadd.s32 %s274, 1
      %s276 = scalar_select %p273, %s274, %s275
      %p279 = pneg %p273
      %p280 = scmp.eq.s32.totalorder %s34, 1
      %p281 = por %p279, %p280
      %p282 = scmp.ne.s32.totalorder %s274, %s277
      %p283 = scmp.eq.s32.totalorder %s34, 0
      %p284 = por %p282, %p283
      %p285 = scmp.ne.s32.totalorder %s274, %s277
      %p286 = scmp.eq.s32.totalorder %s39, 1
      %p287 = por %p285, %p286
      %p288 = scmp.ne.s32.totalorder %s277, %s278
      %p289 = scmp.eq.s32.totalorder %s39, 0
      %p290 = por %p288, %p289
      %p291 = scmp.ne.s32.totalorder %s277, %s278
      %p292 = scmp.eq.s32.totalorder %s40, 1
      %p293 = por %p291, %p292
      %p295 = scmp.ne.s32.totalorder %s278, %s294
      %p296 = scmp.eq.s32.totalorder %s40, 0
      %p297 = por %p295, %p296
      %s298 = ssub.s32 %s34, %s41
      %p299 = scmp.eq.s32.totalorder %s298, 0
      %s301 = sadd.s32 %s300, 1
      %s302 = scalar_select %p299, %s300, %s301
      %p305 = pneg %p299
      %p306 = scmp.eq.s32.totalorder %s34, 1
      %p307 = por %p305, %p306
      %p308 = scmp.ne.s32.totalorder %s300, %s303
      %p309 = scmp.eq.s32.totalorder %s34, 0
      %p310 = por %p308, %p309
      %p311 = scmp.ne.s32.totalorder %s300, %s303
      %p312 = scmp.eq.s32.totalorder %s39, 1
      %p313 = por %p311, %p312
      %p314 = scmp.ne.s32.totalorder %s303, %s304
      %p315 = scmp.eq.s32.totalorder %s39, 0
      %p316 = por %p314, %p315
      %p317 = scmp.ne.s32.totalorder %s303, %s304
      %p318 = scmp.eq.s32.totalorder %s40, 1
      %p319 = por %p317, %p318
      %p321 = scmp.ne.s32.totalorder %s304, %s320
      %p322 = scmp.eq.s32.totalorder %s40, 0
      %p323 = por %p321, %p322
      %s324 = ssub.s32 %s34, %s41
      %p325 = scmp.eq.s32.totalorder %s324, 0
      %s327 = sadd.s32 %s326, 1
      %s328 = scalar_select %p325, %s326, %s327
      %p331 = pneg %p325
      %p332 = scmp.eq.s32.totalorder %s34, 1
      %p333 = por %p331, %p332
      %p334 = scmp.ne.s32.totalorder %s326, %s329
      %p335 = scmp.eq.s32.totalorder %s34, 0
      %p336 = por %p334, %p335
      %p337 = scmp.ne.s32.totalorder %s326, %s329
      %p338 = scmp.eq.s32.totalorder %s39, 1
      %p339 = por %p337, %p338
      %p340 = scmp.ne.s32.totalorder %s329, %s330
      %p341 = scmp.eq.s32.totalorder %s39, 0
      %p342 = por %p340, %p341
      %p343 = scmp.ne.s32.totalorder %s329, %s330
      %p344 = scmp.eq.s32.totalorder %s40, 1
      %p345 = por %p343, %p344
      %p347 = scmp.ne.s32.totalorder %s330, %s346
      %p348 = scmp.eq.s32.totalorder %s40, 0
      %p349 = por %p347, %p348
      %s350 = ssub.s32 %s34, %s41
      %p351 = scmp.eq.s32.totalorder %s350, 0
      %s353 = sadd.s32 %s352, 1
      %s354 = scalar_select %p351, %s352, %s353
      %p357 = pneg %p351
      %p358 = scmp.eq.s32.totalorder %s34, 1
      %p359 = por %p357, %p358
      %p360 = scmp.ne.s32.totalorder %s352, %s355
      %p361 = scmp.eq.s32.totalorder %s34, 0
      %p362 = por %p360, %p361
      %p363 = scmp.ne.s32.totalorder %s352, %s355
      %p364 = scmp.eq.s32.totalorder %s39, 1
      %p365 = por %p363, %p364
      %p366 = scmp.ne.s32.totalorder %s355, %s356
      %p367 = scmp.eq.s32.totalorder %s39, 0
      %p368 = por %p366, %p367
      %p369 = scmp.ne.s32.totalorder %s355, %s356
      %p370 = scmp.eq.s32.totalorder %s40, 1
      %p371 = por %p369, %p370
      %p373 = scmp.ne.s32.totalorder %s356, %s372
      %p374 = scmp.eq.s32.totalorder %s40, 0
      %p375 = por %p373, %p374
      %s376 = ssub.s32 %s34, %s41
      %p377 = scmp.eq.s32.totalorder %s376, 0
      %s379 = sadd.s32 %s378, 1
      %s380 = scalar_select %p377, %s378, %s379
      %p383 = pneg %p377
      %p384 = scmp.eq.s32.totalorder %s34, 1
      %p385 = por %p383, %p384
      %p386 = scmp.ne.s32.totalorder %s378, %s381
      %p387 = scmp.eq.s32.totalorder %s34, 0
      %p388 = por %p386, %p387
      %p389 = scmp.ne.s32.totalorder %s378, %s381
      %p390 = scmp.eq.s32.totalorder %s39, 1
      %p391 = por %p389, %p390
      %p392 = scmp.ne.s32.totalorder %s381, %s382
      %p393 = scmp.eq.s32.totalorder %s39, 0
      %p394 = por %p392, %p393
      %p395 = scmp.ne.s32.totalorder %s381, %s382
      %p396 = scmp.eq.s32.totalorder %s40, 1
      %p397 = por %p395, %p396
      %p399 = scmp.ne.s32.totalorder %s382, %s398
      %p400 = scmp.eq.s32.totalorder %s40, 0
      %p401 = por %p399, %p400
      %s402 = ssub.s32 %s34, %s41
      %p403 = scmp.eq.s32.totalorder %s402, 0
      %s405 = sadd.s32 %s404, 1
      %s406 = scalar_select %p403, %s404, %s405
      %p409 = pneg %p403
      %p410 = scmp.eq.s32.totalorder %s34, 1
      %p411 = por %p409, %p410
      %p412 = scmp.ne.s32.totalorder %s404, %s407
      %p413 = scmp.eq.s32.totalorder %s34, 0
      %p414 = por %p412, %p413
      %p415 = scmp.ne.s32.totalorder %s404, %s407
      %p416 = scmp.eq.s32.totalorder %s39, 1
      %p417 = por %p415, %p416
      %p418 = scmp.ne.s32.totalorder %s407, %s408
      %p419 = scmp.eq.s32.totalorder %s39, 0
      %p420 = por %p418, %p419
      %p421 = scmp.ne.s32.totalorder %s407, %s408
      %p422 = scmp.eq.s32.totalorder %s40, 1
      %p423 = por %p421, %p422
      %p425 = scmp.ne.s32.totalorder %s408, %s424
      %p426 = scmp.eq.s32.totalorder %s40, 0
      %p427 = por %p425, %p426
      %s428 = ssub.s32 %s34, %s41
      %p429 = scmp.eq.s32.totalorder %s428, 0
      %s431 = sadd.s32 %s430, 1
      %s432 = scalar_select %p429, %s430, %s431
      %p435 = pneg %p429
      %p436 = scmp.eq.s32.totalorder %s34, 1
      %p437 = por %p435, %p436
      %p438 = scmp.ne.s32.totalorder %s430, %s433
      %p439 = scmp.eq.s32.totalorder %s34, 0
      %p440 = por %p438, %p439
      %p441 = scmp.ne.s32.totalorder %s430, %s433
      %p442 = scmp.eq.s32.totalorder %s39, 1
      %p443 = por %p441, %p442
      %p444 = scmp.ne.s32.totalorder %s433, %s434
      %p445 = scmp.eq.s32.totalorder %s39, 0
      %p446 = por %p444, %p445
      %p447 = scmp.ne.s32.totalorder %s433, %s434
      %p448 = scmp.eq.s32.totalorder %s40, 1
      %p449 = por %p447, %p448
      %p451 = scmp.ne.s32.totalorder %s434, %s450
      %p452 = scmp.eq.s32.totalorder %s40, 0
      %p453 = por %p451, %p452
      %s454 = ssub.s32 %s34, %s41
      %p455 = scmp.eq.s32.totalorder %s454, 0
      %s457 = sadd.s32 %s456, 1
      %s458 = scalar_select %p455, %s456, %s457
      %p461 = pneg %p455
      %p462 = scmp.eq.s32.totalorder %s34, 1
      %p463 = por %p461, %p462
      %p464 = scmp.ne.s32.totalorder %s456, %s459
      %p465 = scmp.eq.s32.totalorder %s34, 0
      %p466 = por %p464, %p465
      %p467 = scmp.ne.s32.totalorder %s456, %s459
      %p468 = scmp.eq.s32.totalorder %s39, 1
      %p469 = por %p467, %p468
      %p470 = scmp.ne.s32.totalorder %s459, %s460
      %p471 = scmp.eq.s32.totalorder %s39, 0
      %p472 = por %p470, %p471
      %p473 = scmp.ne.s32.totalorder %s459, %s460
      %p474 = scmp.eq.s32.totalorder %s40, 1
      %p475 = por %p473, %p474
      %p477 = scmp.ne.s32.totalorder %s460, %s476
      %p478 = scmp.eq.s32.totalorder %s40, 0
      %p479 = por %p477, %p478
      %s481 = sadd.s32 %s480, 1
      %p484 = scmp.eq.s32.totalorder %s34, 1
      %p485 = scmp.ne.s32.totalorder %s480, %s482
      %p486 = scmp.eq.s32.totalorder %s34, 0
      %p487 = por %p485, %p486
      %p488 = scmp.ne.s32.totalorder %s480, %s482
      %p489 = scmp.eq.s32.totalorder %s39, 1
      %p490 = por %p488, %p489
      %p491 = scmp.ne.s32.totalorder %s482, %s483
      %p492 = scmp.eq.s32.totalorder %s39, 0
      %p493 = por %p491, %p492
      %p494 = scmp.ne.s32.totalorder %s482, %s483
      %p495 = scmp.eq.s32.totalorder %s40, 1
      %p496 = por %p494, %p495
      %p498 = scmp.ne.s32.totalorder %s483, %s497
      %p499 = scmp.eq.s32.totalorder %s40, 0
      %p500 = por %p498, %p499
      %s502 = sadd.s32 %s501, 1
      %p505 = scmp.eq.s32.totalorder %s34, 1
      %p506 = scmp.ne.s32.totalorder %s501, %s503
      %p507 = scmp.eq.s32.totalorder %s34, 0
      %p508 = por %p506, %p507
      %p509 = scmp.ne.s32.totalorder %s501, %s503
      %p510 = scmp.eq.s32.totalorder %s39, 1
      %p511 = por %p509, %p510
      %p512 = scmp.ne.s32.totalorder %s503, %s504
      %p513 = scmp.eq.s32.totalorder %s39, 0
      %p514 = por %p512, %p513
      %p515 = scmp.ne.s32.totalorder %s503, %s504
      %p516 = scmp.eq.s32.totalorder %s40, 1
      %p517 = por %p515, %p516
      %p519 = scmp.ne.s32.totalorder %s504, %s518
      %p520 = scmp.eq.s32.totalorder %s40, 0
      %p521 = por %p519, %p520
      %p522 = scmp.le.s32.totalorder 1, %s34
      %p523 = scmp.lt.s32.totalorder %s34, 3
      %p524 = pnand %p522, %p523
      %p525 = pneg %p524
      // Predicated region
      $region9: #{clip_text_encoder_forward.1} parent=5 // pred_check
        _
      $region10: #{clip_text_encoder_forward.1} parent=5 // pred_check_branch
        %527 = sbr.rel (%p524) target = $region12
      $region11: #{clip_text_encoder_forward.1} parent=5 // pred_region
        %s528 = ssub.s32 %s34, 1
        // Predicated region
        $region13: #{clip_text_encoder_forward.1} parent=11 // pred_check
          %p529 = pneg %p55
        $region14: #{clip_text_encoder_forward.1} parent=11 // pred_check_branch
          %531 = sbr.rel (%p529) target = $region16
        $region15: #{clip_text_encoder_forward.1} parent=11 // pred_region
          _
        $region16: #{clip_text_encoder_forward.1} parent=11 // pred_fallthru
          _
        // Predicated region
        $region17: #{clip_text_encoder_forward.1} parent=11 // pred_check
          %p532 = pneg %p76
        $region18: #{clip_text_encoder_forward.1} parent=11 // pred_check_branch
          %534 = sbr.rel (%p532) target = $region20
        $region19: #{clip_text_encoder_forward.1} parent=11 // pred_region
          _
        $region20: #{clip_text_encoder_forward.1} parent=11 // pred_fallthru
          _
        // Predicated region
        $region21: #{clip_text_encoder_forward.1} parent=11 // pred_check
          %p535 = pneg %p97
        $region22: #{clip_text_encoder_forward.1} parent=11 // pred_check_branch
          %537 = sbr.rel (%p535) target = $region24
        $region23: #{clip_text_encoder_forward.1} parent=11 // pred_region
          _
        $region24: #{clip_text_encoder_forward.1} parent=11 // pred_fallthru
          _
        // Predicated region
        $region25: #{clip_text_encoder_forward.1} parent=11 // pred_check
          %p538 = pneg %p118
        $region26: #{clip_text_encoder_forward.1} parent=11 // pred_check_branch
          %540 = sbr.rel (%p538) target = $region28
        $region27: #{clip_text_encoder_forward.1} parent=11 // pred_region
          _
        $region28: #{clip_text_encoder_forward.1} parent=11 // pred_fallthru
          _
        // Predicated region
        $region29: #{clip_text_encoder_forward.1} parent=11 // pred_check
          %p541 = pneg %p139
        $region30: #{clip_text_encoder_forward.1} parent=11 // pred_check_branch
          %543 = sbr.rel (%p541) target = $region32
        $region31: #{clip_text_encoder_forward.1} parent=11 // pred_region
          _
        $region32: #{clip_text_encoder_forward.1} parent=11 // pred_fallthru
          _
        // Predicated region
        $region33: #{clip_text_encoder_forward.1} parent=11 // pred_check
          %p544 = pneg %p160
        $region34: #{clip_text_encoder_forward.1} parent=11 // pred_check_branch
          %546 = sbr.rel (%p544) target = $region36
        $region35: #{clip_text_encoder_forward.1} parent=11 // pred_region
          _
        $region36: #{clip_text_encoder_forward.1} parent=11 // pred_fallthru
          _
      $region12: #{clip_text_encoder_forward.1} parent=5 // pred_fallthru
        _
      %p547 = scmp.lt.s32.totalorder %s34, 2
      // Predicated region
      $region37: #{clip_text_encoder_forward.1} parent=5 // pred_check
        %p548 = pneg %p547
      $region38: #{clip_text_encoder_forward.1} parent=5 // pred_check_branch
        %550 = sbr.rel (%p548) target = $region40
      $region39: #{clip_text_encoder_forward.1} parent=5 // pred_region
        // Predicated region
        $region41: #{clip_text_encoder_forward.1} parent=39 // pred_check
          %p551 = pneg %p180
        $region42: #{clip_text_encoder_forward.1} parent=39 // pred_check_branch
          %553 = sbr.rel (%p551) target = $region44
        $region43: #{clip_text_encoder_forward.1} parent=39 // pred_region
          %p554 = scmp.lt.s32.totalorder %s34, 1
          %s555 = scalar_select %p554, %s34, 1
          %s556 = scalar_lea.vmem %s6, %s555
        $region44: #{clip_text_encoder_forward.1} parent=39 // pred_fallthru
          _
        // Predicated region
        $region45: #{clip_text_encoder_forward.1} parent=39 // pred_check
          %p557 = pneg %p206
        $region46: #{clip_text_encoder_forward.1} parent=39 // pred_check_branch
          %559 = sbr.rel (%p557) target = $region48
        $region47: #{clip_text_encoder_forward.1} parent=39 // pred_region
          %p560 = scmp.lt.s32.totalorder %s34, 1
          %s561 = scalar_select %p560, %s34, 1
          %s562 = scalar_lea.vmem %s7, %s561
        $region48: #{clip_text_encoder_forward.1} parent=39 // pred_fallthru
          _
        // Predicated region
        $region49: #{clip_text_encoder_forward.1} parent=39 // pred_check
          %p563 = pneg %p232
        $region50: #{clip_text_encoder_forward.1} parent=39 // pred_check_branch
          %565 = sbr.rel (%p563) target = $region52
        $region51: #{clip_text_encoder_forward.1} parent=39 // pred_region
          %s566 = sand.u32 %s222, 1
          %s567 = scalar_lea.sflag [#allocation4], %s566
          %s568 = sand.u32 %s222, 1
          %s569 = smul.addr %s568, 384
          %s570 = scalar_lea.vmem [#allocation3], %s569
          %s572 = ssub.s32 6144, 6144
          %573 = vsyncadd %s567, %s572
          %s574 = smul.addr %s34, 48
          %s575 = smul.addr %s574, 128
          %s576 = scalar_lea.hbm %s8, %s575
          %s577 = sshll.u32 %s570, 4
          %s578 = int_to_ptr.vmem [resolvable:$true] %s577
          %583 = dma.hbm_to_vmem [thread:$0]  %s576, 6144, %s578, %s567, 384, 384, 24
        $region52: #{clip_text_encoder_forward.1} parent=39 // pred_fallthru
          _
        // Predicated region
        $region53: #{clip_text_encoder_forward.1} parent=39 // pred_check
          %p584 = pneg %p258
        $region54: #{clip_text_encoder_forward.1} parent=39 // pred_check_branch
          %586 = sbr.rel (%p584) target = $region56
        $region55: #{clip_text_encoder_forward.1} parent=39 // pred_region
          %p587 = scmp.lt.s32.totalorder %s34, 1
          %s588 = scalar_select %p587, %s34, 1
          %s589 = smul.addr %s588, 3
          %s590 = scalar_lea.vmem %s9, %s589
        $region56: #{clip_text_encoder_forward.1} parent=39 // pred_fallthru
          _
        // Predicated region
        $region57: #{clip_text_encoder_forward.1} parent=39 // pred_check
          %p591 = pneg %p284
        $region58: #{clip_text_encoder_forward.1} parent=39 // pred_check_branch
          %593 = sbr.rel (%p591) target = $region60
        $region59: #{clip_text_encoder_forward.1} parent=39 // pred_region
          %p594 = scmp.lt.s32.totalorder %s34, 1
          %s595 = scalar_select %p594, %s34, 1
          %s596 = smul.addr %s595, 16
          %s597 = smul.addr %s596, 8
          %s598 = scalar_lea.vmem %s10, %s597
        $region60: #{clip_text_encoder_forward.1} parent=39 // pred_fallthru
          _
        // Predicated region
        $region61: #{clip_text_encoder_forward.1} parent=39 // pred_check
          %p599 = pneg %p310
        $region62: #{clip_text_encoder_forward.1} parent=39 // pred_check_branch
          %601 = sbr.rel (%p599) target = $region64
        $region63: #{clip_text_encoder_forward.1} parent=39 // pred_region
          %p602 = scmp.lt.s32.totalorder %s34, 1
          %s603 = scalar_select %p602, %s34, 1
          %s604 = scalar_lea.vmem %s11, %s603
        $region64: #{clip_text_encoder_forward.1} parent=39 // pred_fallthru
          _
        // Predicated region
        $region65: #{clip_text_encoder_forward.1} parent=39 // pred_check
          %p605 = pneg %p336
        $region66: #{clip_text_encoder_forward.1} parent=39 // pred_check_branch
          %607 = sbr.rel (%p605) target = $region68
        $region67: #{clip_text_encoder_forward.1} parent=39 // pred_region
          %p608 = scmp.lt.s32.totalorder %s34, 1
          %s609 = scalar_select %p608, %s34, 1
          %s610 = scalar_lea.vmem %s12, %s609
        $region68: #{clip_text_encoder_forward.1} parent=39 // pred_fallthru
          _
        // Predicated region
        $region69: #{clip_text_encoder_forward.1} parent=39 // pred_check
          %p611 = pneg %p362
        $region70: #{clip_text_encoder_forward.1} parent=39 // pred_check_branch
          %613 = sbr.rel (%p611) target = $region72
        $region71: #{clip_text_encoder_forward.1} parent=39 // pred_region
          %p614 = scmp.lt.s32.totalorder %s34, 1
          %s615 = scalar_select %p614, %s34, 1
          %s616 = scalar_lea.vmem %s13, %s615
        $region72: #{clip_text_encoder_forward.1} parent=39 // pred_fallthru
          _
        // Predicated region
        $region73: #{clip_text_encoder_forward.1} parent=39 // pred_check
          %p617 = pneg %p388
        $region74: #{clip_text_encoder_forward.1} parent=39 // pred_check_branch
          %619 = sbr.rel (%p617) target = $region76
        $region75: #{clip_text_encoder_forward.1} parent=39 // pred_region
          %s620 = sand.u32 %s34, 1
          %s621 = scalar_lea.sflag [#allocation7], %s620
          %s622 = sand.u32 %s378, 1
          %s623 = smul.addr %s622, 512
          %s624 = scalar_lea.vmem [#allocation6], %s623
          %s626 = ssub.s32 8192, 8192
          %627 = vsyncadd %s621, %s626
          %s628 = smul.addr %s34, 64
          %s629 = smul.addr %s628, 128
          %s630 = scalar_lea.hbm %s14, %s629
          %s631 = sshll.u32 %s624, 4
          %s632 = int_to_ptr.vmem [resolvable:$true] %s631
          %637 = dma.hbm_to_vmem [thread:$0]  %s630, 8192, %s632, %s621, 512, 512, 32
        $region76: #{clip_text_encoder_forward.1} parent=39 // pred_fallthru
          _
        // Predicated region
        $region77: #{clip_text_encoder_forward.1} parent=39 // pred_check
          %p638 = pneg %p414
        $region78: #{clip_text_encoder_forward.1} parent=39 // pred_check_branch
          %640 = sbr.rel (%p638) target = $region80
        $region79: #{clip_text_encoder_forward.1} parent=39 // pred_region
          %p641 = scmp.lt.s32.totalorder %s34, 1
          %s642 = scalar_select %p641, %s34, 1
          %s643 = smul.addr %s642, 4
          %s644 = scalar_lea.vmem %s15, %s643
        $region80: #{clip_text_encoder_forward.1} parent=39 // pred_fallthru
          _
        // Predicated region
        $region81: #{clip_text_encoder_forward.1} parent=39 // pred_check
          %p645 = pneg %p440
        $region82: #{clip_text_encoder_forward.1} parent=39 // pred_check_branch
          %647 = sbr.rel (%p645) target = $region84
        $region83: #{clip_text_encoder_forward.1} parent=39 // pred_region
          %s648 = sand.u32 %s34, 1
          %s649 = scalar_lea.sflag [#allocation7], %s648
          %s650 = sand.u32 %s430, 1
          %s651 = smul.addr %s650, 512
          %s652 = scalar_lea.vmem [#allocation8], %s651
          %s654 = ssub.s32 8192, 8192
          %655 = vsyncadd %s649, %s654
          %s656 = smul.addr %s34, 64
          %s657 = smul.addr %s656, 128
          %s658 = scalar_lea.hbm %s16, %s657
          %s659 = sshll.u32 %s652, 4
          %s660 = int_to_ptr.vmem [resolvable:$true] %s659
          %665 = dma.hbm_to_vmem [thread:$0]  %s658, 8192, %s660, %s649, 128, 128, 8
        $region84: #{clip_text_encoder_forward.1} parent=39 // pred_fallthru
          _
        // Predicated region
        $region85: #{clip_text_encoder_forward.1} parent=39 // pred_check
          %p666 = pneg %p466
        $region86: #{clip_text_encoder_forward.1} parent=39 // pred_check_branch
          %668 = sbr.rel (%p666) target = $region88
        $region87: #{clip_text_encoder_forward.1} parent=39 // pred_region
          %p669 = scmp.lt.s32.totalorder %s34, 1
          %s670 = scalar_select %p669, %s34, 1
          %s671 = scalar_lea.vmem %s17, %s670
        $region88: #{clip_text_encoder_forward.1} parent=39 // pred_fallthru
          _
      $region40: #{clip_text_encoder_forward.1} parent=5 // pred_fallthru
        _
      %p672 = scmp.le.s32.totalorder 1, %s34
      %p673 = scmp.lt.s32.totalorder %s34, 3
      %p674 = pnand %p672, %p673
      %p675 = pneg %p674
      // Predicated region
      $region89: #{clip_text_encoder_forward.1} parent=5 // pred_check
        _
      $region90: #{clip_text_encoder_forward.1} parent=5 // pred_check_branch
        %677 = sbr.rel (%p674) target = $region92
      $region91: #{clip_text_encoder_forward.1} parent=5 // pred_region
        %s678 = ssub.s32 %s34, 1
        %s679 = sand.u32 %s225, 1
        %s680 = scalar_lea.sflag [#allocation4], %s679
        %s681 = sand.u32 %s225, 1
        %s682 = smul.addr %s681, 384
        %s683 = scalar_lea.vmem [#allocation3], %s682
        // Predicated region
        $region93: #{clip_text_encoder_forward.1} parent=91 // pred_check
          %p684 = pneg %p238
        $region94: #{clip_text_encoder_forward.1} parent=91 // pred_check_branch
          %686 = sbr.rel (%p684) target = $region96
        $region95: #{clip_text_encoder_forward.1} parent=91 // pred_region
          %687 = dma.done %s680, 6144
        $region96: #{clip_text_encoder_forward.1} parent=91 // pred_fallthru
          _
        %s688 = sand.u32 %s39, 1
        %s689 = scalar_lea.sflag [#allocation7], %s688
        %s690 = sand.u32 %s381, 1
        %s691 = smul.addr %s690, 512
        %s692 = scalar_lea.vmem [#allocation6], %s691
        // Predicated region
        $region97: #{clip_text_encoder_forward.1} parent=91 // pred_check
          %p693 = pneg %p394
        $region98: #{clip_text_encoder_forward.1} parent=91 // pred_check_branch
          %695 = sbr.rel (%p693) target = $region100
        $region99: #{clip_text_encoder_forward.1} parent=91 // pred_region
          %696 = dma.done %s689, 8192
        $region100: #{clip_text_encoder_forward.1} parent=91 // pred_fallthru
          _
        %s697 = sand.u32 %s39, 1
        %s698 = scalar_lea.sflag [#allocation7], %s697
        %s699 = sand.u32 %s433, 1
        %s700 = smul.addr %s699, 512
        %s701 = scalar_lea.vmem [#allocation8], %s700
        // Predicated region
        $region101: #{clip_text_encoder_forward.1} parent=91 // pred_check
          %p702 = pneg %p446
        $region102: #{clip_text_encoder_forward.1} parent=91 // pred_check_branch
          %704 = sbr.rel (%p702) target = $region104
        $region103: #{clip_text_encoder_forward.1} parent=91 // pred_region
          %705 = dma.done %s698, 8192
        $region104: #{clip_text_encoder_forward.1} parent=91 // pred_fallthru
          _
        %p706 = pneg %p55
        %p707 = pneg %p52
        %p708 = pneg %p76
        %p709 = pneg %p73
        %p710 = pneg %p97
        %p711 = pneg %p94
        %p712 = pneg %p118
        %p713 = pneg %p115
        %p714 = pneg %p139
        %p715 = pneg %p136
        %p716 = pneg %p160
        %p717 = pneg %p157
        %p718 = scmp.lt.s32.totalorder %s39, 1
        %s719 = scalar_select %p718, %s39, 1
        %s720 = scalar_lea.vmem %s6, %s719
        %p721 = pneg %p186
        %p722 = pneg %p183
        %p723 = scmp.lt.s32.totalorder %s39, 1
        %s724 = scalar_select %p723, %s39, 1
        %s725 = scalar_lea.vmem %s7, %s724
        %p726 = pneg %p212
        %p727 = pneg %p209
        %s728 = sand.u32 %s225, 1
        %s729 = scalar_lea.sflag [#allocation4], %s728
        %s730 = sand.u32 %s225, 1
        %s731 = smul.addr %s730, 384
        %s732 = scalar_lea.vmem [#allocation3], %s731
        %p733 = pneg %p238
        %p734 = pneg %p235
        %p735 = scmp.lt.s32.totalorder %s39, 1
        %s736 = scalar_select %p735, %s39, 1
        %s737 = smul.addr %s736, 3
        %s738 = scalar_lea.vmem %s9, %s737
        %p739 = pneg %p264
        %p740 = pneg %p261
        %p741 = scmp.lt.s32.totalorder %s39, 1
        %s742 = scalar_select %p741, %s39, 1
        %s743 = smul.addr %s742, 16
        %s744 = smul.addr %s743, 8
        %s745 = scalar_lea.vmem %s10, %s744
        %p746 = pneg %p290
        %p747 = pneg %p287
        %p748 = scmp.lt.s32.totalorder %s39, 1
        %s749 = scalar_select %p748, %s39, 1
        %s750 = scalar_lea.vmem %s11, %s749
        %p751 = pneg %p316
        %p752 = pneg %p313
        %p753 = scmp.lt.s32.totalorder %s39, 1
        %s754 = scalar_select %p753, %s39, 1
        %s755 = scalar_lea.vmem %s12, %s754
        %p756 = pneg %p342
        %p757 = pneg %p339
        %p758 = scmp.lt.s32.totalorder %s39, 1
        %s759 = scalar_select %p758, %s39, 1
        %s760 = scalar_lea.vmem %s13, %s759
        %p761 = pneg %p368
        %p762 = pneg %p365
        %s763 = sand.u32 %s39, 1
        %s764 = scalar_lea.sflag [#allocation7], %s763
        %s765 = sand.u32 %s381, 1
        %s766 = smul.addr %s765, 512
        %s767 = scalar_lea.vmem [#allocation6], %s766
        %p768 = pneg %p394
        %p769 = pneg %p391
        %p770 = scmp.lt.s32.totalorder %s39, 1
        %s771 = scalar_select %p770, %s39, 1
        %s772 = smul.addr %s771, 4
        %s773 = scalar_lea.vmem %s15, %s772
        %p774 = pneg %p420
        %p775 = pneg %p417
        %s776 = sand.u32 %s39, 1
        %s777 = scalar_lea.sflag [#allocation7], %s776
        %s778 = sand.u32 %s433, 1
        %s779 = smul.addr %s778, 512
        %s780 = scalar_lea.vmem [#allocation8], %s779
        %p781 = pneg %p446
        %p782 = pneg %p443
        %p783 = scmp.lt.s32.totalorder %s39, 1
        %s784 = scalar_select %p783, %s39, 1
        %s785 = scalar_lea.vmem %s17, %s784
        %p786 = pneg %p472
        %p787 = pneg %p469
        %p788 = pneg %p493
        %p789 = pneg %p490
        %p790 = pneg %p514
        %p791 = pneg %p511
        %p792 = scmp.lt.s32.totalorder %s39, 1
        %s793 = scalar_select %p792, %s39, 1
        %s794 = scalar_lea.vmem %s6, %s793
        %p795 = scmp.lt.s32.totalorder %s39, 1
        %s796 = scalar_select %p795, %s39, 1
        %s797 = scalar_lea.vmem %s7, %s796
        %p798 = scmp.lt.s32.totalorder %s39, 1
        %s799 = scalar_select %p798, %s39, 1
        %s800 = smul.addr %s799, 3
        %s801 = scalar_lea.vmem %s9, %s800
        %p802 = scmp.lt.s32.totalorder %s39, 1
        %s803 = scalar_select %p802, %s39, 1
        %s804 = smul.addr %s803, 16
        %s805 = smul.addr %s804, 8
        %s806 = scalar_lea.vmem %s10, %s805
        %p807 = scmp.lt.s32.totalorder %s39, 1
        %s808 = scalar_select %p807, %s39, 1
        %s809 = scalar_lea.vmem %s11, %s808
        %p810 = scmp.lt.s32.totalorder %s39, 1
        %s811 = scalar_select %p810, %s39, 1
        %s812 = scalar_lea.vmem %s12, %s811
        %p813 = scmp.lt.s32.totalorder %s39, 1
        %s814 = scalar_select %p813, %s39, 1
        %s815 = scalar_lea.vmem %s13, %s814
        %p816 = scmp.lt.s32.totalorder %s39, 1
        %s817 = scalar_select %p816, %s39, 1
        %s818 = smul.addr %s817, 4
        %s819 = scalar_lea.vmem %s15, %s818
        %p820 = scmp.lt.s32.totalorder %s39, 1
        %s821 = scalar_select %p820, %s39, 1
        %s822 = scalar_lea.vmem %s17, %s821
        %p823 = scmp.eq.s32.totalorder %s39, 0
        // Predicated region
        $region105: #{clip_text_encoder_forward.1} parent=91 // pred_check
          %p824 = pneg %p823
        $region106: #{clip_text_encoder_forward.1} parent=91 // pred_check_branch
          %826 = sbr.rel (%p824) target = $region108
        $region107: #{clip_text_encoder_forward.1} parent=91 // pred_region
          %v827 = vld [vmem:[%s0] sm:$0xff]
          %v828 = vld [vmem:[%s0 + $0x8] sm:$0xff]
          %v829 = vld [vmem:[%s0 + $0x10] sm:$0xff]
          %v830 = vld [vmem:[%s0 + $0x18] sm:$0xff]
          %831 = vst [vmem:[#allocation2] sm:$0xff] %v827
          %832 = vst [vmem:[#allocation2 + $0x8] sm:$0xff] %v828
          %833 = vst [vmem:[#allocation2 + $0x10] sm:$0xff] %v829
          %834 = vst [vmem:[#allocation2 + $0x18] sm:$0xff] %v830
        $region108: #{clip_text_encoder_forward.1} parent=91 // pred_fallthru
          _
        %v835 = vld [vmem:[#allocation2] sm:$0xff]
        %v836 = vld [vmem:[#allocation2 + $0x8] sm:$0xff]
        %v837 = vld [vmem:[#allocation2 + $0x10] sm:$0xff]
        %v838 = vld [vmem:[#allocation2 + $0x18] sm:$0xff]
        %v839 = vld [vmem:[%s794] sm:$0x1]
        %v840 = vld [vmem:[%s797] sm:$0x1]
        %841 = vadd.xlane.f32.xlu0 %v835
        %v842 = vpop.xlane.xlu0 %841
        %843 = vadd.xlane.f32.xlu0 %v836
        %v844 = vpop.xlane.xlu0 %843
        %845 = vadd.xlane.f32.xlu0 %v837
        %v846 = vpop.xlane.xlu0 %845
        %847 = vadd.xlane.f32.xlu0 %v838
        %v848 = vpop.xlane.xlu0 %847
        %v849 = vrcp.pop 128.0
        %v850 = vmul.f32 %v842, %v849
        %v851 = vmul.f32 %v844, %v849
        %v852 = vmul.f32 %v846, %v849
        %v853 = vmul.f32 %v848, %v849
        %v854 = vsub.f32 %v835, %v850
        %v855 = vsub.f32 %v836, %v851
        %v856 = vsub.f32 %v837, %v852
        %v857 = vsub.f32 %v838, %v853
        %v858 = vmul.f32 %v854, %v854
        %v859 = vmul.f32 %v855, %v855
        %v860 = vmul.f32 %v856, %v856
        %v861 = vmul.f32 %v857, %v857
        %862 = vadd.xlane.f32.xlu0 %v858
        %v863 = vpop.xlane.xlu0 %862
        %864 = vadd.xlane.f32.xlu0 %v859
        %v865 = vpop.xlane.xlu0 %864
        %866 = vadd.xlane.f32.xlu0 %v860
        %v867 = vpop.xlane.xlu0 %866
        %868 = vadd.xlane.f32.xlu0 %v861
        %v869 = vpop.xlane.xlu0 %868
        %v870 = vmul.f32 %v863, %v849
        %v871 = vmul.f32 %v865, %v849
        %v872 = vmul.f32 %v867, %v849
        %v873 = vmul.f32 %v869, %v849
        %v874 = vadd.f32 %v870, 1e-05
        %v875 = vadd.f32 %v871, 1e-05
        %v876 = vadd.f32 %v872, 1e-05
        %v877 = vadd.f32 %v873, 1e-05
        %v878 = vrsqrt.pop %v874
        %v879 = vrsqrt.pop %v875
        %v880 = vrsqrt.pop %v876
        %v881 = vrsqrt.pop %v877
        %v882 = vmul.f32 %v854, %v878
        %v883 = vmul.f32 %v855, %v879
        %v884 = vmul.f32 %v856, %v880
        %v885 = vmul.f32 %v857, %v881
        %v887 = vlaneseq
        %v888 = vshrl.u32 %v887, 7
        %v889 = vsub.s32 0, %v888
        %v890 = vrot.slane %v839, %v889
        %v892 = vmul.f32 %v882, %v890
        %v893 = vmul.f32 %v883, %v890
        %v894 = vmul.f32 %v884, %v890
        %v895 = vmul.f32 %v885, %v890
        %v897 = vlaneseq
        %v898 = vshrl.u32 %v897, 7
        %v899 = vsub.s32 0, %v898
        %v900 = vrot.slane %v840, %v899
        %v902 = vadd.f32 %v892, %v900
        %v903 = vadd.f32 %v893, %v900
        %v904 = vadd.f32 %v894, %v900
        %v905 = vadd.f32 %v895, %v900
        %v906 = vld [vmem:[%s683] sm:$0xff]
        %v907 = vld [vmem:[%s683 + $0x8] sm:$0xff]
        %v908 = vld [vmem:[%s683 + $0x10] sm:$0xff]
        %v909 = vld [vmem:[%s683 + $0x18] sm:$0xff]
        %v910 = vld [vmem:[%s683 + $0x20] sm:$0xff]
        %v911 = vld [vmem:[%s683 + $0x28] sm:$0xff]
        %v912 = vld [vmem:[%s683 + $0x30] sm:$0xff]
        %v913 = vld [vmem:[%s683 + $0x38] sm:$0xff]
        %v914 = vld [vmem:[%s683 + $0x40] sm:$0xff]
        %v915 = vld [vmem:[%s683 + $0x48] sm:$0xff]
        %v916 = vld [vmem:[%s683 + $0x50] sm:$0xff]
        %v917 = vld [vmem:[%s683 + $0x58] sm:$0xff]
        %v918 = vld [vmem:[%s683 + $0x60] sm:$0xff]
        %v919 = vld [vmem:[%s683 + $0x68] sm:$0xff]
        %v920 = vld [vmem:[%s683 + $0x70] sm:$0xff]
        %v921 = vld [vmem:[%s683 + $0x78] sm:$0xff]
        %v922 = vld [vmem:[%s683 + $0x80] sm:$0xff]
        %v923 = vld [vmem:[%s683 + $0x88] sm:$0xff]
        %v924 = vld [vmem:[%s683 + $0x90] sm:$0xff]
        %v925 = vld [vmem:[%s683 + $0x98] sm:$0xff]
        %v926 = vld [vmem:[%s683 + $0xa0] sm:$0xff]
        %v927 = vld [vmem:[%s683 + $0xa8] sm:$0xff]
        %v928 = vld [vmem:[%s683 + $0xb0] sm:$0xff]
        %v929 = vld [vmem:[%s683 + $0xb8] sm:$0xff]
        %v930 = vld [vmem:[%s683 + $0xc0] sm:$0xff]
        %v931 = vld [vmem:[%s683 + $0xc8] sm:$0xff]
        %v932 = vld [vmem:[%s683 + $0xd0] sm:$0xff]
        %v933 = vld [vmem:[%s683 + $0xd8] sm:$0xff]
        %v934 = vld [vmem:[%s683 + $0xe0] sm:$0xff]
        %v935 = vld [vmem:[%s683 + $0xe8] sm:$0xff]
        %v936 = vld [vmem:[%s683 + $0xf0] sm:$0xff]
        %v937 = vld [vmem:[%s683 + $0xf8] sm:$0xff]
        %v938 = vld [vmem:[%s683 + $0x100] sm:$0xff]
        %v939 = vld [vmem:[%s683 + $0x108] sm:$0xff]
        %v940 = vld [vmem:[%s683 + $0x110] sm:$0xff]
        %v941 = vld [vmem:[%s683 + $0x118] sm:$0xff]
        %v942 = vld [vmem:[%s683 + $0x120] sm:$0xff]
        %v943 = vld [vmem:[%s683 + $0x128] sm:$0xff]
        %v944 = vld [vmem:[%s683 + $0x130] sm:$0xff]
        %v945 = vld [vmem:[%s683 + $0x138] sm:$0xff]
        %v946 = vld [vmem:[%s683 + $0x140] sm:$0xff]
        %v947 = vld [vmem:[%s683 + $0x148] sm:$0xff]
        %v948 = vld [vmem:[%s683 + $0x150] sm:$0xff]
        %v949 = vld [vmem:[%s683 + $0x158] sm:$0xff]
        %v950 = vld [vmem:[%s683 + $0x160] sm:$0xff]
        %v951 = vld [vmem:[%s683 + $0x168] sm:$0xff]
        %v952 = vld [vmem:[%s683 + $0x170] sm:$0xff]
        %v953 = vld [vmem:[%s683 + $0x178] sm:$0xff]
        %v954 = vld [vmem:[%s801] sm:$0x7]
        %v956 = vlaneseq
        %v957 = vshrl.u32 %v956, 7
        %v958 = vsub.s32 0, %v957
        %v959 = vrot.slane %v954, %v958
        %v960 = vlaneseq
        %v961 = vshrl.u32 %v960, 7
        %v962 = vsub.s32 1, %v961
        %v963 = vrot.slane %v954, %v962
        %v964 = vlaneseq
        %v965 = vshrl.u32 %v964, 7
        %v966 = vsub.s32 2, %v965
        %v967 = vrot.slane %v954, %v966
        %971 = vmatprep.subr.mxu0 %v907
        %972 = vmatpush1.msra.mxu0 %v906
        %973 = vmatprep.subr.mxu0 %v910
        %974 = vmatpush1.msra.mxu0 %v909
        %975 = vmatprep.subr.mxu0 %v913
        %976 = vmatpush1.msra.mxu0 %v912
        %977 = vmatprep.subr.mxu0 %v916
        %978 = vmatpush1.msra.mxu0 %v915
        %979 = vmatprep.subr.mxu0 %v919
        %980 = vmatpush1.msra.mxu0 %v918
        %981 = vmatprep.subr.mxu0 %v922
        %982 = vmatpush1.msra.mxu0 %v921
        %983 = vmatprep.subr.mxu0 %v925
        %984 = vmatpush1.msra.mxu0 %v924
        %985 = vmatprep.subr.mxu0 %v928
        %986 = vmatpush1.msra.mxu0 %v927
        %987 = vmatprep.subr.mxu0 %v931
        %988 = vmatpush1.msra.mxu0 %v930
        %989 = vmatprep.subr.mxu0 %v934
        %990 = vmatpush1.msra.mxu0 %v933
        %991 = vmatprep.subr.mxu0 %v937
        %992 = vmatpush1.msra.mxu0 %v936
        %993 = vmatprep.subr.mxu0 %v940
        %994 = vmatpush1.msra.mxu0 %v939
        %995 = vmatprep.subr.mxu0 %v943
        %996 = vmatpush1.msra.mxu0 %v942
        %997 = vmatprep.subr.mxu0 %v946
        %998 = vmatpush1.msra.mxu0 %v945
        %999 = vmatprep.subr.mxu0 %v949
        %1000 = vmatpush1.msra.mxu0 %v948
        %1001 = vmatprep.subr.mxu0 %v952
        %1002 = vmatpush1.msra.mxu0 %v951
        %1003 = vmatprep.subr.mxu0 0.0
        %1004 = vmatpush1.msra.mxu0 0.0
        %1005 = vmatprep.subr.mxu0 0.0
        %1006 = vmatpush1.msra.mxu0 0.0
        %1007 = vmatprep.subr.mxu0 0.0
        %1008 = vmatpush1.msra.mxu0 0.0
        %1009 = vmatprep.subr.mxu0 0.0
        %1010 = vmatpush1.msra.mxu0 0.0
        %1011 = vmatprep.subr.mxu0 0.0
        %1012 = vmatpush1.msra.mxu0 0.0
        %1013 = vmatprep.subr.mxu0 0.0
        %1014 = vmatpush1.msra.mxu0 0.0
        %1015 = vmatprep.subr.mxu0 0.0
        %1016 = vmatpush1.msra.mxu0 0.0
        %1017 = vmatprep.subr.mxu0 0.0
        %1018 = vmatpush1.msra.mxu0 0.0
        %1019 = vmatprep.subr.mxu0 0.0
        %1020 = vmatpush1.msra.mxu0 0.0
        %1021 = vmatprep.subr.mxu0 0.0
        %1022 = vmatpush1.msra.mxu0 0.0
        %1023 = vmatprep.subr.mxu0 0.0
        %1024 = vmatpush1.msra.mxu0 0.0
        %1025 = vmatprep.subr.mxu0 0.0
        %1026 = vmatpush1.msra.mxu0 0.0
        %1027 = vmatprep.subr.mxu0 0.0
        %1028 = vmatpush1.msra.mxu0 0.0
        %1029 = vmatprep.subr.mxu0 0.0
        %1030 = vmatpush1.msra.mxu0 0.0
        %1031 = vmatprep.subr.mxu0 0.0
        %1032 = vmatpush1.msra.mxu0 0.0
        %1033 = vmatprep.subr.mxu0 0.0
        %1034 = vmatpush1.msra.mxu0 0.0
        %1035 = vmatprep.mubr.f32.mxu0 0.0
        %1036 = vmatmul.mubr.f32.gmra.mrb[0].mxu0 %v902
        %v1037 = vpop.f32.mrb[0].mxu0
        %v1038 = vadd.f32 %v959, %v1037
        %v1039 = vpop.f32.mrb[0].mxu0
        %v1040 = vadd.f32 %v963, %v1039
        %1041 = vmatprep.mubr.f32.mxu0 0.0
        %1042 = vmatmul.mubr.f32.gmra.mrb[0].mxu0 %v903
        %v1043 = vpop.f32.mrb[0].mxu0
        %v1044 = vadd.f32 %v959, %v1043
        %v1045 = vpop.f32.mrb[0].mxu0
        %v1046 = vadd.f32 %v963, %v1045
        %1047 = vmatprep.mubr.f32.mxu0 0.0
        %1048 = vmatmul.mubr.f32.gmra.mrb[0].mxu0 %v904
        %v1049 = vpop.f32.mrb[0].mxu0
        %v1050 = vadd.f32 %v959, %v1049
        %v1051 = vpop.f32.mrb[0].mxu0
        %v1052 = vadd.f32 %v963, %v1051
        %1053 = vmatprep.mubr.f32.mxu0 0.0
        %1054 = vmatmul.mubr.f32.gmra.mrb[0].mxu0 %v905
        %v1055 = vpop.f32.mrb[0].mxu0
        %v1056 = vadd.f32 %v959, %v1055
        %v1057 = vpop.f32.mrb[0].mxu0
        %v1058 = vadd.f32 %v963, %v1057
        %1059 = vdwg.mxu0
        %1060 = vmatprep.subr.mxu0 0.0
        %1061 = vmatpush1.msra.mxu0 %v908
        %1062 = vmatprep.subr.mxu0 0.0
        %1063 = vmatpush1.msra.mxu0 %v911
        %1064 = vmatprep.subr.mxu0 0.0
        %1065 = vmatpush1.msra.mxu0 %v914
        %1066 = vmatprep.subr.mxu0 0.0
        %1067 = vmatpush1.msra.mxu0 %v917
        %1068 = vmatprep.subr.mxu0 0.0
        %1069 = vmatpush1.msra.mxu0 %v920
        %1070 = vmatprep.subr.mxu0 0.0
        %1071 = vmatpush1.msra.mxu0 %v923
        %1072 = vmatprep.subr.mxu0 0.0
        %1073 = vmatpush1.msra.mxu0 %v926
        %1074 = vmatprep.subr.mxu0 0.0
        %1075 = vmatpush1.msra.mxu0 %v929
        %1076 = vmatprep.subr.mxu0 0.0
        %1077 = vmatpush1.msra.mxu0 %v932
        %1078 = vmatprep.subr.mxu0 0.0
        %1079 = vmatpush1.msra.mxu0 %v935
        %1080 = vmatprep.subr.mxu0 0.0
        %1081 = vmatpush1.msra.mxu0 %v938
        %1082 = vmatprep.subr.mxu0 0.0
        %1083 = vmatpush1.msra.mxu0 %v941
        %1084 = vmatprep.subr.mxu0 0.0
        %1085 = vmatpush1.msra.mxu0 %v944
        %1086 = vmatprep.subr.mxu0 0.0
        %1087 = vmatpush1.msra.mxu0 %v947
        %1088 = vmatprep.subr.mxu0 0.0
        %1089 = vmatpush1.msra.mxu0 %v950
        %1090 = vmatprep.subr.mxu0 0.0
        %1091 = vmatpush1.msra.mxu0 %v953
        %1092 = vmatprep.subr.mxu0 0.0
        %1093 = vmatpush1.msra.mxu0 0.0
        %1094 = vmatprep.subr.mxu0 0.0
        %1095 = vmatpush1.msra.mxu0 0.0
        %1096 = vmatprep.subr.mxu0 0.0
        %1097 = vmatpush1.msra.mxu0 0.0
        %1098 = vmatprep.subr.mxu0 0.0
        %1099 = vmatpush1.msra.mxu0 0.0
        %1100 = vmatprep.subr.mxu0 0.0
        %1101 = vmatpush1.msra.mxu0 0.0
        %1102 = vmatprep.subr.mxu0 0.0
        %1103 = vmatpush1.msra.mxu0 0.0
        %1104 = vmatprep.subr.mxu0 0.0
        %1105 = vmatpush1.msra.mxu0 0.0
        %1106 = vmatprep.subr.mxu0 0.0
        %1107 = vmatpush1.msra.mxu0 0.0
        %1108 = vmatprep.subr.mxu0 0.0
        %1109 = vmatpush1.msra.mxu0 0.0
        %1110 = vmatprep.subr.mxu0 0.0
        %1111 = vmatpush1.msra.mxu0 0.0
        %1112 = vmatprep.subr.mxu0 0.0
        %1113 = vmatpush1.msra.mxu0 0.0
        %1114 = vmatprep.subr.mxu0 0.0
        %1115 = vmatpush1.msra.mxu0 0.0
        %1116 = vmatprep.subr.mxu0 0.0
        %1117 = vmatpush1.msra.mxu0 0.0
        %1118 = vmatprep.subr.mxu0 0.0
        %1119 = vmatpush1.msra.mxu0 0.0
        %1120 = vmatprep.subr.mxu0 0.0
        %1121 = vmatpush1.msra.mxu0 0.0
        %1122 = vmatprep.subr.mxu0 0.0
        %1123 = vmatpush1.msra.mxu0 0.0
        %1124 = vmatprep.mubr.f32.mxu0 0.0
        %1125 = vmatmul.mubr.f32.gmra.mrb[0].mxu0 %v902
        %v1126 = vpop.f32.mrb[0].mxu0
        %v1127 = vadd.f32 %v967, %v1126
        %v1128 = vpop.f32.mrb[0].mxu0
        %1129 = vmatprep.mubr.f32.mxu0 0.0
        %1130 = vmatmul.mubr.f32.gmra.mrb[0].mxu0 %v903
        %v1131 = vpop.f32.mrb[0].mxu0
        %v1132 = vadd.f32 %v967, %v1131
        %v1133 = vpop.f32.mrb[0].mxu0
        %1134 = vmatprep.mubr.f32.mxu0 0.0
        %1135 = vmatmul.mubr.f32.gmra.mrb[0].mxu0 %v904
        %v1136 = vpop.f32.mrb[0].mxu0
        %v1137 = vadd.f32 %v967, %v1136
        %v1138 = vpop.f32.mrb[0].mxu0
        %1139 = vmatprep.mubr.f32.mxu0 0.0
        %1140 = vmatmul.mubr.f32.gmra.mrb[0].mxu0 %v905
        %v1141 = vpop.f32.mrb[0].mxu0
        %v1142 = vadd.f32 %v967, %v1141
        %v1143 = vpop.f32.mrb[0].mxu0
        %1144 = vdwg.mxu0
        %v1145 = vmul.f32 %v1038, 0.17677669
        %v1146 = vmul.f32 %v1044, 0.17677669
        %v1147 = vmul.f32 %v1050, 0.17677669
        %v1148 = vmul.f32 %v1056, 0.17677669
        %v1149 = vld [vmem:[%s1] sm:$0xff]
        %v1150 = vld [vmem:[%s1 + $0x8] sm:$0xff]
        %v1151 = vld [vmem:[%s806] sm:$0xff]
        %v1152 = vld [vmem:[%s806 + $0x8] sm:$0xff]
        %v1153 = vld [vmem:[%s806 + $0x10] sm:$0xff]
        %v1154 = vld [vmem:[%s806 + $0x18] sm:$0xff]
        %v1155 = vld [vmem:[%s806 + $0x20] sm:$0xff]
        %v1156 = vld [vmem:[%s806 + $0x28] sm:$0xff]
        %v1157 = vld [vmem:[%s806 + $0x30] sm:$0xff]
        %v1158 = vld [vmem:[%s806 + $0x38] sm:$0xff]
        %v1159 = vld [vmem:[%s806 + $0x40] sm:$0xff]
        %v1160 = vld [vmem:[%s806 + $0x48] sm:$0xff]
        %v1161 = vld [vmem:[%s806 + $0x50] sm:$0xff]
        %v1162 = vld [vmem:[%s806 + $0x58] sm:$0xff]
        %v1163 = vld [vmem:[%s806 + $0x60] sm:$0xff]
        %v1164 = vld [vmem:[%s806 + $0x68] sm:$0xff]
        %v1165 = vld [vmem:[%s806 + $0x70] sm:$0xff]
        %v1166 = vld [vmem:[%s806 + $0x78] sm:$0xff]
        %vm1167 = vcmask 261120
        %v1169 = vsel %vm1167, %v1145, 0
        %v1172 = vsel %vm1167, %v1146, 0
        %v1175 = vsel %vm1167, %v1040, 0
        %v1178 = vsel %vm1167, %v1046, 0
        %1180 = vmatprep.subr.mxu0 0.0
        %1181 = vmatpush1.xpose.msra.mxu0 %v1175
        %1182 = vmatprep.subr.mxu0 0.0
        %1183 = vmatpush1.xpose.msra.mxu0 %v1178
        %1184 = vmatprep.subr.mxu0 0.0
        %1185 = vmatpush1.xpose.msra.mxu0 0.0
        %1186 = vmatprep.subr.mxu0 0.0
        %1187 = vmatpush1.xpose.msra.mxu0 0.0
        %1188 = vmatprep.subr.mxu0 0.0
        %1189 = vmatpush1.xpose.msra.mxu0 0.0
        %1190 = vmatprep.subr.mxu0 0.0
        %1191 = vmatpush1.xpose.msra.mxu0 0.0
        %1192 = vmatprep.subr.mxu0 0.0
        %1193 = vmatpush1.xpose.msra.mxu0 0.0
        %1194 = vmatprep.subr.mxu0 0.0
        %1195 = vmatpush1.xpose.msra.mxu0 0.0
        %1196 = vmatprep.subr.mxu0 0.0
        %1197 = vmatpush1.xpose.msra.mxu0 0.0
        %1198 = vmatprep.subr.mxu0 0.0
        %1199 = vmatpush1.xpose.msra.mxu0 0.0
        %1200 = vmatprep.subr.mxu0 0.0
        %1201 = vmatpush1.xpose.msra.mxu0 0.0
        %1202 = vmatprep.subr.mxu0 0.0
        %1203 = vmatpush1.xpose.msra.mxu0 0.0
        %1204 = vmatprep.subr.mxu0 0.0
        %1205 = vmatpush1.xpose.msra.mxu0 0.0
        %1206 = vmatprep.subr.mxu0 0.0
        %1207 = vmatpush1.xpose.msra.mxu0 0.0
        %1208 = vmatprep.subr.mxu0 0.0
        %1209 = vmatpush1.xpose.msra.mxu0 0.0
        %1210 = vmatprep.subr.mxu0 0.0
        %1211 = vmatpush1.xpose.msra.mxu0 0.0
        %1212 = vmatprep.subr.mxu0 0.0
        %1213 = vmatpush1.xpose.msra.mxu0 0.0
        %1214 = vmatprep.subr.mxu0 0.0
        %1215 = vmatpush1.xpose.msra.mxu0 0.0
        %1216 = vmatprep.subr.mxu0 0.0
        %1217 = vmatpush1.xpose.msra.mxu0 0.0
        %1218 = vmatprep.subr.mxu0 0.0
        %1219 = vmatpush1.xpose.msra.mxu0 0.0
        %1220 = vmatprep.subr.mxu0 0.0
        %1221 = vmatpush1.xpose.msra.mxu0 0.0
        %1222 = vmatprep.subr.mxu0 0.0
        %1223 = vmatpush1.xpose.msra.mxu0 0.0
        %1224 = vmatprep.subr.mxu0 0.0
        %1225 = vmatpush1.xpose.msra.mxu0 0.0
        %1226 = vmatprep.subr.mxu0 0.0
        %1227 = vmatpush1.xpose.msra.mxu0 0.0
        %1228 = vmatprep.subr.mxu0 0.0
        %1229 = vmatpush1.xpose.msra.mxu0 0.0
        %1230 = vmatprep.subr.mxu0 0.0
        %1231 = vmatpush1.xpose.msra.mxu0 0.0
        %1232 = vmatprep.subr.mxu0 0.0
        %1233 = vmatpush1.xpose.msra.mxu0 0.0
        %1234 = vmatprep.subr.mxu0 0.0
        %1235 = vmatpush1.xpose.msra.mxu0 0.0
        %1236 = vmatprep.subr.mxu0 0.0
        %1237 = vmatpush1.xpose.msra.mxu0 0.0
        %1238 = vmatprep.subr.mxu0 0.0
        %1239 = vmatpush1.xpose.msra.mxu0 0.0
        %1240 = vmatprep.subr.mxu0 0.0
        %1241 = vmatpush1.xpose.msra.mxu0 0.0
        %1242 = vmatprep.subr.mxu0 0.0
        %1243 = vmatpush1.xpose.msra.mxu0 0.0
        %1244 = vmatprep.mubr.f32.mxu0 0.0
        %1245 = vmatmul.mubr.f32.gmra.mrb[0].mxu0 %v1169
        %v1246 = vpop.f32.mrb[0].mxu0
        %v1247 = vadd.f32 %v1149, %v1246
        %v1248 = vpop.f32.mrb[0].mxu0
        %1249 = vmatprep.mubr.f32.mxu0 0.0
        %1250 = vmatmul.mubr.f32.gmra.mrb[0].mxu0 %v1172
        %v1251 = vpop.f32.mrb[0].mxu0
        %v1252 = vadd.f32 %v1150, %v1251
        %v1253 = vpop.f32.mrb[0].mxu0
        %1254 = vdwg.mxu0
        %v1256 = vsel %vm1167, %v1147, 0
        %v1259 = vsel %vm1167, %v1148, 0
        %v1262 = vsel %vm1167, %v1052, 0
        %v1265 = vsel %vm1167, %v1058, 0
        %1267 = vmatprep.subr.mxu0 0.0
        %1268 = vmatpush1.xpose.msra.mxu0 %v1262
        %1269 = vmatprep.subr.mxu0 0.0
        %1270 = vmatpush1.xpose.msra.mxu0 %v1265
        %1271 = vmatprep.subr.mxu0 0.0
        %1272 = vmatpush1.xpose.msra.mxu0 0.0
        %1273 = vmatprep.subr.mxu0 0.0
        %1274 = vmatpush1.xpose.msra.mxu0 0.0
        %1275 = vmatprep.subr.mxu0 0.0
        %1276 = vmatpush1.xpose.msra.mxu0 0.0
        %1277 = vmatprep.subr.mxu0 0.0
        %1278 = vmatpush1.xpose.msra.mxu0 0.0
        %1279 = vmatprep.subr.mxu0 0.0
        %1280 = vmatpush1.xpose.msra.mxu0 0.0
        %1281 = vmatprep.subr.mxu0 0.0
        %1282 = vmatpush1.xpose.msra.mxu0 0.0
        %1283 = vmatprep.subr.mxu0 0.0
        %1284 = vmatpush1.xpose.msra.mxu0 0.0
        %1285 = vmatprep.subr.mxu0 0.0
        %1286 = vmatpush1.xpose.msra.mxu0 0.0
        %1287 = vmatprep.subr.mxu0 0.0
        %1288 = vmatpush1.xpose.msra.mxu0 0.0
        %1289 = vmatprep.subr.mxu0 0.0
        %1290 = vmatpush1.xpose.msra.mxu0 0.0
        %1291 = vmatprep.subr.mxu0 0.0
        %1292 = vmatpush1.xpose.msra.mxu0 0.0
        %1293 = vmatprep.subr.mxu0 0.0
        %1294 = vmatpush1.xpose.msra.mxu0 0.0
        %1295 = vmatprep.subr.mxu0 0.0
        %1296 = vmatpush1.xpose.msra.mxu0 0.0
        %1297 = vmatprep.subr.mxu0 0.0
        %1298 = vmatpush1.xpose.msra.mxu0 0.0
        %1299 = vmatprep.subr.mxu0 0.0
        %1300 = vmatpush1.xpose.msra.mxu0 0.0
        %1301 = vmatprep.subr.mxu0 0.0
        %1302 = vmatpush1.xpose.msra.mxu0 0.0
        %1303 = vmatprep.subr.mxu0 0.0
        %1304 = vmatpush1.xpose.msra.mxu0 0.0
        %1305 = vmatprep.subr.mxu0 0.0
        %1306 = vmatpush1.xpose.msra.mxu0 0.0
        %1307 = vmatprep.subr.mxu0 0.0
        %1308 = vmatpush1.xpose.msra.mxu0 0.0
        %1309 = vmatprep.subr.mxu0 0.0
        %1310 = vmatpush1.xpose.msra.mxu0 0.0
        %1311 = vmatprep.subr.mxu0 0.0
        %1312 = vmatpush1.xpose.msra.mxu0 0.0
        %1313 = vmatprep.subr.mxu0 0.0
        %1314 = vmatpush1.xpose.msra.mxu0 0.0
        %1315 = vmatprep.subr.mxu0 0.0
        %1316 = vmatpush1.xpose.msra.mxu0 0.0
        %1317 = vmatprep.subr.mxu0 0.0
        %1318 = vmatpush1.xpose.msra.mxu0 0.0
        %1319 = vmatprep.subr.mxu0 0.0
        %1320 = vmatpush1.xpose.msra.mxu0 0.0
        %1321 = vmatprep.subr.mxu0 0.0
        %1322 = vmatpush1.xpose.msra.mxu0 0.0
        %1323 = vmatprep.subr.mxu0 0.0
        %1324 = vmatpush1.xpose.msra.mxu0 0.0
        %1325 = vmatprep.subr.mxu0 0.0
        %1326 = vmatpush1.xpose.msra.mxu0 0.0
        %1327 = vmatprep.subr.mxu0 0.0
        %1328 = vmatpush1.xpose.msra.mxu0 0.0
        %1329 = vmatprep.subr.mxu0 0.0
        %1330 = vmatpush1.xpose.msra.mxu0 0.0
        %1331 = vmatprep.mubr.f32.mxu0 0.0
        %1332 = vmatmul.mubr.f32.gmra.mrb[0].mxu0 %v1256
        %v1333 = vpop.f32.mrb[0].mxu0
        %v1334 = vadd.f32 %v1149, %v1333
        %v1335 = vpop.f32.mrb[0].mxu0
        %1336 = vmatprep.mubr.f32.mxu0 0.0
        %1337 = vmatmul.mubr.f32.gmra.mrb[0].mxu0 %v1259
        %v1338 = vpop.f32.mrb[0].mxu0
        %v1339 = vadd.f32 %v1150, %v1338
        %v1340 = vpop.f32.mrb[0].mxu0
        %1341 = vdwg.mxu0
        %vm1342 = vcmask 130048
        %v1343 = vsel %vm1342, %v1247, -inf
        %1344 = vmax.xlane.f32.xlu0 %v1343
        %v1345 = vpop.xlane.xlu0 %1344
        %v1346 = vsel %vm1342, %v1252, -inf
        %1347 = vmax.xlane.f32.xlu0 %v1346
        %v1348 = vpop.xlane.xlu0 %1347
        %v1349 = vsel %vm1342, %v1334, -inf
        %1350 = vmax.xlane.f32.xlu0 %v1349
        %v1351 = vpop.xlane.xlu0 %1350
        %v1352 = vsel %vm1342, %v1339, -inf
        %1353 = vmax.xlane.f32.xlu0 %v1352
        %v1354 = vpop.xlane.xlu0 %1353
        %v1355 = vsub.f32 %v1247, %v1345
        %v1356 = vsub.f32 %v1252, %v1348
        %v1357 = vsub.f32 %v1334, %v1351
        %v1358 = vsub.f32 %v1339, %v1354
        %v1359 = vmul.f32 %v1355, 1.442695
        %v1360 = vpow.pop %v1359
        %v1361 = vmul.f32 %v1356, 1.442695
        %v1362 = vpow.pop %v1361
        %v1363 = vmul.f32 %v1357, 1.442695
        %v1364 = vpow.pop %v1363
        %v1365 = vmul.f32 %v1358, 1.442695
        %v1366 = vpow.pop %v1365
        %v1367 = vsel %vm1342, %v1360, 0.0
        %1368 = vadd.xlane.f32.xlu0 %v1367
        %v1369 = vpop.xlane.xlu0 %1368
        %v1370 = vsel %vm1342, %v1362, 0.0
        %1371 = vadd.xlane.f32.xlu0 %v1370
        %v1372 = vpop.xlane.xlu0 %1371
        %v1373 = vsel %vm1342, %v1364, 0.0
        %1374 = vadd.xlane.f32.xlu0 %v1373
        %v1375 = vpop.xlane.xlu0 %1374
        %v1376 = vsel %vm1342, %v1366, 0.0
        %1377 = vadd.xlane.f32.xlu0 %v1376
        %v1378 = vpop.xlane.xlu0 %1377
        %v1379 = vrcp.pop %v1369
        %v1380 = vrcp.pop %v1372
        %v1381 = vrcp.pop %v1375
        %v1382 = vrcp.pop %v1378
        %v1383 = vmul.f32 %v1360, %v1379
        %v1384 = vmul.f32 %v1362, %v1380
        %v1385 = vmul.f32 %v1364, %v1381
        %v1386 = vmul.f32 %v1366, %v1382
        %v1388 = vsel %vm1342, %v1383, 0
        %v1391 = vsel %vm1342, %v1384, 0
        %1393 = vmatprep.subr.mxu0 0.0
        %1394 = vmatpush1.msra.mxu0 %v1127
        %1395 = vmatprep.subr.mxu0 0.0
        %1396 = vmatpush1.msra.mxu0 %v1132
        %1397 = vmatprep.subr.mxu0 0.0
        %1398 = vmatpush1.msra.mxu0 0.0
        %1399 = vmatprep.subr.mxu0 0.0
        %1400 = vmatpush1.msra.mxu0 0.0
        %1401 = vmatprep.subr.mxu0 0.0
        %1402 = vmatpush1.msra.mxu0 0.0
        %1403 = vmatprep.subr.mxu0 0.0
        %1404 = vmatpush1.msra.mxu0 0.0
        %1405 = vmatprep.subr.mxu0 0.0
        %1406 = vmatpush1.msra.mxu0 0.0
        %1407 = vmatprep.subr.mxu0 0.0
        %1408 = vmatpush1.msra.mxu0 0.0
        %1409 = vmatprep.subr.mxu0 0.0
        %1410 = vmatpush1.msra.mxu0 0.0
        %1411 = vmatprep.subr.mxu0 0.0
        %1412 = vmatpush1.msra.mxu0 0.0
        %1413 = vmatprep.subr.mxu0 0.0
        %1414 = vmatpush1.msra.mxu0 0.0
        %1415 = vmatprep.subr.mxu0 0.0
        %1416 = vmatpush1.msra.mxu0 0.0
        %1417 = vmatprep.subr.mxu0 0.0
        %1418 = vmatpush1.msra.mxu0 0.0
        %1419 = vmatprep.subr.mxu0 0.0
        %1420 = vmatpush1.msra.mxu0 0.0
        %1421 = vmatprep.subr.mxu0 0.0
        %1422 = vmatpush1.msra.mxu0 0.0
        %1423 = vmatprep.subr.mxu0 0.0
        %1424 = vmatpush1.msra.mxu0 0.0
        %1425 = vmatprep.subr.mxu0 0.0
        %1426 = vmatpush1.msra.mxu0 0.0
        %1427 = vmatprep.subr.mxu0 0.0
        %1428 = vmatpush1.msra.mxu0 0.0
        %1429 = vmatprep.subr.mxu0 0.0
        %1430 = vmatpush1.msra.mxu0 0.0
        %1431 = vmatprep.subr.mxu0 0.0
        %1432 = vmatpush1.msra.mxu0 0.0
        %1433 = vmatprep.subr.mxu0 0.0
        %1434 = vmatpush1.msra.mxu0 0.0
        %1435 = vmatprep.subr.mxu0 0.0
        %1436 = vmatpush1.msra.mxu0 0.0
        %1437 = vmatprep.subr.mxu0 0.0
        %1438 = vmatpush1.msra.mxu0 0.0
        %1439 = vmatprep.subr.mxu0 0.0
        %1440 = vmatpush1.msra.mxu0 0.0
        %1441 = vmatprep.subr.mxu0 0.0
        %1442 = vmatpush1.msra.mxu0 0.0
        %1443 = vmatprep.subr.mxu0 0.0
        %1444 = vmatpush1.msra.mxu0 0.0
        %1445 = vmatprep.subr.mxu0 0.0
        %1446 = vmatpush1.msra.mxu0 0.0
        %1447 = vmatprep.subr.mxu0 0.0
        %1448 = vmatpush1.msra.mxu0 0.0
        %1449 = vmatprep.subr.mxu0 0.0
        %1450 = vmatpush1.msra.mxu0 0.0
        %1451 = vmatprep.subr.mxu0 0.0
        %1452 = vmatpush1.msra.mxu0 0.0
        %1453 = vmatprep.subr.mxu0 0.0
        %1454 = vmatpush1.msra.mxu0 0.0
        %1455 = vmatprep.subr.mxu0 0.0
        %1456 = vmatpush1.msra.mxu0 0.0
        %1457 = vmatprep.mubr.f32.mxu0 0.0
        %1458 = vmatmul.mubr.f32.gmra.mrb[0].mxu0 %v1388
        %v1459 = vpop.f32.mrb[0].mxu0
        %v1460 = vadd.f32 0.0, %v1459
        %v1461 = vpop.f32.mrb[0].mxu0
        %1462 = vmatprep.mubr.f32.mxu0 0.0
        %1463 = vmatmul.mubr.f32.gmra.mrb[0].mxu0 %v1391
        %v1464 = vpop.f32.mrb[0].mxu0
        %v1465 = vadd.f32 0.0, %v1464
        %v1466 = vpop.f32.mrb[0].mxu0
        %1467 = vdwg.mxu0
        %v1469 = vsel %vm1342, %v1385, 0
        %v1472 = vsel %vm1342, %v1386, 0
        %1474 = vmatprep.subr.mxu0 0.0
        %1475 = vmatpush1.msra.mxu0 %v1137
        %1476 = vmatprep.subr.mxu0 0.0
        %1477 = vmatpush1.msra.mxu0 %v1142
        %1478 = vmatprep.subr.mxu0 0.0
        %1479 = vmatpush1.msra.mxu0 0.0
        %1480 = vmatprep.subr.mxu0 0.0
        %1481 = vmatpush1.msra.mxu0 0.0
        %1482 = vmatprep.subr.mxu0 0.0
        %1483 = vmatpush1.msra.mxu0 0.0
        %1484 = vmatprep.subr.mxu0 0.0
        %1485 = vmatpush1.msra.mxu0 0.0
        %1486 = vmatprep.subr.mxu0 0.0
        %1487 = vmatpush1.msra.mxu0 0.0
        %1488 = vmatprep.subr.mxu0 0.0
        %1489 = vmatpush1.msra.mxu0 0.0
        %1490 = vmatprep.subr.mxu0 0.0
        %1491 = vmatpush1.msra.mxu0 0.0
        %1492 = vmatprep.subr.mxu0 0.0
        %1493 = vmatpush1.msra.mxu0 0.0
        %1494 = vmatprep.subr.mxu0 0.0
        %1495 = vmatpush1.msra.mxu0 0.0
        %1496 = vmatprep.subr.mxu0 0.0
        %1497 = vmatpush1.msra.mxu0 0.0
        %1498 = vmatprep.subr.mxu0 0.0
        %1499 = vmatpush1.msra.mxu0 0.0
        %1500 = vmatprep.subr.mxu0 0.0
        %1501 = vmatpush1.msra.mxu0 0.0
        %1502 = vmatprep.subr.mxu0 0.0
        %1503 = vmatpush1.msra.mxu0 0.0
        %1504 = vmatprep.subr.mxu0 0.0
        %1505 = vmatpush1.msra.mxu0 0.0
        %1506 = vmatprep.subr.mxu0 0.0
        %1507 = vmatpush1.msra.mxu0 0.0
        %1508 = vmatprep.subr.mxu0 0.0
        %1509 = vmatpush1.msra.mxu0 0.0
        %1510 = vmatprep.subr.mxu0 0.0
        %1511 = vmatpush1.msra.mxu0 0.0
        %1512 = vmatprep.subr.mxu0 0.0
        %1513 = vmatpush1.msra.mxu0 0.0
        %1514 = vmatprep.subr.mxu0 0.0
        %1515 = vmatpush1.msra.mxu0 0.0
        %1516 = vmatprep.subr.mxu0 0.0
        %1517 = vmatpush1.msra.mxu0 0.0
        %1518 = vmatprep.subr.mxu0 0.0
        %1519 = vmatpush1.msra.mxu0 0.0
        %1520 = vmatprep.subr.mxu0 0.0
        %1521 = vmatpush1.msra.mxu0 0.0
        %1522 = vmatprep.subr.mxu0 0.0
        %1523 = vmatpush1.msra.mxu0 0.0
        %1524 = vmatprep.subr.mxu0 0.0
        %1525 = vmatpush1.msra.mxu0 0.0
        %1526 = vmatprep.subr.mxu0 0.0
        %1527 = vmatpush1.msra.mxu0 0.0
        %1528 = vmatprep.subr.mxu0 0.0
        %1529 = vmatpush1.msra.mxu0 0.0
        %1530 = vmatprep.subr.mxu0 0.0
        %1531 = vmatpush1.msra.mxu0 0.0
        %1532 = vmatprep.subr.mxu0 0.0
        %1533 = vmatpush1.msra.mxu0 0.0
        %1534 = vmatprep.subr.mxu0 0.0
        %1535 = vmatpush1.msra.mxu0 0.0
        %1536 = vmatprep.subr.mxu0 0.0
        %1537 = vmatpush1.msra.mxu0 0.0
        %1538 = vmatprep.mubr.f32.mxu0 0.0
        %1539 = vmatmul.mubr.f32.gmra.mrb[0].mxu0 %v1469
        %v1540 = vpop.f32.mrb[0].mxu0
        %v1541 = vadd.f32 0.0, %v1540
        %v1542 = vpop.f32.mrb[0].mxu0
        %1543 = vmatprep.mubr.f32.mxu0 0.0
        %1544 = vmatmul.mubr.f32.gmra.mrb[0].mxu0 %v1472
        %v1545 = vpop.f32.mrb[0].mxu0
        %v1546 = vadd.f32 0.0, %v1545
        %v1547 = vpop.f32.mrb[0].mxu0
        %1548 = vdwg.mxu0
        %1549 = vrot.lane.b32.xlu0 %v1145, 96
        %v1550 = vpop.permute.xlu0 %1549
        %1551 = vrot.lane.b32.xlu0 %v1146, 96
        %v1552 = vpop.permute.xlu0 %1551
        %1553 = vrot.lane.b32.xlu0 %v1040, 96
        %v1554 = vpop.permute.xlu0 %1553
        %1555 = vrot.lane.b32.xlu0 %v1046, 96
        %v1556 = vpop.permute.xlu0 %1555
        %v1557 = vsel %vm1167, %v1550, 0
        %v1559 = vsel %vm1167, %v1552, 0
        %v1561 = vsel %vm1167, %v1554, 0
        %v1563 = vsel %vm1167, %v1556, 0
        %1565 = vmatprep.subr.mxu0 0.0
        %1566 = vmatpush1.xpose.msra.mxu0 %v1561
        %1567 = vmatprep.subr.mxu0 0.0
        %1568 = vmatpush1.xpose.msra.mxu0 %v1563
        %1569 = vmatprep.subr.mxu0 0.0
        %1570 = vmatpush1.xpose.msra.mxu0 0.0
        %1571 = vmatprep.subr.mxu0 0.0
        %1572 = vmatpush1.xpose.msra.mxu0 0.0
        %1573 = vmatprep.subr.mxu0 0.0
        %1574 = vmatpush1.xpose.msra.mxu0 0.0
        %1575 = vmatprep.subr.mxu0 0.0
        %1576 = vmatpush1.xpose.msra.mxu0 0.0
        %1577 = vmatprep.subr.mxu0 0.0
        %1578 = vmatpush1.xpose.msra.mxu0 0.0
        %1579 = vmatprep.subr.mxu0 0.0
        %1580 = vmatpush1.xpose.msra.mxu0 0.0
        %1581 = vmatprep.subr.mxu0 0.0
        %1582 = vmatpush1.xpose.msra.mxu0 0.0
        %1583 = vmatprep.subr.mxu0 0.0
        %1584 = vmatpush1.xpose.msra.mxu0 0.0
        %1585 = vmatprep.subr.mxu0 0.0
        %1586 = vmatpush1.xpose.msra.mxu0 0.0
        %1587 = vmatprep.subr.mxu0 0.0
        %1588 = vmatpush1.xpose.msra.mxu0 0.0
        %1589 = vmatprep.subr.mxu0 0.0
        %1590 = vmatpush1.xpose.msra.mxu0 0.0
        %1591 = vmatprep.subr.mxu0 0.0
        %1592 = vmatpush1.xpose.msra.mxu0 0.0
        %1593 = vmatprep.subr.mxu0 0.0
        %1594 = vmatpush1.xpose.msra.mxu0 0.0
        %1595 = vmatprep.subr.mxu0 0.0
        %1596 = vmatpush1.xpose.msra.mxu0 0.0
        %1597 = vmatprep.subr.mxu0 0.0
        %1598 = vmatpush1.xpose.msra.mxu0 0.0
        %1599 = vmatprep.subr.mxu0 0.0
        %1600 = vmatpush1.xpose.msra.mxu0 0.0
        %1601 = vmatprep.subr.mxu0 0.0
        %1602 = vmatpush1.xpose.msra.mxu0 0.0
        %1603 = vmatprep.subr.mxu0 0.0
        %1604 = vmatpush1.xpose.msra.mxu0 0.0
        %1605 = vmatprep.subr.mxu0 0.0
        %1606 = vmatpush1.xpose.msra.mxu0 0.0
        %1607 = vmatprep.subr.mxu0 0.0
        %1608 = vmatpush1.xpose.msra.mxu0 0.0
        %1609 = vmatprep.subr.mxu0 0.0
        %1610 = vmatpush1.xpose.msra.mxu0 0.0
        %1611 = vmatprep.subr.mxu0 0.0
        %1612 = vmatpush1.xpose.msra.mxu0 0.0
        %1613 = vmatprep.subr.mxu0 0.0
        %1614 = vmatpush1.xpose.msra.mxu0 0.0
        %1615 = vmatprep.subr.mxu0 0.0
        %1616 = vmatpush1.xpose.msra.mxu0 0.0
        %1617 = vmatprep.subr.mxu0 0.0
        %1618 = vmatpush1.xpose.msra.mxu0 0.0
        %1619 = vmatprep.subr.mxu0 0.0
        %1620 = vmatpush1.xpose.msra.mxu0 0.0
        %1621 = vmatprep.subr.mxu0 0.0
        %1622 = vmatpush1.xpose.msra.mxu0 0.0
        %1623 = vmatprep.subr.mxu0 0.0
        %1624 = vmatpush1.xpose.msra.mxu0 0.0
        %1625 = vmatprep.subr.mxu0 0.0
        %1626 = vmatpush1.xpose.msra.mxu0 0.0
        %1627 = vmatprep.subr.mxu0 0.0
        %1628 = vmatpush1.xpose.msra.mxu0 0.0
        %1629 = vmatprep.mubr.f32.mxu0 0.0
        %1630 = vmatmul.mubr.f32.gmra.mrb[0].mxu0 %v1557
        %v1631 = vpop.f32.mrb[0].mxu0
        %v1632 = vadd.f32 %v1149, %v1631
        %v1633 = vpop.f32.mrb[0].mxu0
        %1634 = vmatprep.mubr.f32.mxu0 0.0
        %1635 = vmatmul.mubr.f32.gmra.mrb[0].mxu0 %v1559
        %v1636 = vpop.f32.mrb[0].mxu0
        %v1637 = vadd.f32 %v1150, %v1636
        %v1638 = vpop.f32.mrb[0].mxu0
        %1639 = vdwg.mxu0
        %1640 = vrot.lane.b32.xlu0 %v1147, 96
        %v1641 = vpop.permute.xlu0 %1640
        %1642 = vrot.lane.b32.xlu0 %v1148, 96
        %v1643 = vpop.permute.xlu0 %1642
        %1644 = vrot.lane.b32.xlu0 %v1052, 96
        %v1645 = vpop.permute.xlu0 %1644
        %1646 = vrot.lane.b32.xlu0 %v1058, 96
        %v1647 = vpop.permute.xlu0 %1646
        %v1648 = vsel %vm1167, %v1641, 0
        %v1650 = vsel %vm1167, %v1643, 0
        %v1652 = vsel %vm1167, %v1645, 0
        %v1654 = vsel %vm1167, %v1647, 0
        %1656 = vmatprep.subr.mxu0 0.0
        %1657 = vmatpush1.xpose.msra.mxu0 %v1652
        %1658 = vmatprep.subr.mxu0 0.0
        %1659 = vmatpush1.xpose.msra.mxu0 %v1654
        %1660 = vmatprep.subr.mxu0 0.0
        %1661 = vmatpush1.xpose.msra.mxu0 0.0
        %1662 = vmatprep.subr.mxu0 0.0
        %1663 = vmatpush1.xpose.msra.mxu0 0.0
        %1664 = vmatprep.subr.mxu0 0.0
        %1665 = vmatpush1.xpose.msra.mxu0 0.0
        %1666 = vmatprep.subr.mxu0 0.0
        %1667 = vmatpush1.xpose.msra.mxu0 0.0
        %1668 = vmatprep.subr.mxu0 0.0
        %1669 = vmatpush1.xpose.msra.mxu0 0.0
        %1670 = vmatprep.subr.mxu0 0.0
        %1671 = vmatpush1.xpose.msra.mxu0 0.0
        %1672 = vmatprep.subr.mxu0 0.0
        %1673 = vmatpush1.xpose.msra.mxu0 0.0
        %1674 = vmatprep.subr.mxu0 0.0
        %1675 = vmatpush1.xpose.msra.mxu0 0.0
        %1676 = vmatprep.subr.mxu0 0.0
        %1677 = vmatpush1.xpose.msra.mxu0 0.0
        %1678 = vmatprep.subr.mxu0 0.0
        %1679 = vmatpush1.xpose.msra.mxu0 0.0
        %1680 = vmatprep.subr.mxu0 0.0
        %1681 = vmatpush1.xpose.msra.mxu0 0.0
        %1682 = vmatprep.subr.mxu0 0.0
        %1683 = vmatpush1.xpose.msra.mxu0 0.0
        %1684 = vmatprep.subr.mxu0 0.0
        %1685 = vmatpush1.xpose.msra.mxu0 0.0
        %1686 = vmatprep.subr.mxu0 0.0
        %1687 = vmatpush1.xpose.msra.mxu0 0.0
        %1688 = vmatprep.subr.mxu0 0.0
        %1689 = vmatpush1.xpose.msra.mxu0 0.0
        %1690 = vmatprep.subr.mxu0 0.0
        %1691 = vmatpush1.xpose.msra.mxu0 0.0
        %1692 = vmatprep.subr.mxu0 0.0
        %1693 = vmatpush1.xpose.msra.mxu0 0.0
        %1694 = vmatprep.subr.mxu0 0.0
        %1695 = vmatpush1.xpose.msra.mxu0 0.0
        %1696 = vmatprep.subr.mxu0 0.0
        %1697 = vmatpush1.xpose.msra.mxu0 0.0
        %1698 = vmatprep.subr.mxu0 0.0
        %1699 = vmatpush1.xpose.msra.mxu0 0.0
        %1700 = vmatprep.subr.mxu0 0.0
        %1701 = vmatpush1.xpose.msra.mxu0 0.0
        %1702 = vmatprep.subr.mxu0 0.0
        %1703 = vmatpush1.xpose.msra.mxu0 0.0
        %1704 = vmatprep.subr.mxu0 0.0
        %1705 = vmatpush1.xpose.msra.mxu0 0.0
        %1706 = vmatprep.subr.mxu0 0.0
        %1707 = vmatpush1.xpose.msra.mxu0 0.0
        %1708 = vmatprep.subr.mxu0 0.0
        %1709 = vmatpush1.xpose.msra.mxu0 0.0
        %1710 = vmatprep.subr.mxu0 0.0
        %1711 = vmatpush1.xpose.msra.mxu0 0.0
        %1712 = vmatprep.subr.mxu0 0.0
        %1713 = vmatpush1.xpose.msra.mxu0 0.0
        %1714 = vmatprep.subr.mxu0 0.0
        %1715 = vmatpush1.xpose.msra.mxu0 0.0
        %1716 = vmatprep.subr.mxu0 0.0
        %1717 = vmatpush1.xpose.msra.mxu0 0.0
        %1718 = vmatprep.subr.mxu0 0.0
        %1719 = vmatpush1.xpose.msra.mxu0 0.0
        %1720 = vmatprep.mubr.f32.mxu0 0.0
        %1721 = vmatmul.mubr.f32.gmra.mrb[0].mxu0 %v1648
        %v1722 = vpop.f32.mrb[0].mxu0
        %v1723 = vadd.f32 %v1149, %v1722
        %v1724 = vpop.f32.mrb[0].mxu0
        %1725 = vmatprep.mubr.f32.mxu0 0.0
        %1726 = vmatmul.mubr.f32.gmra.mrb[0].mxu0 %v1650
        %v1727 = vpop.f32.mrb[0].mxu0
        %v1728 = vadd.f32 %v1150, %v1727
        %v1729 = vpop.f32.mrb[0].mxu0
        %1730 = vdwg.mxu0
        %v1731 = vsel %vm1342, %v1632, -inf
        %1732 = vmax.xlane.f32.xlu0 %v1731
        %v1733 = vpop.xlane.xlu0 %1732
        %v1734 = vsel %vm1342, %v1637, -inf
        %1735 = vmax.xlane.f32.xlu0 %v1734
        %v1736 = vpop.xlane.xlu0 %1735
        %v1737 = vsel %vm1342, %v1723, -inf
        %1738 = vmax.xlane.f32.xlu0 %v1737
        %v1739 = vpop.xlane.xlu0 %1738
        %v1740 = vsel %vm1342, %v1728, -inf
        %1741 = vmax.xlane.f32.xlu0 %v1740
        %v1742 = vpop.xlane.xlu0 %1741
        %v1743 = vsub.f32 %v1632, %v1733
        %v1744 = vsub.f32 %v1637, %v1736
        %v1745 = vsub.f32 %v1723, %v1739
        %v1746 = vsub.f32 %v1728, %v1742
        %v1747 = vmul.f32 %v1743, 1.442695
        %v1748 = vpow.pop %v1747
        %v1749 = vmul.f32 %v1744, 1.442695
        %v1750 = vpow.pop %v1749
        %v1751 = vmul.f32 %v1745, 1.442695
        %v1752 = vpow.pop %v1751
        %v1753 = vmul.f32 %v1746, 1.442695
        %v1754 = vpow.pop %v1753
        %v1755 = vsel %vm1342, %v1748, 0.0
        %1756 = vadd.xlane.f32.xlu0 %v1755
        %v1757 = vpop.xlane.xlu0 %1756
        %v1758 = vsel %vm1342, %v1750, 0.0
        %1759 = vadd.xlane.f32.xlu0 %v1758
        %v1760 = vpop.xlane.xlu0 %1759
        %v1761 = vsel %vm1342, %v1752, 0.0
        %1762 = vadd.xlane.f32.xlu0 %v1761
        %v1763 = vpop.xlane.xlu0 %1762
        %v1764 = vsel %vm1342, %v1754, 0.0
        %1765 = vadd.xlane.f32.xlu0 %v1764
        %v1766 = vpop.xlane.xlu0 %1765
        %v1767 = vrcp.pop %v1757
        %v1768 = vrcp.pop %v1760
        %v1769 = vrcp.pop %v1763
        %v1770 = vrcp.pop %v1766
        %v1771 = vmul.f32 %v1748, %v1767
        %v1772 = vmul.f32 %v1750, %v1768
        %v1773 = vmul.f32 %v1752, %v1769
        %v1774 = vmul.f32 %v1754, %v1770
        %1777 = vrot.lane.b32.xlu0 %v1127, 96
        %v1778 = vpop.permute.xlu0 %1777
        %1779 = vrot.lane.b32.xlu0 %v1132, 96
        %v1780 = vpop.permute.xlu0 %1779
        %v1784 = vsel %vm1342, %v1771, 0
        %v1787 = vsel %vm1342, %v1772, 0
        %1789 = vmatprep.subr.mxu0 0.0
        %1790 = vmatpush1.msra.mxu0 %v1778
        %1791 = vmatprep.subr.mxu0 0.0
        %1792 = vmatpush1.msra.mxu0 %v1780
        %1793 = vmatprep.subr.mxu0 0.0
        %1794 = vmatpush1.msra.mxu0 0.0
        %1795 = vmatprep.subr.mxu0 0.0
        %1796 = vmatpush1.msra.mxu0 0.0
        %1797 = vmatprep.subr.mxu0 0.0
        %1798 = vmatpush1.msra.mxu0 0.0
        %1799 = vmatprep.subr.mxu0 0.0
        %1800 = vmatpush1.msra.mxu0 0.0
        %1801 = vmatprep.subr.mxu0 0.0
        %1802 = vmatpush1.msra.mxu0 0.0
        %1803 = vmatprep.subr.mxu0 0.0
        %1804 = vmatpush1.msra.mxu0 0.0
        %1805 = vmatprep.subr.mxu0 0.0
        %1806 = vmatpush1.msra.mxu0 0.0
        %1807 = vmatprep.subr.mxu0 0.0
        %1808 = vmatpush1.msra.mxu0 0.0
        %1809 = vmatprep.subr.mxu0 0.0
        %1810 = vmatpush1.msra.mxu0 0.0
        %1811 = vmatprep.subr.mxu0 0.0
        %1812 = vmatpush1.msra.mxu0 0.0
        %1813 = vmatprep.subr.mxu0 0.0
        %1814 = vmatpush1.msra.mxu0 0.0
        %1815 = vmatprep.subr.mxu0 0.0
        %1816 = vmatpush1.msra.mxu0 0.0
        %1817 = vmatprep.subr.mxu0 0.0
        %1818 = vmatpush1.msra.mxu0 0.0
        %1819 = vmatprep.subr.mxu0 0.0
        %1820 = vmatpush1.msra.mxu0 0.0
        %1821 = vmatprep.subr.mxu0 0.0
        %1822 = vmatpush1.msra.mxu0 0.0
        %1823 = vmatprep.subr.mxu0 0.0
        %1824 = vmatpush1.msra.mxu0 0.0
        %1825 = vmatprep.subr.mxu0 0.0
        %1826 = vmatpush1.msra.mxu0 0.0
        %1827 = vmatprep.subr.mxu0 0.0
        %1828 = vmatpush1.msra.mxu0 0.0
        %1829 = vmatprep.subr.mxu0 0.0
        %1830 = vmatpush1.msra.mxu0 0.0
        %1831 = vmatprep.subr.mxu0 0.0
        %1832 = vmatpush1.msra.mxu0 0.0
        %1833 = vmatprep.subr.mxu0 0.0
        %1834 = vmatpush1.msra.mxu0 0.0
        %1835 = vmatprep.subr.mxu0 0.0
        %1836 = vmatpush1.msra.mxu0 0.0
        %1837 = vmatprep.subr.mxu0 0.0
        %1838 = vmatpush1.msra.mxu0 0.0
        %1839 = vmatprep.subr.mxu0 0.0
        %1840 = vmatpush1.msra.mxu0 0.0
        %1841 = vmatprep.subr.mxu0 0.0
        %1842 = vmatpush1.msra.mxu0 0.0
        %1843 = vmatprep.subr.mxu0 0.0
        %1844 = vmatpush1.msra.mxu0 0.0
        %1845 = vmatprep.subr.mxu0 0.0
        %1846 = vmatpush1.msra.mxu0 0.0
        %1847 = vmatprep.subr.mxu0 0.0
        %1848 = vmatpush1.msra.mxu0 0.0
        %1849 = vmatprep.subr.mxu0 0.0
        %1850 = vmatpush1.msra.mxu0 0.0
        %1851 = vmatprep.subr.mxu0 0.0
        %1852 = vmatpush1.msra.mxu0 0.0
        %1853 = vmatprep.mubr.f32.mxu0 0.0
        %1854 = vmatmul.mubr.f32.gmra.mrb[0].mxu0 %v1784
        %v1855 = vpop.f32.mrb[0].mxu0
        %v1856 = vadd.f32 0.0, %v1855
        %v1857 = vpop.f32.mrb[0].mxu0
        %1858 = vmatprep.mubr.f32.mxu0 0.0
        %1859 = vmatmul.mubr.f32.gmra.mrb[0].mxu0 %v1787
        %v1860 = vpop.f32.mrb[0].mxu0
        %v1861 = vadd.f32 0.0, %v1860
        %v1862 = vpop.f32.mrb[0].mxu0
        %1863 = vdwg.mxu0
        %1866 = vrot.lane.b32.xlu0 %v1137, 96
        %v1867 = vpop.permute.xlu0 %1866
        %1868 = vrot.lane.b32.xlu0 %v1142, 96
        %v1869 = vpop.permute.xlu0 %1868
        %v1873 = vsel %vm1342, %v1773, 0
        %v1876 = vsel %vm1342, %v1774, 0
        %1878 = vmatprep.subr.mxu0 0.0
        %1879 = vmatpush1.msra.mxu0 %v1867
        %1880 = vmatprep.subr.mxu0 0.0
        %1881 = vmatpush1.msra.mxu0 %v1869
        %1882 = vmatprep.subr.mxu0 0.0
        %1883 = vmatpush1.msra.mxu0 0.0
        %1884 = vmatprep.subr.mxu0 0.0
        %1885 = vmatpush1.msra.mxu0 0.0
        %1886 = vmatprep.subr.mxu0 0.0
        %1887 = vmatpush1.msra.mxu0 0.0
        %1888 = vmatprep.subr.mxu0 0.0
        %1889 = vmatpush1.msra.mxu0 0.0
        %1890 = vmatprep.subr.mxu0 0.0
        %1891 = vmatpush1.msra.mxu0 0.0
        %1892 = vmatprep.subr.mxu0 0.0
        %1893 = vmatpush1.msra.mxu0 0.0
        %1894 = vmatprep.subr.mxu0 0.0
        %1895 = vmatpush1.msra.mxu0 0.0
        %1896 = vmatprep.subr.mxu0 0.0
        %1897 = vmatpush1.msra.mxu0 0.0
        %1898 = vmatprep.subr.mxu0 0.0
        %1899 = vmatpush1.msra.mxu0 0.0
        %1900 = vmatprep.subr.mxu0 0.0
        %1901 = vmatpush1.msra.mxu0 0.0
        %1902 = vmatprep.subr.mxu0 0.0
        %1903 = vmatpush1.msra.mxu0 0.0
        %1904 = vmatprep.subr.mxu0 0.0
        %1905 = vmatpush1.msra.mxu0 0.0
        %1906 = vmatprep.subr.mxu0 0.0
        %1907 = vmatpush1.msra.mxu0 0.0
        %1908 = vmatprep.subr.mxu0 0.0
        %1909 = vmatpush1.msra.mxu0 0.0
        %1910 = vmatprep.subr.mxu0 0.0
        %1911 = vmatpush1.msra.mxu0 0.0
        %1912 = vmatprep.subr.mxu0 0.0
        %1913 = vmatpush1.msra.mxu0 0.0
        %1914 = vmatprep.subr.mxu0 0.0
        %1915 = vmatpush1.msra.mxu0 0.0
        %1916 = vmatprep.subr.mxu0 0.0
        %1917 = vmatpush1.msra.mxu0 0.0
        %1918 = vmatprep.subr.mxu0 0.0
        %1919 = vmatpush1.msra.mxu0 0.0
        %1920 = vmatprep.subr.mxu0 0.0
        %1921 = vmatpush1.msra.mxu0 0.0
        %1922 = vmatprep.subr.mxu0 0.0
        %1923 = vmatpush1.msra.mxu0 0.0
        %1924 = vmatprep.subr.mxu0 0.0
        %1925 = vmatpush1.msra.mxu0 0.0
        %1926 = vmatprep.subr.mxu0 0.0
        %1927 = vmatpush1.msra.mxu0 0.0
        %1928 = vmatprep.subr.mxu0 0.0
        %1929 = vmatpush1.msra.mxu0 0.0
        %1930 = vmatprep.subr.mxu0 0.0
        %1931 = vmatpush1.msra.mxu0 0.0
        %1932 = vmatprep.subr.mxu0 0.0
        %1933 = vmatpush1.msra.mxu0 0.0
        %1934 = vmatprep.subr.mxu0 0.0
        %1935 = vmatpush1.msra.mxu0 0.0
        %1936 = vmatprep.subr.mxu0 0.0
        %1937 = vmatpush1.msra.mxu0 0.0
        %1938 = vmatprep.subr.mxu0 0.0
        %1939 = vmatpush1.msra.mxu0 0.0
        %1940 = vmatprep.subr.mxu0 0.0
        %1941 = vmatpush1.msra.mxu0 0.0
        %1942 = vmatprep.mubr.f32.mxu0 0.0
        %1943 = vmatmul.mubr.f32.gmra.mrb[0].mxu0 %v1873
        %v1944 = vpop.f32.mrb[0].mxu0
        %v1945 = vadd.f32 0.0, %v1944
        %v1946 = vpop.f32.mrb[0].mxu0
        %1947 = vmatprep.mubr.f32.mxu0 0.0
        %1948 = vmatmul.mubr.f32.gmra.mrb[0].mxu0 %v1876
        %v1949 = vpop.f32.mrb[0].mxu0
        %v1950 = vadd.f32 0.0, %v1949
        %v1951 = vpop.f32.mrb[0].mxu0
        %1952 = vdwg.mxu0
        %v1954 = vsel %vm1167, %v1856, 0
        %v1957 = vsel %vm1167, %v1861, 0
        %v1960 = vsel %vm1167, %v1945, 0
        %v1963 = vsel %vm1167, %v1950, 0
        %1965 = vmatprep.subr.mxu0 0.0
        %1966 = vmatpush1.msra.mxu0 %v1155
        %1967 = vmatprep.subr.mxu0 0.0
        %1968 = vmatpush1.msra.mxu0 %v1156
        %1969 = vmatprep.subr.mxu0 0.0
        %1970 = vmatpush1.msra.mxu0 %v1157
        %1971 = vmatprep.subr.mxu0 0.0
        %1972 = vmatpush1.msra.mxu0 %v1158
        %1973 = vmatprep.subr.mxu0 0.0
        %1974 = vmatpush1.msra.mxu0 0.0
        %1975 = vmatprep.subr.mxu0 0.0
        %1976 = vmatpush1.msra.mxu0 0.0
        %1977 = vmatprep.subr.mxu0 0.0
        %1978 = vmatpush1.msra.mxu0 0.0
        %1979 = vmatprep.subr.mxu0 0.0
        %1980 = vmatpush1.msra.mxu0 0.0
        %1981 = vmatprep.subr.mxu0 0.0
        %1982 = vmatpush1.msra.mxu0 0.0
        %1983 = vmatprep.subr.mxu0 0.0
        %1984 = vmatpush1.msra.mxu0 0.0
        %1985 = vmatprep.subr.mxu0 0.0
        %1986 = vmatpush1.msra.mxu0 0.0
        %1987 = vmatprep.subr.mxu0 0.0
        %1988 = vmatpush1.msra.mxu0 0.0
        %1989 = vmatprep.subr.mxu0 0.0
        %1990 = vmatpush1.msra.mxu0 0.0
        %1991 = vmatprep.subr.mxu0 0.0
        %1992 = vmatpush1.msra.mxu0 0.0
        %1993 = vmatprep.subr.mxu0 0.0
        %1994 = vmatpush1.msra.mxu0 0.0
        %1995 = vmatprep.subr.mxu0 0.0
        %1996 = vmatpush1.msra.mxu0 0.0
        %1997 = vmatprep.subr.mxu0 0.0
        %1998 = vmatpush1.msra.mxu0 0.0
        %1999 = vmatprep.subr.mxu0 0.0
        %2000 = vmatpush1.msra.mxu0 0.0
        %2001 = vmatprep.subr.mxu0 0.0
        %2002 = vmatpush1.msra.mxu0 0.0
        %2003 = vmatprep.subr.mxu0 0.0
        %2004 = vmatpush1.msra.mxu0 0.0
        %2005 = vmatprep.subr.mxu0 0.0
        %2006 = vmatpush1.msra.mxu0 0.0
        %2007 = vmatprep.subr.mxu0 0.0
        %2008 = vmatpush1.msra.mxu0 0.0
        %2009 = vmatprep.subr.mxu0 0.0
        %2010 = vmatpush1.msra.mxu0 0.0
        %2011 = vmatprep.subr.mxu0 0.0
        %2012 = vmatpush1.msra.mxu0 0.0
        %2013 = vmatprep.subr.mxu0 0.0
        %2014 = vmatpush1.msra.mxu0 0.0
        %2015 = vmatprep.subr.mxu0 0.0
        %2016 = vmatpush1.msra.mxu0 0.0
        %2017 = vmatprep.subr.mxu0 0.0
        %2018 = vmatpush1.msra.mxu0 0.0
        %2019 = vmatprep.subr.mxu0 0.0
        %2020 = vmatpush1.msra.mxu0 0.0
        %2021 = vmatprep.subr.mxu0 0.0
        %2022 = vmatpush1.msra.mxu0 0.0
        %2023 = vmatprep.subr.mxu0 0.0
        %2024 = vmatpush1.msra.mxu0 0.0
        %2025 = vmatprep.subr.mxu0 0.0
        %2026 = vmatpush1.msra.mxu0 0.0
        %2027 = vmatprep.subr.mxu0 0.0
        %2028 = vmatpush1.msra.mxu0 0.0
        %2029 = vmatprep.mubr.f32.mxu0 0.0
        %2030 = vmatmul.mubr.f32.gmra.mrb[0].mxu0 %v1954
        %v2031 = vpop.f32.mrb[0].mxu0
        %v2032 = vadd.f32 0.0, %v2031
        %v2033 = vpop.f32.mrb[0].mxu0
        %2034 = vmatprep.mubr.f32.mxu0 0.0
        %2035 = vmatmul.mubr.f32.gmra.mrb[0].mxu0 %v1957
        %v2036 = vpop.f32.mrb[0].mxu0
        %v2037 = vadd.f32 0.0, %v2036
        %v2038 = vpop.f32.mrb[0].mxu0
        %2039 = vmatprep.mubr.f32.mxu0 0.0
        %2040 = vmatmul.mubr.f32.gmra.mrb[0].mxu0 %v1960
        %v2041 = vpop.f32.mrb[0].mxu0
        %v2042 = vadd.f32 0.0, %v2041
        %v2043 = vpop.f32.mrb[0].mxu0
        %2044 = vmatprep.mubr.f32.mxu0 0.0
        %2045 = vmatmul.mubr.f32.gmra.mrb[0].mxu0 %v1963
        %v2046 = vpop.f32.mrb[0].mxu0
        %v2047 = vadd.f32 0.0, %v2046
        %v2048 = vpop.f32.mrb[0].mxu0
        %2049 = vdwg.mxu0
        %v2051 = vsel %vm1167, %v1460, 0
        %v2054 = vsel %vm1167, %v1465, 0
        %v2057 = vsel %vm1167, %v1541, 0
        %v2060 = vsel %vm1167, %v1546, 0
        %2062 = vmatprep.subr.mxu0 0.0
        %2063 = vmatpush1.msra.mxu0 %v1151
        %2064 = vmatprep.subr.mxu0 0.0
        %2065 = vmatpush1.msra.mxu0 %v1152
        %2066 = vmatprep.subr.mxu0 0.0
        %2067 = vmatpush1.msra.mxu0 %v1153
        %2068 = vmatprep.subr.mxu0 0.0
        %2069 = vmatpush1.msra.mxu0 %v1154
        %2070 = vmatprep.subr.mxu0 0.0
        %2071 = vmatpush1.msra.mxu0 0.0
        %2072 = vmatprep.subr.mxu0 0.0
        %2073 = vmatpush1.msra.mxu0 0.0
        %2074 = vmatprep.subr.mxu0 0.0
        %2075 = vmatpush1.msra.mxu0 0.0
        %2076 = vmatprep.subr.mxu0 0.0
        %2077 = vmatpush1.msra.mxu0 0.0
        %2078 = vmatprep.subr.mxu0 0.0
        %2079 = vmatpush1.msra.mxu0 0.0
        %2080 = vmatprep.subr.mxu0 0.0
        %2081 = vmatpush1.msra.mxu0 0.0
        %2082 = vmatprep.subr.mxu0 0.0
        %2083 = vmatpush1.msra.mxu0 0.0
        %2084 = vmatprep.subr.mxu0 0.0
        %2085 = vmatpush1.msra.mxu0 0.0
        %2086 = vmatprep.subr.mxu0 0.0
        %2087 = vmatpush1.msra.mxu0 0.0
        %2088 = vmatprep.subr.mxu0 0.0
        %2089 = vmatpush1.msra.mxu0 0.0
        %2090 = vmatprep.subr.mxu0 0.0
        %2091 = vmatpush1.msra.mxu0 0.0
        %2092 = vmatprep.subr.mxu0 0.0
        %2093 = vmatpush1.msra.mxu0 0.0
        %2094 = vmatprep.subr.mxu0 0.0
        %2095 = vmatpush1.msra.mxu0 0.0
        %2096 = vmatprep.subr.mxu0 0.0
        %2097 = vmatpush1.msra.mxu0 0.0
        %2098 = vmatprep.subr.mxu0 0.0
        %2099 = vmatpush1.msra.mxu0 0.0
        %2100 = vmatprep.subr.mxu0 0.0
        %2101 = vmatpush1.msra.mxu0 0.0
        %2102 = vmatprep.subr.mxu0 0.0
        %2103 = vmatpush1.msra.mxu0 0.0
        %2104 = vmatprep.subr.mxu0 0.0
        %2105 = vmatpush1.msra.mxu0 0.0
        %2106 = vmatprep.subr.mxu0 0.0
        %2107 = vmatpush1.msra.mxu0 0.0
        %2108 = vmatprep.subr.mxu0 0.0
        %2109 = vmatpush1.msra.mxu0 0.0
        %2110 = vmatprep.subr.mxu0 0.0
        %2111 = vmatpush1.msra.mxu0 0.0
        %2112 = vmatprep.subr.mxu0 0.0
        %2113 = vmatpush1.msra.mxu0 0.0
        %2114 = vmatprep.subr.mxu0 0.0
        %2115 = vmatpush1.msra.mxu0 0.0
        %2116 = vmatprep.subr.mxu0 0.0
        %2117 = vmatpush1.msra.mxu0 0.0
        %2118 = vmatprep.subr.mxu0 0.0
        %2119 = vmatpush1.msra.mxu0 0.0
        %2120 = vmatprep.subr.mxu0 0.0
        %2121 = vmatpush1.msra.mxu0 0.0
        %2122 = vmatprep.subr.mxu0 0.0
        %2123 = vmatpush1.msra.mxu0 0.0
        %2124 = vmatprep.subr.mxu0 0.0
        %2125 = vmatpush1.msra.mxu0 0.0
        %2126 = vmatprep.mubr.f32.mxu0 0.0
        %2127 = vmatmul.mubr.f32.gmra.mrb[0].mxu0 %v2051
        %v2128 = vpop.f32.mrb[0].mxu0
        %v2129 = vadd.f32 %v2032, %v2128
        %v2130 = vpop.f32.mrb[0].mxu0
        %2131 = vmatprep.mubr.f32.mxu0 0.0
        %2132 = vmatmul.mubr.f32.gmra.mrb[0].mxu0 %v2054
        %v2133 = vpop.f32.mrb[0].mxu0
        %v2134 = vadd.f32 %v2037, %v2133
        %v2135 = vpop.f32.mrb[0].mxu0
        %2136 = vmatprep.mubr.f32.mxu0 0.0
        %2137 = vmatmul.mubr.f32.gmra.mrb[0].mxu0 %v2057
        %v2138 = vpop.f32.mrb[0].mxu0
        %v2139 = vadd.f32 %v2042, %v2138
        %v2140 = vpop.f32.mrb[0].mxu0
        %2141 = vmatprep.mubr.f32.mxu0 0.0
        %2142 = vmatmul.mubr.f32.gmra.mrb[0].mxu0 %v2060
        %v2143 = vpop.f32.mrb[0].mxu0
        %v2144 = vadd.f32 %v2047, %v2143
        %v2145 = vpop.f32.mrb[0].mxu0
        %2146 = vdwg.mxu0
        %2147 = vrot.lane.b32.xlu0 %v1145, 64
        %v2148 = vpop.permute.xlu0 %2147
        %2149 = vrot.lane.b32.xlu0 %v1146, 64
        %v2150 = vpop.permute.xlu0 %2149
        %2151 = vrot.lane.b32.xlu0 %v1040, 64
        %v2152 = vpop.permute.xlu0 %2151
        %2153 = vrot.lane.b32.xlu0 %v1046, 64
        %v2154 = vpop.permute.xlu0 %2153
        %v2155 = vsel %vm1167, %v2148, 0
        %v2157 = vsel %vm1167, %v2150, 0
        %v2159 = vsel %vm1167, %v2152, 0
        %v2161 = vsel %vm1167, %v2154, 0
        %2163 = vmatprep.subr.mxu0 0.0
        %2164 = vmatpush1.xpose.msra.mxu0 %v2159
        %2165 = vmatprep.subr.mxu0 0.0
        %2166 = vmatpush1.xpose.msra.mxu0 %v2161
        %2167 = vmatprep.subr.mxu0 0.0
        %2168 = vmatpush1.xpose.msra.mxu0 0.0
        %2169 = vmatprep.subr.mxu0 0.0
        %2170 = vmatpush1.xpose.msra.mxu0 0.0
        %2171 = vmatprep.subr.mxu0 0.0
        %2172 = vmatpush1.xpose.msra.mxu0 0.0
        %2173 = vmatprep.subr.mxu0 0.0
        %2174 = vmatpush1.xpose.msra.mxu0 0.0
        %2175 = vmatprep.subr.mxu0 0.0
        %2176 = vmatpush1.xpose.msra.mxu0 0.0
        %2177 = vmatprep.subr.mxu0 0.0
        %2178 = vmatpush1.xpose.msra.mxu0 0.0
        %2179 = vmatprep.subr.mxu0 0.0
        %2180 = vmatpush1.xpose.msra.mxu0 0.0
        %2181 = vmatprep.subr.mxu0 0.0
        %2182 = vmatpush1.xpose.msra.mxu0 0.0
        %2183 = vmatprep.subr.mxu0 0.0
        %2184 = vmatpush1.xpose.msra.mxu0 0.0
        %2185 = vmatprep.subr.mxu0 0.0
        %2186 = vmatpush1.xpose.msra.mxu0 0.0
        %2187 = vmatprep.subr.mxu0 0.0
        %2188 = vmatpush1.xpose.msra.mxu0 0.0
        %2189 = vmatprep.subr.mxu0 0.0
        %2190 = vmatpush1.xpose.msra.mxu0 0.0
        %2191 = vmatprep.subr.mxu0 0.0
        %2192 = vmatpush1.xpose.msra.mxu0 0.0
        %2193 = vmatprep.subr.mxu0 0.0
        %2194 = vmatpush1.xpose.msra.mxu0 0.0
        %2195 = vmatprep.subr.mxu0 0.0
        %2196 = vmatpush1.xpose.msra.mxu0 0.0
        %2197 = vmatprep.subr.mxu0 0.0
        %2198 = vmatpush1.xpose.msra.mxu0 0.0
        %2199 = vmatprep.subr.mxu0 0.0
        %2200 = vmatpush1.xpose.msra.mxu0 0.0
        %2201 = vmatprep.subr.mxu0 0.0
        %2202 = vmatpush1.xpose.msra.mxu0 0.0
        %2203 = vmatprep.subr.mxu0 0.0
        %2204 = vmatpush1.xpose.msra.mxu0 0.0
        %2205 = vmatprep.subr.mxu0 0.0
        %2206 = vmatpush1.xpose.msra.mxu0 0.0
        %2207 = vmatprep.subr.mxu0 0.0
        %2208 = vmatpush1.xpose.msra.mxu0 0.0
        %2209 = vmatprep.subr.mxu0 0.0
        %2210 = vmatpush1.xpose.msra.mxu0 0.0
        %2211 = vmatprep.subr.mxu0 0.0
        %2212 = vmatpush1.xpose.msra.mxu0 0.0
        %2213 = vmatprep.subr.mxu0 0.0
        %2214 = vmatpush1.xpose.msra.mxu0 0.0
        %2215 = vmatprep.subr.mxu0 0.0
        %2216 = vmatpush1.xpose.msra.mxu0 0.0
        %2217 = vmatprep.subr.mxu0 0.0
        %2218 = vmatpush1.xpose.msra.mxu0 0.0
        %2219 = vmatprep.subr.mxu0 0.0
        %2220 = vmatpush1.xpose.msra.mxu0 0.0
        %2221 = vmatprep.subr.mxu0 0.0
        %2222 = vmatpush1.xpose.msra.mxu0 0.0
        %2223 = vmatprep.subr.mxu0 0.0
        %2224 = vmatpush1.xpose.msra.mxu0 0.0
        %2225 = vmatprep.subr.mxu0 0.0
        %2226 = vmatpush1.xpose.msra.mxu0 0.0
        %2227 = vmatprep.mubr.f32.mxu0 0.0
        %2228 = vmatmul.mubr.f32.gmra.mrb[0].mxu0 %v2155
        %v2229 = vpop.f32.mrb[0].mxu0
        %v2230 = vadd.f32 %v1149, %v2229
        %v2231 = vpop.f32.mrb[0].mxu0
        %2232 = vmatprep.mubr.f32.mxu0 0.0
        %2233 = vmatmul.mubr.f32.gmra.mrb[0].mxu0 %v2157
        %v2234 = vpop.f32.mrb[0].mxu0
        %v2235 = vadd.f32 %v1150, %v2234
        %v2236 = vpop.f32.mrb[0].mxu0
        %2237 = vdwg.mxu0
        %2238 = vrot.lane.b32.xlu0 %v1147, 64
        %v2239 = vpop.permute.xlu0 %2238
        %2240 = vrot.lane.b32.xlu0 %v1148, 64
        %v2241 = vpop.permute.xlu0 %2240
        %2242 = vrot.lane.b32.xlu0 %v1052, 64
        %v2243 = vpop.permute.xlu0 %2242
        %2244 = vrot.lane.b32.xlu0 %v1058, 64
        %v2245 = vpop.permute.xlu0 %2244
        %v2246 = vsel %vm1167, %v2239, 0
        %v2248 = vsel %vm1167, %v2241, 0
        %v2250 = vsel %vm1167, %v2243, 0
        %v2252 = vsel %vm1167, %v2245, 0
        %2254 = vmatprep.subr.mxu0 0.0
        %2255 = vmatpush1.xpose.msra.mxu0 %v2250
        %2256 = vmatprep.subr.mxu0 0.0
        %2257 = vmatpush1.xpose.msra.mxu0 %v2252
        %2258 = vmatprep.subr.mxu0 0.0
        %2259 = vmatpush1.xpose.msra.mxu0 0.0
        %2260 = vmatprep.subr.mxu0 0.0
        %2261 = vmatpush1.xpose.msra.mxu0 0.0
        %2262 = vmatprep.subr.mxu0 0.0
        %2263 = vmatpush1.xpose.msra.mxu0 0.0
        %2264 = vmatprep.subr.mxu0 0.0
        %2265 = vmatpush1.xpose.msra.mxu0 0.0
        %2266 = vmatprep.subr.mxu0 0.0
        %2267 = vmatpush1.xpose.msra.mxu0 0.0
        %2268 = vmatprep.subr.mxu0 0.0
        %2269 = vmatpush1.xpose.msra.mxu0 0.0
        %2270 = vmatprep.subr.mxu0 0.0
        %2271 = vmatpush1.xpose.msra.mxu0 0.0
        %2272 = vmatprep.subr.mxu0 0.0
        %2273 = vmatpush1.xpose.msra.mxu0 0.0
        %2274 = vmatprep.subr.mxu0 0.0
        %2275 = vmatpush1.xpose.msra.mxu0 0.0
        %2276 = vmatprep.subr.mxu0 0.0
        %2277 = vmatpush1.xpose.msra.mxu0 0.0
        %2278 = vmatprep.subr.mxu0 0.0
        %2279 = vmatpush1.xpose.msra.mxu0 0.0
        %2280 = vmatprep.subr.mxu0 0.0
        %2281 = vmatpush1.xpose.msra.mxu0 0.0
        %2282 = vmatprep.subr.mxu0 0.0
        %2283 = vmatpush1.xpose.msra.mxu0 0.0
        %2284 = vmatprep.subr.mxu0 0.0
        %2285 = vmatpush1.xpose.msra.mxu0 0.0
        %2286 = vmatprep.subr.mxu0 0.0
        %2287 = vmatpush1.xpose.msra.mxu0 0.0
        %2288 = vmatprep.subr.mxu0 0.0
        %2289 = vmatpush1.xpose.msra.mxu0 0.0
        %2290 = vmatprep.subr.mxu0 0.0
        %2291 = vmatpush1.xpose.msra.mxu0 0.0
        %2292 = vmatprep.subr.mxu0 0.0
        %2293 = vmatpush1.xpose.msra.mxu0 0.0
        %2294 = vmatprep.subr.mxu0 0.0
        %2295 = vmatpush1.xpose.msra.mxu0 0.0
        %2296 = vmatprep.subr.mxu0 0.0
        %2297 = vmatpush1.xpose.msra.mxu0 0.0
        %2298 = vmatprep.subr.mxu0 0.0
        %2299 = vmatpush1.xpose.msra.mxu0 0.0
        %2300 = vmatprep.subr.mxu0 0.0
        %2301 = vmatpush1.xpose.msra.mxu0 0.0
        %2302 = vmatprep.subr.mxu0 0.0
        %2303 = vmatpush1.xpose.msra.mxu0 0.0
        %2304 = vmatprep.subr.mxu0 0.0
        %2305 = vmatpush1.xpose.msra.mxu0 0.0
        %2306 = vmatprep.subr.mxu0 0.0
        %2307 = vmatpush1.xpose.msra.mxu0 0.0
        %2308 = vmatprep.subr.mxu0 0.0
        %2309 = vmatpush1.xpose.msra.mxu0 0.0
        %2310 = vmatprep.subr.mxu0 0.0
        %2311 = vmatpush1.xpose.msra.mxu0 0.0
        %2312 = vmatprep.subr.mxu0 0.0
        %2313 = vmatpush1.xpose.msra.mxu0 0.0
        %2314 = vmatprep.subr.mxu0 0.0
        %2315 = vmatpush1.xpose.msra.mxu0 0.0
        %2316 = vmatprep.subr.mxu0 0.0
        %2317 = vmatpush1.xpose.msra.mxu0 0.0
        %2318 = vmatprep.mubr.f32.mxu0 0.0
        %2319 = vmatmul.mubr.f32.gmra.mrb[0].mxu0 %v2246
        %v2320 = vpop.f32.mrb[0].mxu0
        %v2321 = vadd.f32 %v1149, %v2320
        %v2322 = vpop.f32.mrb[0].mxu0
        %2323 = vmatprep.mubr.f32.mxu0 0.0
        %2324 = vmatmul.mubr.f32.gmra.mrb[0].mxu0 %v2248
        %v2325 = vpop.f32.mrb[0].mxu0
        %v2326 = vadd.f32 %v1150, %v2325
        %v2327 = vpop.f32.mrb[0].mxu0
        %2328 = vdwg.mxu0
        %v2329 = vsel %vm1342, %v2230, -inf
        %2330 = vmax.xlane.f32.xlu0 %v2329
        %v2331 = vpop.xlane.xlu0 %2330
        %v2332 = vsel %vm1342, %v2235, -inf
        %2333 = vmax.xlane.f32.xlu0 %v2332
        %v2334 = vpop.xlane.xlu0 %2333
        %v2335 = vsel %vm1342, %v2321, -inf
        %2336 = vmax.xlane.f32.xlu0 %v2335
        %v2337 = vpop.xlane.xlu0 %2336
        %v2338 = vsel %vm1342, %v2326, -inf
        %2339 = vmax.xlane.f32.xlu0 %v2338
        %v2340 = vpop.xlane.xlu0 %2339
        %v2341 = vsub.f32 %v2230, %v2331
        %v2342 = vsub.f32 %v2235, %v2334
        %v2343 = vsub.f32 %v2321, %v2337
        %v2344 = vsub.f32 %v2326, %v2340
        %v2345 = vmul.f32 %v2341, 1.442695
        %v2346 = vpow.pop %v2345
        %v2347 = vmul.f32 %v2342, 1.442695
        %v2348 = vpow.pop %v2347
        %v2349 = vmul.f32 %v2343, 1.442695
        %v2350 = vpow.pop %v2349
        %v2351 = vmul.f32 %v2344, 1.442695
        %v2352 = vpow.pop %v2351
        %v2353 = vsel %vm1342, %v2346, 0.0
        %2354 = vadd.xlane.f32.xlu0 %v2353
        %v2355 = vpop.xlane.xlu0 %2354
        %v2356 = vsel %vm1342, %v2348, 0.0
        %2357 = vadd.xlane.f32.xlu0 %v2356
        %v2358 = vpop.xlane.xlu0 %2357
        %v2359 = vsel %vm1342, %v2350, 0.0
        %2360 = vadd.xlane.f32.xlu0 %v2359
        %v2361 = vpop.xlane.xlu0 %2360
        %v2362 = vsel %vm1342, %v2352, 0.0
        %2363 = vadd.xlane.f32.xlu0 %v2362
        %v2364 = vpop.xlane.xlu0 %2363
        %v2365 = vrcp.pop %v2355
        %v2366 = vrcp.pop %v2358
        %v2367 = vrcp.pop %v2361
        %v2368 = vrcp.pop %v2364
        %v2369 = vmul.f32 %v2346, %v2365
        %v2370 = vmul.f32 %v2348, %v2366
        %v2371 = vmul.f32 %v2350, %v2367
        %v2372 = vmul.f32 %v2352, %v2368
        %2373 = vrot.lane.b32.xlu0 %v1127, 64
        %v2374 = vpop.permute.xlu0 %2373
        %2375 = vrot.lane.b32.xlu0 %v1132, 64
        %v2376 = vpop.permute.xlu0 %2375
        %v2380 = vsel %vm1342, %v2369, 0
        %v2383 = vsel %vm1342, %v2370, 0
        %2385 = vmatprep.subr.mxu0 0.0
        %2386 = vmatpush1.msra.mxu0 %v2374
        %2387 = vmatprep.subr.mxu0 0.0
        %2388 = vmatpush1.msra.mxu0 %v2376
        %2389 = vmatprep.subr.mxu0 0.0
        %2390 = vmatpush1.msra.mxu0 0.0
        %2391 = vmatprep.subr.mxu0 0.0
        %2392 = vmatpush1.msra.mxu0 0.0
        %2393 = vmatprep.subr.mxu0 0.0
        %2394 = vmatpush1.msra.mxu0 0.0
        %2395 = vmatprep.subr.mxu0 0.0
        %2396 = vmatpush1.msra.mxu0 0.0
        %2397 = vmatprep.subr.mxu0 0.0
        %2398 = vmatpush1.msra.mxu0 0.0
        %2399 = vmatprep.subr.mxu0 0.0
        %2400 = vmatpush1.msra.mxu0 0.0
        %2401 = vmatprep.subr.mxu0 0.0
        %2402 = vmatpush1.msra.mxu0 0.0
        %2403 = vmatprep.subr.mxu0 0.0
        %2404 = vmatpush1.msra.mxu0 0.0
        %2405 = vmatprep.subr.mxu0 0.0
        %2406 = vmatpush1.msra.mxu0 0.0
        %2407 = vmatprep.subr.mxu0 0.0
        %2408 = vmatpush1.msra.mxu0 0.0
        %2409 = vmatprep.subr.mxu0 0.0
        %2410 = vmatpush1.msra.mxu0 0.0
        %2411 = vmatprep.subr.mxu0 0.0
        %2412 = vmatpush1.msra.mxu0 0.0
        %2413 = vmatprep.subr.mxu0 0.0
        %2414 = vmatpush1.msra.mxu0 0.0
        %2415 = vmatprep.subr.mxu0 0.0
        %2416 = vmatpush1.msra.mxu0 0.0
        %2417 = vmatprep.subr.mxu0 0.0
        %2418 = vmatpush1.msra.mxu0 0.0
        %2419 = vmatprep.subr.mxu0 0.0
        %2420 = vmatpush1.msra.mxu0 0.0
        %2421 = vmatprep.subr.mxu0 0.0
        %2422 = vmatpush1.msra.mxu0 0.0
        %2423 = vmatprep.subr.mxu0 0.0
        %2424 = vmatpush1.msra.mxu0 0.0
        %2425 = vmatprep.subr.mxu0 0.0
        %2426 = vmatpush1.msra.mxu0 0.0
        %2427 = vmatprep.subr.mxu0 0.0
        %2428 = vmatpush1.msra.mxu0 0.0
        %2429 = vmatprep.subr.mxu0 0.0
        %2430 = vmatpush1.msra.mxu0 0.0
        %2431 = vmatprep.subr.mxu0 0.0
        %2432 = vmatpush1.msra.mxu0 0.0
        %2433 = vmatprep.subr.mxu0 0.0
        %2434 = vmatpush1.msra.mxu0 0.0
        %2435 = vmatprep.subr.mxu0 0.0
        %2436 = vmatpush1.msra.mxu0 0.0
        %2437 = vmatprep.subr.mxu0 0.0
        %2438 = vmatpush1.msra.mxu0 0.0
        %2439 = vmatprep.subr.mxu0 0.0
        %2440 = vmatpush1.msra.mxu0 0.0
        %2441 = vmatprep.subr.mxu0 0.0
        %2442 = vmatpush1.msra.mxu0 0.0
        %2443 = vmatprep.subr.mxu0 0.0
        %2444 = vmatpush1.msra.mxu0 0.0
        %2445 = vmatprep.subr.mxu0 0.0
        %2446 = vmatpush1.msra.mxu0 0.0
        %2447 = vmatprep.subr.mxu0 0.0
        %2448 = vmatpush1.msra.mxu0 0.0
        %2449 = vmatprep.mubr.f32.mxu0 0.0
        %2450 = vmatmul.mubr.f32.gmra.mrb[0].mxu0 %v2380
        %v2451 = vpop.f32.mrb[0].mxu0
        %v2452 = vadd.f32 0.0, %v2451
        %v2453 = vpop.f32.mrb[0].mxu0
        %2454 = vmatprep.mubr.f32.mxu0 0.0
        %2455 = vmatmul.mubr.f32.gmra.mrb[0].mxu0 %v2383
        %v2456 = vpop.f32.mrb[0].mxu0
        %v2457 = vadd.f32 0.0, %v2456
        %v2458 = vpop.f32.mrb[0].mxu0
        %2459 = vdwg.mxu0
        %2460 = vrot.lane.b32.xlu0 %v1137, 64
        %v2461 = vpop.permute.xlu0 %2460
        %2462 = vrot.lane.b32.xlu0 %v1142, 64
        %v2463 = vpop.permute.xlu0 %2462
        %v2467 = vsel %vm1342, %v2371, 0
        %v2470 = vsel %vm1342, %v2372, 0
        %2472 = vmatprep.subr.mxu0 0.0
        %2473 = vmatpush1.msra.mxu0 %v2461
        %2474 = vmatprep.subr.mxu0 0.0
        %2475 = vmatpush1.msra.mxu0 %v2463
        %2476 = vmatprep.subr.mxu0 0.0
        %2477 = vmatpush1.msra.mxu0 0.0
        %2478 = vmatprep.subr.mxu0 0.0
        %2479 = vmatpush1.msra.mxu0 0.0
        %2480 = vmatprep.subr.mxu0 0.0
        %2481 = vmatpush1.msra.mxu0 0.0
        %2482 = vmatprep.subr.mxu0 0.0
        %2483 = vmatpush1.msra.mxu0 0.0
        %2484 = vmatprep.subr.mxu0 0.0
        %2485 = vmatpush1.msra.mxu0 0.0
        %2486 = vmatprep.subr.mxu0 0.0
        %2487 = vmatpush1.msra.mxu0 0.0
        %2488 = vmatprep.subr.mxu0 0.0
        %2489 = vmatpush1.msra.mxu0 0.0
        %2490 = vmatprep.subr.mxu0 0.0
        %2491 = vmatpush1.msra.mxu0 0.0
        %2492 = vmatprep.subr.mxu0 0.0
        %2493 = vmatpush1.msra.mxu0 0.0
        %2494 = vmatprep.subr.mxu0 0.0
        %2495 = vmatpush1.msra.mxu0 0.0
        %2496 = vmatprep.subr.mxu0 0.0
        %2497 = vmatpush1.msra.mxu0 0.0
        %2498 = vmatprep.subr.mxu0 0.0
        %2499 = vmatpush1.msra.mxu0 0.0
        %2500 = vmatprep.subr.mxu0 0.0
        %2501 = vmatpush1.msra.mxu0 0.0
        %2502 = vmatprep.subr.mxu0 0.0
        %2503 = vmatpush1.msra.mxu0 0.0
        %2504 = vmatprep.subr.mxu0 0.0
        %2505 = vmatpush1.msra.mxu0 0.0
        %2506 = vmatprep.subr.mxu0 0.0
        %2507 = vmatpush1.msra.mxu0 0.0
        %2508 = vmatprep.subr.mxu0 0.0
        %2509 = vmatpush1.msra.mxu0 0.0
        %2510 = vmatprep.subr.mxu0 0.0
        %2511 = vmatpush1.msra.mxu0 0.0
        %2512 = vmatprep.subr.mxu0 0.0
        %2513 = vmatpush1.msra.mxu0 0.0
        %2514 = vmatprep.subr.mxu0 0.0
        %2515 = vmatpush1.msra.mxu0 0.0
        %2516 = vmatprep.subr.mxu0 0.0
        %2517 = vmatpush1.msra.mxu0 0.0
        %2518 = vmatprep.subr.mxu0 0.0
        %2519 = vmatpush1.msra.mxu0 0.0
        %2520 = vmatprep.subr.mxu0 0.0
        %2521 = vmatpush1.msra.mxu0 0.0
        %2522 = vmatprep.subr.mxu0 0.0
        %2523 = vmatpush1.msra.mxu0 0.0
        %2524 = vmatprep.subr.mxu0 0.0
        %2525 = vmatpush1.msra.mxu0 0.0
        %2526 = vmatprep.subr.mxu0 0.0
        %2527 = vmatpush1.msra.mxu0 0.0
        %2528 = vmatprep.subr.mxu0 0.0
        %2529 = vmatpush1.msra.mxu0 0.0
        %2530 = vmatprep.subr.mxu0 0.0
        %2531 = vmatpush1.msra.mxu0 0.0
        %2532 = vmatprep.subr.mxu0 0.0
        %2533 = vmatpush1.msra.mxu0 0.0
        %2534 = vmatprep.subr.mxu0 0.0
        %2535 = vmatpush1.msra.mxu0 0.0
        %2536 = vmatprep.mubr.f32.mxu0 0.0
        %2537 = vmatmul.mubr.f32.gmra.mrb[0].mxu0 %v2467
        %v2538 = vpop.f32.mrb[0].mxu0
        %v2539 = vadd.f32 0.0, %v2538
        %v2540 = vpop.f32.mrb[0].mxu0
        %2541 = vmatprep.mubr.f32.mxu0 0.0
        %2542 = vmatmul.mubr.f32.gmra.mrb[0].mxu0 %v2470
        %v2543 = vpop.f32.mrb[0].mxu0
        %v2544 = vadd.f32 0.0, %v2543
        %v2545 = vpop.f32.mrb[0].mxu0
        %2546 = vdwg.mxu0
        %v2548 = vsel %vm1167, %v2452, 0
        %v2551 = vsel %vm1167, %v2457, 0
        %v2554 = vsel %vm1167, %v2539, 0
        %v2557 = vsel %vm1167, %v2544, 0
        %2559 = vmatprep.subr.mxu0 0.0
        %2560 = vmatpush1.msra.mxu0 %v1159
        %2561 = vmatprep.subr.mxu0 0.0
        %2562 = vmatpush1.msra.mxu0 %v1160
        %2563 = vmatprep.subr.mxu0 0.0
        %2564 = vmatpush1.msra.mxu0 %v1161
        %2565 = vmatprep.subr.mxu0 0.0
        %2566 = vmatpush1.msra.mxu0 %v1162
        %2567 = vmatprep.subr.mxu0 0.0
        %2568 = vmatpush1.msra.mxu0 0.0
        %2569 = vmatprep.subr.mxu0 0.0
        %2570 = vmatpush1.msra.mxu0 0.0
        %2571 = vmatprep.subr.mxu0 0.0
        %2572 = vmatpush1.msra.mxu0 0.0
        %2573 = vmatprep.subr.mxu0 0.0
        %2574 = vmatpush1.msra.mxu0 0.0
        %2575 = vmatprep.subr.mxu0 0.0
        %2576 = vmatpush1.msra.mxu0 0.0
        %2577 = vmatprep.subr.mxu0 0.0
        %2578 = vmatpush1.msra.mxu0 0.0
        %2579 = vmatprep.subr.mxu0 0.0
        %2580 = vmatpush1.msra.mxu0 0.0
        %2581 = vmatprep.subr.mxu0 0.0
        %2582 = vmatpush1.msra.mxu0 0.0
        %2583 = vmatprep.subr.mxu0 0.0
        %2584 = vmatpush1.msra.mxu0 0.0
        %2585 = vmatprep.subr.mxu0 0.0
        %2586 = vmatpush1.msra.mxu0 0.0
        %2587 = vmatprep.subr.mxu0 0.0
        %2588 = vmatpush1.msra.mxu0 0.0
        %2589 = vmatprep.subr.mxu0 0.0
        %2590 = vmatpush1.msra.mxu0 0.0
        %2591 = vmatprep.subr.mxu0 0.0
        %2592 = vmatpush1.msra.mxu0 0.0
        %2593 = vmatprep.subr.mxu0 0.0
        %2594 = vmatpush1.msra.mxu0 0.0
        %2595 = vmatprep.subr.mxu0 0.0
        %2596 = vmatpush1.msra.mxu0 0.0
        %2597 = vmatprep.subr.mxu0 0.0
        %2598 = vmatpush1.msra.mxu0 0.0
        %2599 = vmatprep.subr.mxu0 0.0
        %2600 = vmatpush1.msra.mxu0 0.0
        %2601 = vmatprep.subr.mxu0 0.0
        %2602 = vmatpush1.msra.mxu0 0.0
        %2603 = vmatprep.subr.mxu0 0.0
        %2604 = vmatpush1.msra.mxu0 0.0
        %2605 = vmatprep.subr.mxu0 0.0
        %2606 = vmatpush1.msra.mxu0 0.0
        %2607 = vmatprep.subr.mxu0 0.0
        %2608 = vmatpush1.msra.mxu0 0.0
        %2609 = vmatprep.subr.mxu0 0.0
        %2610 = vmatpush1.msra.mxu0 0.0
        %2611 = vmatprep.subr.mxu0 0.0
        %2612 = vmatpush1.msra.mxu0 0.0
        %2613 = vmatprep.subr.mxu0 0.0
        %2614 = vmatpush1.msra.mxu0 0.0
        %2615 = vmatprep.subr.mxu0 0.0
        %2616 = vmatpush1.msra.mxu0 0.0
        %2617 = vmatprep.subr.mxu0 0.0
        %2618 = vmatpush1.msra.mxu0 0.0
        %2619 = vmatprep.subr.mxu0 0.0
        %2620 = vmatpush1.msra.mxu0 0.0
        %2621 = vmatprep.subr.mxu0 0.0
        %2622 = vmatpush1.msra.mxu0 0.0
        %2623 = vmatprep.mubr.f32.mxu0 0.0
        %2624 = vmatmul.mubr.f32.gmra.mrb[0].mxu0 %v2548
        %v2625 = vpop.f32.mrb[0].mxu0
        %v2626 = vadd.f32 0.0, %v2625
        %v2627 = vpop.f32.mrb[0].mxu0
        %2628 = vmatprep.mubr.f32.mxu0 0.0
        %2629 = vmatmul.mubr.f32.gmra.mrb[0].mxu0 %v2551
        %v2630 = vpop.f32.mrb[0].mxu0
        %v2631 = vadd.f32 0.0, %v2630
        %v2632 = vpop.f32.mrb[0].mxu0
        %2633 = vmatprep.mubr.f32.mxu0 0.0
        %2634 = vmatmul.mubr.f32.gmra.mrb[0].mxu0 %v2554
        %v2635 = vpop.f32.mrb[0].mxu0
        %v2636 = vadd.f32 0.0, %v2635
        %v2637 = vpop.f32.mrb[0].mxu0
        %2638 = vmatprep.mubr.f32.mxu0 0.0
        %2639 = vmatmul.mubr.f32.gmra.mrb[0].mxu0 %v2557
        %v2640 = vpop.f32.mrb[0].mxu0
        %v2641 = vadd.f32 0.0, %v2640
        %v2642 = vpop.f32.mrb[0].mxu0
        %2643 = vdwg.mxu0
        %v2644 = vadd.f32 %v2129, %v2626
        %v2645 = vadd.f32 %v2134, %v2631
        %v2646 = vadd.f32 %v2139, %v2636
        %v2647 = vadd.f32 %v2144, %v2641
        %2648 = vrot.lane.b32.xlu0 %v1145, 32
        %v2649 = vpop.permute.xlu0 %2648
        %2650 = vrot.lane.b32.xlu0 %v1146, 32
        %v2651 = vpop.permute.xlu0 %2650
        %2652 = vrot.lane.b32.xlu0 %v1040, 32
        %v2653 = vpop.permute.xlu0 %2652
        %2654 = vrot.lane.b32.xlu0 %v1046, 32
        %v2655 = vpop.permute.xlu0 %2654
        %v2656 = vsel %vm1167, %v2649, 0
        %v2658 = vsel %vm1167, %v2651, 0
        %v2660 = vsel %vm1167, %v2653, 0
        %v2662 = vsel %vm1167, %v2655, 0
        %2664 = vmatprep.subr.mxu0 0.0
        %2665 = vmatpush1.xpose.msra.mxu0 %v2660
        %2666 = vmatprep.subr.mxu0 0.0
        %2667 = vmatpush1.xpose.msra.mxu0 %v2662
        %2668 = vmatprep.subr.mxu0 0.0
        %2669 = vmatpush1.xpose.msra.mxu0 0.0
        %2670 = vmatprep.subr.mxu0 0.0
        %2671 = vmatpush1.xpose.msra.mxu0 0.0
        %2672 = vmatprep.subr.mxu0 0.0
        %2673 = vmatpush1.xpose.msra.mxu0 0.0
        %2674 = vmatprep.subr.mxu0 0.0
        %2675 = vmatpush1.xpose.msra.mxu0 0.0
        %2676 = vmatprep.subr.mxu0 0.0
        %2677 = vmatpush1.xpose.msra.mxu0 0.0
        %2678 = vmatprep.subr.mxu0 0.0
        %2679 = vmatpush1.xpose.msra.mxu0 0.0
        %2680 = vmatprep.subr.mxu0 0.0
        %2681 = vmatpush1.xpose.msra.mxu0 0.0
        %2682 = vmatprep.subr.mxu0 0.0
        %2683 = vmatpush1.xpose.msra.mxu0 0.0
        %2684 = vmatprep.subr.mxu0 0.0
        %2685 = vmatpush1.xpose.msra.mxu0 0.0
        %2686 = vmatprep.subr.mxu0 0.0
        %2687 = vmatpush1.xpose.msra.mxu0 0.0
        %2688 = vmatprep.subr.mxu0 0.0
        %2689 = vmatpush1.xpose.msra.mxu0 0.0
        %2690 = vmatprep.subr.mxu0 0.0
        %2691 = vmatpush1.xpose.msra.mxu0 0.0
        %2692 = vmatprep.subr.mxu0 0.0
        %2693 = vmatpush1.xpose.msra.mxu0 0.0
        %2694 = vmatprep.subr.mxu0 0.0
        %2695 = vmatpush1.xpose.msra.mxu0 0.0
        %2696 = vmatprep.subr.mxu0 0.0
        %2697 = vmatpush1.xpose.msra.mxu0 0.0
        %2698 = vmatprep.subr.mxu0 0.0
        %2699 = vmatpush1.xpose.msra.mxu0 0.0
        %2700 = vmatprep.subr.mxu0 0.0
        %2701 = vmatpush1.xpose.msra.mxu0 0.0
        %2702 = vmatprep.subr.mxu0 0.0
        %2703 = vmatpush1.xpose.msra.mxu0 0.0
        %2704 = vmatprep.subr.mxu0 0.0
        %2705 = vmatpush1.xpose.msra.mxu0 0.0
        %2706 = vmatprep.subr.mxu0 0.0
        %2707 = vmatpush1.xpose.msra.mxu0 0.0
        %2708 = vmatprep.subr.mxu0 0.0
        %2709 = vmatpush1.xpose.msra.mxu0 0.0
        %2710 = vmatprep.subr.mxu0 0.0
        %2711 = vmatpush1.xpose.msra.mxu0 0.0
        %2712 = vmatprep.subr.mxu0 0.0
        %2713 = vmatpush1.xpose.msra.mxu0 0.0
        %2714 = vmatprep.subr.mxu0 0.0
        %2715 = vmatpush1.xpose.msra.mxu0 0.0
        %2716 = vmatprep.subr.mxu0 0.0
        %2717 = vmatpush1.xpose.msra.mxu0 0.0
        %2718 = vmatprep.subr.mxu0 0.0
        %2719 = vmatpush1.xpose.msra.mxu0 0.0
        %2720 = vmatprep.subr.mxu0 0.0
        %2721 = vmatpush1.xpose.msra.mxu0 0.0
        %2722 = vmatprep.subr.mxu0 0.0
        %2723 = vmatpush1.xpose.msra.mxu0 0.0
        %2724 = vmatprep.subr.mxu0 0.0
        %2725 = vmatpush1.xpose.msra.mxu0 0.0
        %2726 = vmatprep.subr.mxu0 0.0
        %2727 = vmatpush1.xpose.msra.mxu0 0.0
        %2728 = vmatprep.mubr.f32.mxu0 0.0
        %2729 = vmatmul.mubr.f32.gmra.mrb[0].mxu0 %v2656
        %v2730 = vpop.f32.mrb[0].mxu0
        %v2731 = vadd.f32 %v1149, %v2730
        %v2732 = vpop.f32.mrb[0].mxu0
        %2733 = vmatprep.mubr.f32.mxu0 0.0
        %2734 = vmatmul.mubr.f32.gmra.mrb[0].mxu0 %v2658
        %v2735 = vpop.f32.mrb[0].mxu0
        %v2736 = vadd.f32 %v1150, %v2735
        %v2737 = vpop.f32.mrb[0].mxu0
        %2738 = vdwg.mxu0
        %2739 = vrot.lane.b32.xlu0 %v1147, 32
        %v2740 = vpop.permute.xlu0 %2739
        %2741 = vrot.lane.b32.xlu0 %v1148, 32
        %v2742 = vpop.permute.xlu0 %2741
        %2743 = vrot.lane.b32.xlu0 %v1052, 32
        %v2744 = vpop.permute.xlu0 %2743
        %2745 = vrot.lane.b32.xlu0 %v1058, 32
        %v2746 = vpop.permute.xlu0 %2745
        %v2747 = vsel %vm1167, %v2740, 0
        %v2749 = vsel %vm1167, %v2742, 0
        %v2751 = vsel %vm1167, %v2744, 0
        %v2753 = vsel %vm1167, %v2746, 0
        %2755 = vmatprep.subr.mxu0 0.0
        %2756 = vmatpush1.xpose.msra.mxu0 %v2751
        %2757 = vmatprep.subr.mxu0 0.0
        %2758 = vmatpush1.xpose.msra.mxu0 %v2753
        %2759 = vmatprep.subr.mxu0 0.0
        %2760 = vmatpush1.xpose.msra.mxu0 0.0
        %2761 = vmatprep.subr.mxu0 0.0
        %2762 = vmatpush1.xpose.msra.mxu0 0.0
        %2763 = vmatprep.subr.mxu0 0.0
        %2764 = vmatpush1.xpose.msra.mxu0 0.0
        %2765 = vmatprep.subr.mxu0 0.0
        %2766 = vmatpush1.xpose.msra.mxu0 0.0
        %2767 = vmatprep.subr.mxu0 0.0
        %2768 = vmatpush1.xpose.msra.mxu0 0.0
        %2769 = vmatprep.subr.mxu0 0.0
        %2770 = vmatpush1.xpose.msra.mxu0 0.0
        %2771 = vmatprep.subr.mxu0 0.0
        %2772 = vmatpush1.xpose.msra.mxu0 0.0
        %2773 = vmatprep.subr.mxu0 0.0
        %2774 = vmatpush1.xpose.msra.mxu0 0.0
        %2775 = vmatprep.subr.mxu0 0.0
        %2776 = vmatpush1.xpose.msra.mxu0 0.0
        %2777 = vmatprep.subr.mxu0 0.0
        %2778 = vmatpush1.xpose.msra.mxu0 0.0
        %2779 = vmatprep.subr.mxu0 0.0
        %2780 = vmatpush1.xpose.msra.mxu0 0.0
        %2781 = vmatprep.subr.mxu0 0.0
        %2782 = vmatpush1.xpose.msra.mxu0 0.0
        %2783 = vmatprep.subr.mxu0 0.0
        %2784 = vmatpush1.xpose.msra.mxu0 0.0
        %2785 = vmatprep.subr.mxu0 0.0
        %2786 = vmatpush1.xpose.msra.mxu0 0.0
        %2787 = vmatprep.subr.mxu0 0.0
        %2788 = vmatpush1.xpose.msra.mxu0 0.0
        %2789 = vmatprep.subr.mxu0 0.0
        %2790 = vmatpush1.xpose.msra.mxu0 0.0
        %2791 = vmatprep.subr.mxu0 0.0
        %2792 = vmatpush1.xpose.msra.mxu0 0.0
        %2793 = vmatprep.subr.mxu0 0.0
        %2794 = vmatpush1.xpose.msra.mxu0 0.0
        %2795 = vmatprep.subr.mxu0 0.0
        %2796 = vmatpush1.xpose.msra.mxu0 0.0
        %2797 = vmatprep.subr.mxu0 0.0
        %2798 = vmatpush1.xpose.msra.mxu0 0.0
        %2799 = vmatprep.subr.mxu0 0.0
        %2800 = vmatpush1.xpose.msra.mxu0 0.0
        %2801 = vmatprep.subr.mxu0 0.0
        %2802 = vmatpush1.xpose.msra.mxu0 0.0
        %2803 = vmatprep.subr.mxu0 0.0
        %2804 = vmatpush1.xpose.msra.mxu0 0.0
        %2805 = vmatprep.subr.mxu0 0.0
        %2806 = vmatpush1.xpose.msra.mxu0 0.0
        %2807 = vmatprep.subr.mxu0 0.0
        %2808 = vmatpush1.xpose.msra.mxu0 0.0
        %2809 = vmatprep.subr.mxu0 0.0
        %2810 = vmatpush1.xpose.msra.mxu0 0.0
        %2811 = vmatprep.subr.mxu0 0.0
        %2812 = vmatpush1.xpose.msra.mxu0 0.0
        %2813 = vmatprep.subr.mxu0 0.0
        %2814 = vmatpush1.xpose.msra.mxu0 0.0
        %2815 = vmatprep.subr.mxu0 0.0
        %2816 = vmatpush1.xpose.msra.mxu0 0.0
        %2817 = vmatprep.subr.mxu0 0.0
        %2818 = vmatpush1.xpose.msra.mxu0 0.0
        %2819 = vmatprep.mubr.f32.mxu0 0.0
        %2820 = vmatmul.mubr.f32.gmra.mrb[0].mxu0 %v2747
        %v2821 = vpop.f32.mrb[0].mxu0
        %v2822 = vadd.f32 %v1149, %v2821
        %v2823 = vpop.f32.mrb[0].mxu0
        %2824 = vmatprep.mubr.f32.mxu0 0.0
        %2825 = vmatmul.mubr.f32.gmra.mrb[0].mxu0 %v2749
        %v2826 = vpop.f32.mrb[0].mxu0
        %v2827 = vadd.f32 %v1150, %v2826
        %v2828 = vpop.f32.mrb[0].mxu0
        %2829 = vdwg.mxu0
        %v2830 = vsel %vm1342, %v2731, -inf
        %2831 = vmax.xlane.f32.xlu0 %v2830
        %v2832 = vpop.xlane.xlu0 %2831
        %v2833 = vsel %vm1342, %v2736, -inf
        %2834 = vmax.xlane.f32.xlu0 %v2833
        %v2835 = vpop.xlane.xlu0 %2834
        %v2836 = vsel %vm1342, %v2822, -inf
        %2837 = vmax.xlane.f32.xlu0 %v2836
        %v2838 = vpop.xlane.xlu0 %2837
        %v2839 = vsel %vm1342, %v2827, -inf
        %2840 = vmax.xlane.f32.xlu0 %v2839
        %v2841 = vpop.xlane.xlu0 %2840
        %v2842 = vsub.f32 %v2731, %v2832
        %v2843 = vsub.f32 %v2736, %v2835
        %v2844 = vsub.f32 %v2822, %v2838
        %v2845 = vsub.f32 %v2827, %v2841
        %v2846 = vmul.f32 %v2842, 1.442695
        %v2847 = vpow.pop %v2846
        %v2848 = vmul.f32 %v2843, 1.442695
        %v2849 = vpow.pop %v2848
        %v2850 = vmul.f32 %v2844, 1.442695
        %v2851 = vpow.pop %v2850
        %v2852 = vmul.f32 %v2845, 1.442695
        %v2853 = vpow.pop %v2852
        %v2854 = vsel %vm1342, %v2847, 0.0
        %2855 = vadd.xlane.f32.xlu0 %v2854
        %v2856 = vpop.xlane.xlu0 %2855
        %v2857 = vsel %vm1342, %v2849, 0.0
        %2858 = vadd.xlane.f32.xlu0 %v2857
        %v2859 = vpop.xlane.xlu0 %2858
        %v2860 = vsel %vm1342, %v2851, 0.0
        %2861 = vadd.xlane.f32.xlu0 %v2860
        %v2862 = vpop.xlane.xlu0 %2861
        %v2863 = vsel %vm1342, %v2853, 0.0
        %2864 = vadd.xlane.f32.xlu0 %v2863
        %v2865 = vpop.xlane.xlu0 %2864
        %v2866 = vrcp.pop %v2856
        %v2867 = vrcp.pop %v2859
        %v2868 = vrcp.pop %v2862
        %v2869 = vrcp.pop %v2865
        %v2870 = vmul.f32 %v2847, %v2866
        %v2871 = vmul.f32 %v2849, %v2867
        %v2872 = vmul.f32 %v2851, %v2868
        %v2873 = vmul.f32 %v2853, %v2869
        %2874 = vrot.lane.b32.xlu0 %v1127, 32
        %v2875 = vpop.permute.xlu0 %2874
        %2876 = vrot.lane.b32.xlu0 %v1132, 32
        %v2877 = vpop.permute.xlu0 %2876
        %v2881 = vsel %vm1342, %v2870, 0
        %v2884 = vsel %vm1342, %v2871, 0
        %2886 = vmatprep.subr.mxu0 0.0
        %2887 = vmatpush1.msra.mxu0 %v2875
        %2888 = vmatprep.subr.mxu0 0.0
        %2889 = vmatpush1.msra.mxu0 %v2877
        %2890 = vmatprep.subr.mxu0 0.0
        %2891 = vmatpush1.msra.mxu0 0.0
        %2892 = vmatprep.subr.mxu0 0.0
        %2893 = vmatpush1.msra.mxu0 0.0
        %2894 = vmatprep.subr.mxu0 0.0
        %2895 = vmatpush1.msra.mxu0 0.0
        %2896 = vmatprep.subr.mxu0 0.0
        %2897 = vmatpush1.msra.mxu0 0.0
        %2898 = vmatprep.subr.mxu0 0.0
        %2899 = vmatpush1.msra.mxu0 0.0
        %2900 = vmatprep.subr.mxu0 0.0
        %2901 = vmatpush1.msra.mxu0 0.0
        %2902 = vmatprep.subr.mxu0 0.0
        %2903 = vmatpush1.msra.mxu0 0.0
        %2904 = vmatprep.subr.mxu0 0.0
        %2905 = vmatpush1.msra.mxu0 0.0
        %2906 = vmatprep.subr.mxu0 0.0
        %2907 = vmatpush1.msra.mxu0 0.0
        %2908 = vmatprep.subr.mxu0 0.0
        %2909 = vmatpush1.msra.mxu0 0.0
        %2910 = vmatprep.subr.mxu0 0.0
        %2911 = vmatpush1.msra.mxu0 0.0
        %2912 = vmatprep.subr.mxu0 0.0
        %2913 = vmatpush1.msra.mxu0 0.0
        %2914 = vmatprep.subr.mxu0 0.0
        %2915 = vmatpush1.msra.mxu0 0.0
        %2916 = vmatprep.subr.mxu0 0.0
        %2917 = vmatpush1.msra.mxu0 0.0
        %2918 = vmatprep.subr.mxu0 0.0
        %2919 = vmatpush1.msra.mxu0 0.0
        %2920 = vmatprep.subr.mxu0 0.0
        %2921 = vmatpush1.msra.mxu0 0.0
        %2922 = vmatprep.subr.mxu0 0.0
        %2923 = vmatpush1.msra.mxu0 0.0
        %2924 = vmatprep.subr.mxu0 0.0
        %2925 = vmatpush1.msra.mxu0 0.0
        %2926 = vmatprep.subr.mxu0 0.0
        %2927 = vmatpush1.msra.mxu0 0.0
        %2928 = vmatprep.subr.mxu0 0.0
        %2929 = vmatpush1.msra.mxu0 0.0
        %2930 = vmatprep.subr.mxu0 0.0
        %2931 = vmatpush1.msra.mxu0 0.0
        %2932 = vmatprep.subr.mxu0 0.0
        %2933 = vmatpush1.msra.mxu0 0.0
        %2934 = vmatprep.subr.mxu0 0.0
        %2935 = vmatpush1.msra.mxu0 0.0
        %2936 = vmatprep.subr.mxu0 0.0
        %2937 = vmatpush1.msra.mxu0 0.0
        %2938 = vmatprep.subr.mxu0 0.0
        %2939 = vmatpush1.msra.mxu0 0.0
        %2940 = vmatprep.subr.mxu0 0.0
        %2941 = vmatpush1.msra.mxu0 0.0
        %2942 = vmatprep.subr.mxu0 0.0
        %2943 = vmatpush1.msra.mxu0 0.0
        %2944 = vmatprep.subr.mxu0 0.0
        %2945 = vmatpush1.msra.mxu0 0.0
        %2946 = vmatprep.subr.mxu0 0.0
        %2947 = vmatpush1.msra.mxu0 0.0
        %2948 = vmatprep.subr.mxu0 0.0
        %2949 = vmatpush1.msra.mxu0 0.0
        %2950 = vmatprep.mubr.f32.mxu0 0.0
        %2951 = vmatmul.mubr.f32.gmra.mrb[0].mxu0 %v2881
        %v2952 = vpop.f32.mrb[0].mxu0
        %v2953 = vadd.f32 0.0, %v2952
        %v2954 = vpop.f32.mrb[0].mxu0
        %2955 = vmatprep.mubr.f32.mxu0 0.0
        %2956 = vmatmul.mubr.f32.gmra.mrb[0].mxu0 %v2884
        %v2957 = vpop.f32.mrb[0].mxu0
        %v2958 = vadd.f32 0.0, %v2957
        %v2959 = vpop.f32.mrb[0].mxu0
        %2960 = vdwg.mxu0
        %2961 = vrot.lane.b32.xlu0 %v1137, 32
        %v2962 = vpop.permute.xlu0 %2961
        %2963 = vrot.lane.b32.xlu0 %v1142, 32
        %v2964 = vpop.permute.xlu0 %2963
        %v2968 = vsel %vm1342, %v2872, 0
        %v2971 = vsel %vm1342, %v2873, 0
        %2973 = vmatprep.subr.mxu0 0.0
        %2974 = vmatpush1.msra.mxu0 %v2962
        %2975 = vmatprep.subr.mxu0 0.0
        %2976 = vmatpush1.msra.mxu0 %v2964
        %2977 = vmatprep.subr.mxu0 0.0
        %2978 = vmatpush1.msra.mxu0 0.0
        %2979 = vmatprep.subr.mxu0 0.0
        %2980 = vmatpush1.msra.mxu0 0.0
        %2981 = vmatprep.subr.mxu0 0.0
        %2982 = vmatpush1.msra.mxu0 0.0
        %2983 = vmatprep.subr.mxu0 0.0
        %2984 = vmatpush1.msra.mxu0 0.0
        %2985 = vmatprep.subr.mxu0 0.0
        %2986 = vmatpush1.msra.mxu0 0.0
        %2987 = vmatprep.subr.mxu0 0.0
        %2988 = vmatpush1.msra.mxu0 0.0
        %2989 = vmatprep.subr.mxu0 0.0
        %2990 = vmatpush1.msra.mxu0 0.0
        %2991 = vmatprep.subr.mxu0 0.0
        %2992 = vmatpush1.msra.mxu0 0.0
        %2993 = vmatprep.subr.mxu0 0.0
        %2994 = vmatpush1.msra.mxu0 0.0
        %2995 = vmatprep.subr.mxu0 0.0
        %2996 = vmatpush1.msra.mxu0 0.0
        %2997 = vmatprep.subr.mxu0 0.0
        %2998 = vmatpush1.msra.mxu0 0.0
        %2999 = vmatprep.subr.mxu0 0.0
        %3000 = vmatpush1.msra.mxu0 0.0
        %3001 = vmatprep.subr.mxu0 0.0
        %3002 = vmatpush1.msra.mxu0 0.0
        %3003 = vmatprep.subr.mxu0 0.0
        %3004 = vmatpush1.msra.mxu0 0.0
        %3005 = vmatprep.subr.mxu0 0.0
        %3006 = vmatpush1.msra.mxu0 0.0
        %3007 = vmatprep.subr.mxu0 0.0
        %3008 = vmatpush1.msra.mxu0 0.0
        %3009 = vmatprep.subr.mxu0 0.0
        %3010 = vmatpush1.msra.mxu0 0.0
        %3011 = vmatprep.subr.mxu0 0.0
        %3012 = vmatpush1.msra.mxu0 0.0
        %3013 = vmatprep.subr.mxu0 0.0
        %3014 = vmatpush1.msra.mxu0 0.0
        %3015 = vmatprep.subr.mxu0 0.0
        %3016 = vmatpush1.msra.mxu0 0.0
        %3017 = vmatprep.subr.mxu0 0.0
        %3018 = vmatpush1.msra.mxu0 0.0
        %3019 = vmatprep.subr.mxu0 0.0
        %3020 = vmatpush1.msra.mxu0 0.0
        %3021 = vmatprep.subr.mxu0 0.0
        %3022 = vmatpush1.msra.mxu0 0.0
        %3023 = vmatprep.subr.mxu0 0.0
        %3024 = vmatpush1.msra.mxu0 0.0
        %3025 = vmatprep.subr.mxu0 0.0
        %3026 = vmatpush1.msra.mxu0 0.0
        %3027 = vmatprep.subr.mxu0 0.0
        %3028 = vmatpush1.msra.mxu0 0.0
        %3029 = vmatprep.subr.mxu0 0.0
        %3030 = vmatpush1.msra.mxu0 0.0
        %3031 = vmatprep.subr.mxu0 0.0
        %3032 = vmatpush1.msra.mxu0 0.0
        %3033 = vmatprep.subr.mxu0 0.0
        %3034 = vmatpush1.msra.mxu0 0.0
        %3035 = vmatprep.subr.mxu0 0.0
        %3036 = vmatpush1.msra.mxu0 0.0
        %3037 = vmatprep.mubr.f32.mxu0 0.0
        %3038 = vmatmul.mubr.f32.gmra.mrb[0].mxu0 %v2968
        %v3039 = vpop.f32.mrb[0].mxu0
        %v3040 = vadd.f32 0.0, %v3039
        %v3041 = vpop.f32.mrb[0].mxu0
        %3042 = vmatprep.mubr.f32.mxu0 0.0
        %3043 = vmatmul.mubr.f32.gmra.mrb[0].mxu0 %v2971
        %v3044 = vpop.f32.mrb[0].mxu0
        %v3045 = vadd.f32 0.0, %v3044
        %v3046 = vpop.f32.mrb[0].mxu0
        %3047 = vdwg.mxu0
        %v3049 = vsel %vm1167, %v2953, 0
        %v3052 = vsel %vm1167, %v2958, 0
        %v3055 = vsel %vm1167, %v3040, 0
        %v3058 = vsel %vm1167, %v3045, 0
        %3060 = vmatprep.subr.mxu0 0.0
        %3061 = vmatpush1.msra.mxu0 %v1163
        %3062 = vmatprep.subr.mxu0 0.0
        %3063 = vmatpush1.msra.mxu0 %v1164
        %3064 = vmatprep.subr.mxu0 0.0
        %3065 = vmatpush1.msra.mxu0 %v1165
        %3066 = vmatprep.subr.mxu0 0.0
        %3067 = vmatpush1.msra.mxu0 %v1166
        %3068 = vmatprep.subr.mxu0 0.0
        %3069 = vmatpush1.msra.mxu0 0.0
        %3070 = vmatprep.subr.mxu0 0.0
        %3071 = vmatpush1.msra.mxu0 0.0
        %3072 = vmatprep.subr.mxu0 0.0
        %3073 = vmatpush1.msra.mxu0 0.0
        %3074 = vmatprep.subr.mxu0 0.0
        %3075 = vmatpush1.msra.mxu0 0.0
        %3076 = vmatprep.subr.mxu0 0.0
        %3077 = vmatpush1.msra.mxu0 0.0
        %3078 = vmatprep.subr.mxu0 0.0
        %3079 = vmatpush1.msra.mxu0 0.0
        %3080 = vmatprep.subr.mxu0 0.0
        %3081 = vmatpush1.msra.mxu0 0.0
        %3082 = vmatprep.subr.mxu0 0.0
        %3083 = vmatpush1.msra.mxu0 0.0
        %3084 = vmatprep.subr.mxu0 0.0
        %3085 = vmatpush1.msra.mxu0 0.0
        %3086 = vmatprep.subr.mxu0 0.0
        %3087 = vmatpush1.msra.mxu0 0.0
        %3088 = vmatprep.subr.mxu0 0.0
        %3089 = vmatpush1.msra.mxu0 0.0
        %3090 = vmatprep.subr.mxu0 0.0
        %3091 = vmatpush1.msra.mxu0 0.0
        %3092 = vmatprep.subr.mxu0 0.0
        %3093 = vmatpush1.msra.mxu0 0.0
        %3094 = vmatprep.subr.mxu0 0.0
        %3095 = vmatpush1.msra.mxu0 0.0
        %3096 = vmatprep.subr.mxu0 0.0
        %3097 = vmatpush1.msra.mxu0 0.0
        %3098 = vmatprep.subr.mxu0 0.0
        %3099 = vmatpush1.msra.mxu0 0.0
        %3100 = vmatprep.subr.mxu0 0.0
        %3101 = vmatpush1.msra.mxu0 0.0
        %3102 = vmatprep.subr.mxu0 0.0
        %3103 = vmatpush1.msra.mxu0 0.0
        %3104 = vmatprep.subr.mxu0 0.0
        %3105 = vmatpush1.msra.mxu0 0.0
        %3106 = vmatprep.subr.mxu0 0.0
        %3107 = vmatpush1.msra.mxu0 0.0
        %3108 = vmatprep.subr.mxu0 0.0
        %3109 = vmatpush1.msra.mxu0 0.0
        %3110 = vmatprep.subr.mxu0 0.0
        %3111 = vmatpush1.msra.mxu0 0.0
        %3112 = vmatprep.subr.mxu0 0.0
        %3113 = vmatpush1.msra.mxu0 0.0
        %3114 = vmatprep.subr.mxu0 0.0
        %3115 = vmatpush1.msra.mxu0 0.0
        %3116 = vmatprep.subr.mxu0 0.0
        %3117 = vmatpush1.msra.mxu0 0.0
        %3118 = vmatprep.subr.mxu0 0.0
        %3119 = vmatpush1.msra.mxu0 0.0
        %3120 = vmatprep.subr.mxu0 0.0
        %3121 = vmatpush1.msra.mxu0 0.0
        %3122 = vmatprep.subr.mxu0 0.0
        %3123 = vmatpush1.msra.mxu0 0.0
        %3124 = vmatprep.mubr.f32.mxu0 0.0
        %3125 = vmatmul.mubr.f32.gmra.mrb[0].mxu0 %v3049
        %v3126 = vpop.f32.mrb[0].mxu0
        %v3127 = vadd.f32 0.0, %v3126
        %v3128 = vpop.f32.mrb[0].mxu0
        %3129 = vmatprep.mubr.f32.mxu0 0.0
        %3130 = vmatmul.mubr.f32.gmra.mrb[0].mxu0 %v3052
        %v3131 = vpop.f32.mrb[0].mxu0
        %v3132 = vadd.f32 0.0, %v3131
        %v3133 = vpop.f32.mrb[0].mxu0
        %3134 = vmatprep.mubr.f32.mxu0 0.0
        %3135 = vmatmul.mubr.f32.gmra.mrb[0].mxu0 %v3055
        %v3136 = vpop.f32.mrb[0].mxu0
        %v3137 = vadd.f32 0.0, %v3136
        %v3138 = vpop.f32.mrb[0].mxu0
        %3139 = vmatprep.mubr.f32.mxu0 0.0
        %3140 = vmatmul.mubr.f32.gmra.mrb[0].mxu0 %v3058
        %v3141 = vpop.f32.mrb[0].mxu0
        %v3142 = vadd.f32 0.0, %v3141
        %v3143 = vpop.f32.mrb[0].mxu0
        %3144 = vdwg.mxu0
        %v3145 = vadd.f32 %v2644, %v3127
        %v3146 = vadd.f32 %v2645, %v3132
        %v3147 = vadd.f32 %v2646, %v3137
        %v3148 = vadd.f32 %v2647, %v3142
        %v3149 = vadd.f32 %v835, %v3145
        %v3150 = vadd.f32 %v836, %v3146
        %v3151 = vadd.f32 %v837, %v3147
        %v3152 = vadd.f32 %v838, %v3148
        %v3153 = vld [vmem:[%s809] sm:$0x1]
        %v3155 = vlaneseq
        %v3156 = vshrl.u32 %v3155, 7
        %v3157 = vsub.s32 0, %v3156
        %v3158 = vrot.slane %v3153, %v3157
        %v3160 = vadd.f32 %v3149, %v3158
        %v3161 = vadd.f32 %v3150, %v3158
        %v3162 = vadd.f32 %v3151, %v3158
        %v3163 = vadd.f32 %v3152, %v3158
        %v3164 = vld [vmem:[%s812] sm:$0x1]
        %v3165 = vld [vmem:[%s815] sm:$0x1]
        %3166 = vadd.xlane.f32.xlu0 %v3160
        %v3167 = vpop.xlane.xlu0 %3166
        %3168 = vadd.xlane.f32.xlu0 %v3161
        %v3169 = vpop.xlane.xlu0 %3168
        %3170 = vadd.xlane.f32.xlu0 %v3162
        %v3171 = vpop.xlane.xlu0 %3170
        %3172 = vadd.xlane.f32.xlu0 %v3163
        %v3173 = vpop.xlane.xlu0 %3172
        %v3174 = vmul.f32 %v3167, %v849
        %v3175 = vmul.f32 %v3169, %v849
        %v3176 = vmul.f32 %v3171, %v849
        %v3177 = vmul.f32 %v3173, %v849
        %v3178 = vsub.f32 %v3160, %v3174
        %v3179 = vsub.f32 %v3161, %v3175
        %v3180 = vsub.f32 %v3162, %v3176
        %v3181 = vsub.f32 %v3163, %v3177
        %v3182 = vmul.f32 %v3178, %v3178
        %v3183 = vmul.f32 %v3179, %v3179
        %v3184 = vmul.f32 %v3180, %v3180
        %v3185 = vmul.f32 %v3181, %v3181
        %3186 = vadd.xlane.f32.xlu0 %v3182
        %v3187 = vpop.xlane.xlu0 %3186
        %3188 = vadd.xlane.f32.xlu0 %v3183
        %v3189 = vpop.xlane.xlu0 %3188
        %3190 = vadd.xlane.f32.xlu0 %v3184
        %v3191 = vpop.xlane.xlu0 %3190
        %3192 = vadd.xlane.f32.xlu0 %v3185
        %v3193 = vpop.xlane.xlu0 %3192
        %v3194 = vmul.f32 %v3187, %v849
        %v3195 = vmul.f32 %v3189, %v849
        %v3196 = vmul.f32 %v3191, %v849
        %v3197 = vmul.f32 %v3193, %v849
        %v3198 = vadd.f32 %v3194, 1e-05
        %v3199 = vadd.f32 %v3195, 1e-05
        %v3200 = vadd.f32 %v3196, 1e-05
        %v3201 = vadd.f32 %v3197, 1e-05
        %v3202 = vrsqrt.pop %v3198
        %v3203 = vrsqrt.pop %v3199
        %v3204 = vrsqrt.pop %v3200
        %v3205 = vrsqrt.pop %v3201
        %v3206 = vmul.f32 %v3178, %v3202
        %v3207 = vmul.f32 %v3179, %v3203
        %v3208 = vmul.f32 %v3180, %v3204
        %v3209 = vmul.f32 %v3181, %v3205
        %v3211 = vlaneseq
        %v3212 = vshrl.u32 %v3211, 7
        %v3213 = vsub.s32 0, %v3212
        %v3214 = vrot.slane %v3164, %v3213
        %v3216 = vmul.f32 %v3206, %v3214
        %v3217 = vmul.f32 %v3207, %v3214
        %v3218 = vmul.f32 %v3208, %v3214
        %v3219 = vmul.f32 %v3209, %v3214
        %v3221 = vlaneseq
        %v3222 = vshrl.u32 %v3221, 7
        %v3223 = vsub.s32 0, %v3222
        %v3224 = vrot.slane %v3165, %v3223
        %v3226 = vadd.f32 %v3216, %v3224
        %v3227 = vadd.f32 %v3217, %v3224
        %v3228 = vadd.f32 %v3218, %v3224
        %v3229 = vadd.f32 %v3219, %v3224
        %v3230 = vld [vmem:[%s692] sm:$0xff]
        %v3231 = vld [vmem:[%s692 + $0x8] sm:$0xff]
        %v3232 = vld [vmem:[%s692 + $0x10] sm:$0xff]
        %v3233 = vld [vmem:[%s692 + $0x18] sm:$0xff]
        %v3234 = vld [vmem:[%s692 + $0x20] sm:$0xff]
        %v3235 = vld [vmem:[%s692 + $0x28] sm:$0xff]
        %v3236 = vld [vmem:[%s692 + $0x30] sm:$0xff]
        %v3237 = vld [vmem:[%s692 + $0x38] sm:$0xff]
        %v3238 = vld [vmem:[%s692 + $0x40] sm:$0xff]
        %v3239 = vld [vmem:[%s692 + $0x48] sm:$0xff]
        %v3240 = vld [vmem:[%s692 + $0x50] sm:$0xff]
        %v3241 = vld [vmem:[%s692 + $0x58] sm:$0xff]
        %v3242 = vld [vmem:[%s692 + $0x60] sm:$0xff]
        %v3243 = vld [vmem:[%s692 + $0x68] sm:$0xff]
        %v3244 = vld [vmem:[%s692 + $0x70] sm:$0xff]
        %v3245 = vld [vmem:[%s692 + $0x78] sm:$0xff]
        %v3246 = vld [vmem:[%s692 + $0x80] sm:$0xff]
        %v3247 = vld [vmem:[%s692 + $0x88] sm:$0xff]
        %v3248 = vld [vmem:[%s692 + $0x90] sm:$0xff]
        %v3249 = vld [vmem:[%s692 + $0x98] sm:$0xff]
        %v3250 = vld [vmem:[%s692 + $0xa0] sm:$0xff]
        %v3251 = vld [vmem:[%s692 + $0xa8] sm:$0xff]
        %v3252 = vld [vmem:[%s692 + $0xb0] sm:$0xff]
        %v3253 = vld [vmem:[%s692 + $0xb8] sm:$0xff]
        %v3254 = vld [vmem:[%s692 + $0xc0] sm:$0xff]
        %v3255 = vld [vmem:[%s692 + $0xc8] sm:$0xff]
        %v3256 = vld [vmem:[%s692 + $0xd0] sm:$0xff]
        %v3257 = vld [vmem:[%s692 + $0xd8] sm:$0xff]
        %v3258 = vld [vmem:[%s692 + $0xe0] sm:$0xff]
        %v3259 = vld [vmem:[%s692 + $0xe8] sm:$0xff]
        %v3260 = vld [vmem:[%s692 + $0xf0] sm:$0xff]
        %v3261 = vld [vmem:[%s692 + $0xf8] sm:$0xff]
        %v3262 = vld [vmem:[%s692 + $0x100] sm:$0xff]
        %v3263 = vld [vmem:[%s692 + $0x108] sm:$0xff]
        %v3264 = vld [vmem:[%s692 + $0x110] sm:$0xff]
        %v3265 = vld [vmem:[%s692 + $0x118] sm:$0xff]
        %v3266 = vld [vmem:[%s692 + $0x120] sm:$0xff]
        %v3267 = vld [vmem:[%s692 + $0x128] sm:$0xff]
        %v3268 = vld [vmem:[%s692 + $0x130] sm:$0xff]
        %v3269 = vld [vmem:[%s692 + $0x138] sm:$0xff]
        %v3270 = vld [vmem:[%s692 + $0x140] sm:$0xff]
        %v3271 = vld [vmem:[%s692 + $0x148] sm:$0xff]
        %v3272 = vld [vmem:[%s692 + $0x150] sm:$0xff]
        %v3273 = vld [vmem:[%s692 + $0x158] sm:$0xff]
        %v3274 = vld [vmem:[%s692 + $0x160] sm:$0xff]
        %v3275 = vld [vmem:[%s692 + $0x168] sm:$0xff]
        %v3276 = vld [vmem:[%s692 + $0x170] sm:$0xff]
        %v3277 = vld [vmem:[%s692 + $0x178] sm:$0xff]
        %v3278 = vld [vmem:[%s692 + $0x180] sm:$0xff]
        %v3279 = vld [vmem:[%s692 + $0x188] sm:$0xff]
        %v3280 = vld [vmem:[%s692 + $0x190] sm:$0xff]
        %v3281 = vld [vmem:[%s692 + $0x198] sm:$0xff]
        %v3282 = vld [vmem:[%s692 + $0x1a0] sm:$0xff]
        %v3283 = vld [vmem:[%s692 + $0x1a8] sm:$0xff]
        %v3284 = vld [vmem:[%s692 + $0x1b0] sm:$0xff]
        %v3285 = vld [vmem:[%s692 + $0x1b8] sm:$0xff]
        %v3286 = vld [vmem:[%s692 + $0x1c0] sm:$0xff]
        %v3287 = vld [vmem:[%s692 + $0x1c8] sm:$0xff]
        %v3288 = vld [vmem:[%s692 + $0x1d0] sm:$0xff]
        %v3289 = vld [vmem:[%s692 + $0x1d8] sm:$0xff]
        %v3290 = vld [vmem:[%s692 + $0x1e0] sm:$0xff]
        %v3291 = vld [vmem:[%s692 + $0x1e8] sm:$0xff]
        %v3292 = vld [vmem:[%s692 + $0x1f0] sm:$0xff]
        %v3293 = vld [vmem:[%s692 + $0x1f8] sm:$0xff]
        %v3294 = vld [vmem:[%s819] sm:$0xf]
        %v3296 = vlaneseq
        %v3297 = vshrl.u32 %v3296, 7
        %v3298 = vsub.s32 0, %v3297
        %v3299 = vrot.slane %v3294, %v3298
        %v3300 = vlaneseq
        %v3301 = vshrl.u32 %v3300, 7
        %v3302 = vsub.s32 1, %v3301
        %v3303 = vrot.slane %v3294, %v3302
        %v3304 = vlaneseq
        %v3305 = vshrl.u32 %v3304, 7
        %v3306 = vsub.s32 2, %v3305
        %v3307 = vrot.slane %v3294, %v3306
        %v3308 = vlaneseq
        %v3309 = vshrl.u32 %v3308, 7
        %v3310 = vsub.s32 3, %v3309
        %v3311 = vrot.slane %v3294, %v3310
        %3316 = vmatprep.subr.mxu0 %v3231
        %3317 = vmatpush1.msra.mxu0 %v3230
        %3318 = vmatprep.subr.mxu0 %v3235
        %3319 = vmatpush1.msra.mxu0 %v3234
        %3320 = vmatprep.subr.mxu0 %v3239
        %3321 = vmatpush1.msra.mxu0 %v3238
        %3322 = vmatprep.subr.mxu0 %v3243
        %3323 = vmatpush1.msra.mxu0 %v3242
        %3324 = vmatprep.subr.mxu0 %v3247
        %3325 = vmatpush1.msra.mxu0 %v3246
        %3326 = vmatprep.subr.mxu0 %v3251
        %3327 = vmatpush1.msra.mxu0 %v3250
        %3328 = vmatprep.subr.mxu0 %v3255
        %3329 = vmatpush1.msra.mxu0 %v3254
        %3330 = vmatprep.subr.mxu0 %v3259
        %3331 = vmatpush1.msra.mxu0 %v3258
        %3332 = vmatprep.subr.mxu0 %v3263
        %3333 = vmatpush1.msra.mxu0 %v3262
        %3334 = vmatprep.subr.mxu0 %v3267
        %3335 = vmatpush1.msra.mxu0 %v3266
        %3336 = vmatprep.subr.mxu0 %v3271
        %3337 = vmatpush1.msra.mxu0 %v3270
        %3338 = vmatprep.subr.mxu0 %v3275
        %3339 = vmatpush1.msra.mxu0 %v3274
        %3340 = vmatprep.subr.mxu0 %v3279
        %3341 = vmatpush1.msra.mxu0 %v3278
        %3342 = vmatprep.subr.mxu0 %v3283
        %3343 = vmatpush1.msra.mxu0 %v3282
        %3344 = vmatprep.subr.mxu0 %v3287
        %3345 = vmatpush1.msra.mxu0 %v3286
        %3346 = vmatprep.subr.mxu0 %v3291
        %3347 = vmatpush1.msra.mxu0 %v3290
        %3348 = vmatprep.subr.mxu0 0.0
        %3349 = vmatpush1.msra.mxu0 0.0
        %3350 = vmatprep.subr.mxu0 0.0
        %3351 = vmatpush1.msra.mxu0 0.0
        %3352 = vmatprep.subr.mxu0 0.0
        %3353 = vmatpush1.msra.mxu0 0.0
        %3354 = vmatprep.subr.mxu0 0.0
        %3355 = vmatpush1.msra.mxu0 0.0
        %3356 = vmatprep.subr.mxu0 0.0
        %3357 = vmatpush1.msra.mxu0 0.0
        %3358 = vmatprep.subr.mxu0 0.0
        %3359 = vmatpush1.msra.mxu0 0.0
        %3360 = vmatprep.subr.mxu0 0.0
        %3361 = vmatpush1.msra.mxu0 0.0
        %3362 = vmatprep.subr.mxu0 0.0
        %3363 = vmatpush1.msra.mxu0 0.0
        %3364 = vmatprep.subr.mxu0 0.0
        %3365 = vmatpush1.msra.mxu0 0.0
        %3366 = vmatprep.subr.mxu0 0.0
        %3367 = vmatpush1.msra.mxu0 0.0
        %3368 = vmatprep.subr.mxu0 0.0
        %3369 = vmatpush1.msra.mxu0 0.0
        %3370 = vmatprep.subr.mxu0 0.0
        %3371 = vmatpush1.msra.mxu0 0.0
        %3372 = vmatprep.subr.mxu0 0.0
        %3373 = vmatpush1.msra.mxu0 0.0
        %3374 = vmatprep.subr.mxu0 0.0
        %3375 = vmatpush1.msra.mxu0 0.0
        %3376 = vmatprep.subr.mxu0 0.0
        %3377 = vmatpush1.msra.mxu0 0.0
        %3378 = vmatprep.subr.mxu0 0.0
        %3379 = vmatpush1.msra.mxu0 0.0
        %3380 = vmatprep.mubr.f32.mxu0 0.0
        %3381 = vmatmul.mubr.f32.gmra.mrb[0].mxu0 %v3226
        %v3382 = vpop.f32.mrb[0].mxu0
        %v3383 = vadd.f32 %v3299, %v3382
        %v3384 = vpop.f32.mrb[0].mxu0
        %v3385 = vadd.f32 %v3303, %v3384
        %3386 = vmatprep.mubr.f32.mxu0 0.0
        %3387 = vmatmul.mubr.f32.gmra.mrb[0].mxu0 %v3227
        %v3388 = vpop.f32.mrb[0].mxu0
        %v3389 = vadd.f32 %v3299, %v3388
        %v3390 = vpop.f32.mrb[0].mxu0
        %v3391 = vadd.f32 %v3303, %v3390
        %3392 = vmatprep.mubr.f32.mxu0 0.0
        %3393 = vmatmul.mubr.f32.gmra.mrb[0].mxu0 %v3228
        %v3394 = vpop.f32.mrb[0].mxu0
        %v3395 = vadd.f32 %v3299, %v3394
        %v3396 = vpop.f32.mrb[0].mxu0
        %v3397 = vadd.f32 %v3303, %v3396
        %3398 = vmatprep.mubr.f32.mxu0 0.0
        %3399 = vmatmul.mubr.f32.gmra.mrb[0].mxu0 %v3229
        %v3400 = vpop.f32.mrb[0].mxu0
        %v3401 = vadd.f32 %v3299, %v3400
        %v3402 = vpop.f32.mrb[0].mxu0
        %v3403 = vadd.f32 %v3303, %v3402
        %3404 = vdwg.mxu0
        %3405 = vmatprep.subr.mxu0 %v3233
        %3406 = vmatpush1.msra.mxu0 %v3232
        %3407 = vmatprep.subr.mxu0 %v3237
        %3408 = vmatpush1.msra.mxu0 %v3236
        %3409 = vmatprep.subr.mxu0 %v3241
        %3410 = vmatpush1.msra.mxu0 %v3240
        %3411 = vmatprep.subr.mxu0 %v3245
        %3412 = vmatpush1.msra.mxu0 %v3244
        %3413 = vmatprep.subr.mxu0 %v3249
        %3414 = vmatpush1.msra.mxu0 %v3248
        %3415 = vmatprep.subr.mxu0 %v3253
        %3416 = vmatpush1.msra.mxu0 %v3252
        %3417 = vmatprep.subr.mxu0 %v3257
        %3418 = vmatpush1.msra.mxu0 %v3256
        %3419 = vmatprep.subr.mxu0 %v3261
        %3420 = vmatpush1.msra.mxu0 %v3260
        %3421 = vmatprep.subr.mxu0 %v3265
        %3422 = vmatpush1.msra.mxu0 %v3264
        %3423 = vmatprep.subr.mxu0 %v3269
        %3424 = vmatpush1.msra.mxu0 %v3268
        %3425 = vmatprep.subr.mxu0 %v3273
        %3426 = vmatpush1.msra.mxu0 %v3272
        %3427 = vmatprep.subr.mxu0 %v3277
        %3428 = vmatpush1.msra.mxu0 %v3276
        %3429 = vmatprep.subr.mxu0 %v3281
        %3430 = vmatpush1.msra.mxu0 %v3280
        %3431 = vmatprep.subr.mxu0 %v3285
        %3432 = vmatpush1.msra.mxu0 %v3284
        %3433 = vmatprep.subr.mxu0 %v3289
        %3434 = vmatpush1.msra.mxu0 %v3288
        %3435 = vmatprep.subr.mxu0 %v3293
        %3436 = vmatpush1.msra.mxu0 %v3292
        %3437 = vmatprep.subr.mxu0 0.0
        %3438 = vmatpush1.msra.mxu0 0.0
        %3439 = vmatprep.subr.mxu0 0.0
        %3440 = vmatpush1.msra.mxu0 0.0
        %3441 = vmatprep.subr.mxu0 0.0
        %3442 = vmatpush1.msra.mxu0 0.0
        %3443 = vmatprep.subr.mxu0 0.0
        %3444 = vmatpush1.msra.mxu0 0.0
        %3445 = vmatprep.subr.mxu0 0.0
        %3446 = vmatpush1.msra.mxu0 0.0
        %3447 = vmatprep.subr.mxu0 0.0
        %3448 = vmatpush1.msra.mxu0 0.0
        %3449 = vmatprep.subr.mxu0 0.0
        %3450 = vmatpush1.msra.mxu0 0.0
        %3451 = vmatprep.subr.mxu0 0.0
        %3452 = vmatpush1.msra.mxu0 0.0
        %3453 = vmatprep.subr.mxu0 0.0
        %3454 = vmatpush1.msra.mxu0 0.0
        %3455 = vmatprep.subr.mxu0 0.0
        %3456 = vmatpush1.msra.mxu0 0.0
        %3457 = vmatprep.subr.mxu0 0.0
        %3458 = vmatpush1.msra.mxu0 0.0
        %3459 = vmatprep.subr.mxu0 0.0
        %3460 = vmatpush1.msra.mxu0 0.0
        %3461 = vmatprep.subr.mxu0 0.0
        %3462 = vmatpush1.msra.mxu0 0.0
        %3463 = vmatprep.subr.mxu0 0.0
        %3464 = vmatpush1.msra.mxu0 0.0
        %3465 = vmatprep.subr.mxu0 0.0
        %3466 = vmatpush1.msra.mxu0 0.0
        %3467 = vmatprep.subr.mxu0 0.0
        %3468 = vmatpush1.msra.mxu0 0.0
        %3469 = vmatprep.mubr.f32.mxu0 0.0
        %3470 = vmatmul.mubr.f32.gmra.mrb[0].mxu0 %v3226
        %v3471 = vpop.f32.mrb[0].mxu0
        %v3472 = vadd.f32 %v3307, %v3471
        %v3473 = vpop.f32.mrb[0].mxu0
        %v3474 = vadd.f32 %v3311, %v3473
        %3475 = vmatprep.mubr.f32.mxu0 0.0
        %3476 = vmatmul.mubr.f32.gmra.mrb[0].mxu0 %v3227
        %v3477 = vpop.f32.mrb[0].mxu0
        %v3478 = vadd.f32 %v3307, %v3477
        %v3479 = vpop.f32.mrb[0].mxu0
        %v3480 = vadd.f32 %v3311, %v3479
        %3481 = vmatprep.mubr.f32.mxu0 0.0
        %3482 = vmatmul.mubr.f32.gmra.mrb[0].mxu0 %v3228
        %v3483 = vpop.f32.mrb[0].mxu0
        %v3484 = vadd.f32 %v3307, %v3483
        %v3485 = vpop.f32.mrb[0].mxu0
        %v3486 = vadd.f32 %v3311, %v3485
        %3487 = vmatprep.mubr.f32.mxu0 0.0
        %3488 = vmatmul.mubr.f32.gmra.mrb[0].mxu0 %v3229
        %v3489 = vpop.f32.mrb[0].mxu0
        %v3490 = vadd.f32 %v3307, %v3489
        %v3491 = vpop.f32.mrb[0].mxu0
        %v3492 = vadd.f32 %v3311, %v3491
        %3493 = vdwg.mxu0
        %v3494 = vmul.f32 %v3383, 1.702
        %v3495 = vmul.f32 %v3385, 1.702
        %v3496 = vmul.f32 %v3472, 1.702
        %v3497 = vmul.f32 %v3474, 1.702
        %v3498 = vmul.f32 %v3389, 1.702
        %v3499 = vmul.f32 %v3391, 1.702
        %v3500 = vmul.f32 %v3478, 1.702
        %v3501 = vmul.f32 %v3480, 1.702
        %v3502 = vmul.f32 %v3395, 1.702
        %v3503 = vmul.f32 %v3397, 1.702
        %v3504 = vmul.f32 %v3484, 1.702
        %v3505 = vmul.f32 %v3486, 1.702
        %v3506 = vmul.f32 %v3401, 1.702
        %v3507 = vmul.f32 %v3403, 1.702
        %v3508 = vmul.f32 %v3490, 1.702
        %v3509 = vmul.f32 %v3492, 1.702
        %v3510 = vxor.u32 %v3494, 2147483648
        %v3511 = vxor.u32 %v3495, 2147483648
        %v3512 = vxor.u32 %v3496, 2147483648
        %v3513 = vxor.u32 %v3497, 2147483648
        %v3514 = vxor.u32 %v3498, 2147483648
        %v3515 = vxor.u32 %v3499, 2147483648
        %v3516 = vxor.u32 %v3500, 2147483648
        %v3517 = vxor.u32 %v3501, 2147483648
        %v3518 = vxor.u32 %v3502, 2147483648
        %v3519 = vxor.u32 %v3503, 2147483648
        %v3520 = vxor.u32 %v3504, 2147483648
        %v3521 = vxor.u32 %v3505, 2147483648
        %v3522 = vxor.u32 %v3506, 2147483648
        %v3523 = vxor.u32 %v3507, 2147483648
        %v3524 = vxor.u32 %v3508, 2147483648
        %v3525 = vxor.u32 %v3509, 2147483648
        %v3526 = vmul.f32 %v3510, 1.442695
        %v3527 = vpow.pop %v3526
        %v3528 = vmul.f32 %v3511, 1.442695
        %v3529 = vpow.pop %v3528
        %v3530 = vmul.f32 %v3512, 1.442695
        %v3531 = vpow.pop %v3530
        %v3532 = vmul.f32 %v3513, 1.442695
        %v3533 = vpow.pop %v3532
        %v3534 = vmul.f32 %v3514, 1.442695
        %v3535 = vpow.pop %v3534
        %v3536 = vmul.f32 %v3515, 1.442695
        %v3537 = vpow.pop %v3536
        %v3538 = vmul.f32 %v3516, 1.442695
        %v3539 = vpow.pop %v3538
        %v3540 = vmul.f32 %v3517, 1.442695
        %v3541 = vpow.pop %v3540
        %v3542 = vmul.f32 %v3518, 1.442695
        %v3543 = vpow.pop %v3542
        %v3544 = vmul.f32 %v3519, 1.442695
        %v3545 = vpow.pop %v3544
        %v3546 = vmul.f32 %v3520, 1.442695
        %v3547 = vpow.pop %v3546
        %v3548 = vmul.f32 %v3521, 1.442695
        %v3549 = vpow.pop %v3548
        %v3550 = vmul.f32 %v3522, 1.442695
        %v3551 = vpow.pop %v3550
        %v3552 = vmul.f32 %v3523, 1.442695
        %v3553 = vpow.pop %v3552
        %v3554 = vmul.f32 %v3524, 1.442695
        %v3555 = vpow.pop %v3554
        %v3556 = vmul.f32 %v3525, 1.442695
        %v3557 = vpow.pop %v3556
        %v3558 = vadd.f32 %v3527, 1.0
        %v3559 = vadd.f32 %v3529, 1.0
        %v3560 = vadd.f32 %v3531, 1.0
        %v3561 = vadd.f32 %v3533, 1.0
        %v3562 = vadd.f32 %v3535, 1.0
        %v3563 = vadd.f32 %v3537, 1.0
        %v3564 = vadd.f32 %v3539, 1.0
        %v3565 = vadd.f32 %v3541, 1.0
        %v3566 = vadd.f32 %v3543, 1.0
        %v3567 = vadd.f32 %v3545, 1.0
        %v3568 = vadd.f32 %v3547, 1.0
        %v3569 = vadd.f32 %v3549, 1.0
        %v3570 = vadd.f32 %v3551, 1.0
        %v3571 = vadd.f32 %v3553, 1.0
        %v3572 = vadd.f32 %v3555, 1.0
        %v3573 = vadd.f32 %v3557, 1.0
        %v3574 = vrcp.pop %v3558
        %v3575 = vmul.f32 1.0, %v3574
        %v3576 = vrcp.pop %v3559
        %v3577 = vmul.f32 1.0, %v3576
        %v3578 = vrcp.pop %v3560
        %v3579 = vmul.f32 1.0, %v3578
        %v3580 = vrcp.pop %v3561
        %v3581 = vmul.f32 1.0, %v3580
        %v3582 = vrcp.pop %v3562
        %v3583 = vmul.f32 1.0, %v3582
        %v3584 = vrcp.pop %v3563
        %v3585 = vmul.f32 1.0, %v3584
        %v3586 = vrcp.pop %v3564
        %v3587 = vmul.f32 1.0, %v3586
        %v3588 = vrcp.pop %v3565
        %v3589 = vmul.f32 1.0, %v3588
        %v3590 = vrcp.pop %v3566
        %v3591 = vmul.f32 1.0, %v3590
        %v3592 = vrcp.pop %v3567
        %v3593 = vmul.f32 1.0, %v3592
        %v3594 = vrcp.pop %v3568
        %v3595 = vmul.f32 1.0, %v3594
        %v3596 = vrcp.pop %v3569
        %v3597 = vmul.f32 1.0, %v3596
        %v3598 = vrcp.pop %v3570
        %v3599 = vmul.f32 1.0, %v3598
        %v3600 = vrcp.pop %v3571
        %v3601 = vmul.f32 1.0, %v3600
        %v3602 = vrcp.pop %v3572
        %v3603 = vmul.f32 1.0, %v3602
        %v3604 = vrcp.pop %v3573
        %v3605 = vmul.f32 1.0, %v3604
        %v3606 = vmul.f32 %v3383, %v3575
        %v3607 = vmul.f32 %v3385, %v3577
        %v3608 = vmul.f32 %v3472, %v3579
        %v3609 = vmul.f32 %v3474, %v3581
        %v3610 = vmul.f32 %v3389, %v3583
        %v3611 = vmul.f32 %v3391, %v3585
        %v3612 = vmul.f32 %v3478, %v3587
        %v3613 = vmul.f32 %v3480, %v3589
        %v3614 = vmul.f32 %v3395, %v3591
        %v3615 = vmul.f32 %v3397, %v3593
        %v3616 = vmul.f32 %v3484, %v3595
        %v3617 = vmul.f32 %v3486, %v3597
        %v3618 = vmul.f32 %v3401, %v3599
        %v3619 = vmul.f32 %v3403, %v3601
        %v3620 = vmul.f32 %v3490, %v3603
        %v3621 = vmul.f32 %v3492, %v3605
        %v3622 = vld [vmem:[%s701] sm:$0xff]
        %v3623 = vld [vmem:[%s701 + $0x8] sm:$0xff]
        %v3624 = vld [vmem:[%s701 + $0x10] sm:$0xff]
        %v3625 = vld [vmem:[%s701 + $0x18] sm:$0xff]
        %v3626 = vld [vmem:[%s701 + $0x20] sm:$0xff]
        %v3627 = vld [vmem:[%s701 + $0x28] sm:$0xff]
        %v3628 = vld [vmem:[%s701 + $0x30] sm:$0xff]
        %v3629 = vld [vmem:[%s701 + $0x38] sm:$0xff]
        %v3630 = vld [vmem:[%s701 + $0x40] sm:$0xff]
        %v3631 = vld [vmem:[%s701 + $0x48] sm:$0xff]
        %v3632 = vld [vmem:[%s701 + $0x50] sm:$0xff]
        %v3633 = vld [vmem:[%s701 + $0x58] sm:$0xff]
        %v3634 = vld [vmem:[%s701 + $0x60] sm:$0xff]
        %v3635 = vld [vmem:[%s701 + $0x68] sm:$0xff]
        %v3636 = vld [vmem:[%s701 + $0x70] sm:$0xff]
        %v3637 = vld [vmem:[%s701 + $0x78] sm:$0xff]
        %v3638 = vld [vmem:[%s701 + $0x80] sm:$0xff]
        %v3639 = vld [vmem:[%s701 + $0x88] sm:$0xff]
        %v3640 = vld [vmem:[%s701 + $0x90] sm:$0xff]
        %v3641 = vld [vmem:[%s701 + $0x98] sm:$0xff]
        %v3642 = vld [vmem:[%s701 + $0xa0] sm:$0xff]
        %v3643 = vld [vmem:[%s701 + $0xa8] sm:$0xff]
        %v3644 = vld [vmem:[%s701 + $0xb0] sm:$0xff]
        %v3645 = vld [vmem:[%s701 + $0xb8] sm:$0xff]
        %v3646 = vld [vmem:[%s701 + $0xc0] sm:$0xff]
        %v3647 = vld [vmem:[%s701 + $0xc8] sm:$0xff]
        %v3648 = vld [vmem:[%s701 + $0xd0] sm:$0xff]
        %v3649 = vld [vmem:[%s701 + $0xd8] sm:$0xff]
        %v3650 = vld [vmem:[%s701 + $0xe0] sm:$0xff]
        %v3651 = vld [vmem:[%s701 + $0xe8] sm:$0xff]
        %v3652 = vld [vmem:[%s701 + $0xf0] sm:$0xff]
        %v3653 = vld [vmem:[%s701 + $0xf8] sm:$0xff]
        %v3654 = vld [vmem:[%s701 + $0x100] sm:$0xff]
        %v3655 = vld [vmem:[%s701 + $0x108] sm:$0xff]
        %v3656 = vld [vmem:[%s701 + $0x110] sm:$0xff]
        %v3657 = vld [vmem:[%s701 + $0x118] sm:$0xff]
        %v3658 = vld [vmem:[%s701 + $0x120] sm:$0xff]
        %v3659 = vld [vmem:[%s701 + $0x128] sm:$0xff]
        %v3660 = vld [vmem:[%s701 + $0x130] sm:$0xff]
        %v3661 = vld [vmem:[%s701 + $0x138] sm:$0xff]
        %v3662 = vld [vmem:[%s701 + $0x140] sm:$0xff]
        %v3663 = vld [vmem:[%s701 + $0x148] sm:$0xff]
        %v3664 = vld [vmem:[%s701 + $0x150] sm:$0xff]
        %v3665 = vld [vmem:[%s701 + $0x158] sm:$0xff]
        %v3666 = vld [vmem:[%s701 + $0x160] sm:$0xff]
        %v3667 = vld [vmem:[%s701 + $0x168] sm:$0xff]
        %v3668 = vld [vmem:[%s701 + $0x170] sm:$0xff]
        %v3669 = vld [vmem:[%s701 + $0x178] sm:$0xff]
        %v3670 = vld [vmem:[%s701 + $0x180] sm:$0xff]
        %v3671 = vld [vmem:[%s701 + $0x188] sm:$0xff]
        %v3672 = vld [vmem:[%s701 + $0x190] sm:$0xff]
        %v3673 = vld [vmem:[%s701 + $0x198] sm:$0xff]
        %v3674 = vld [vmem:[%s701 + $0x1a0] sm:$0xff]
        %v3675 = vld [vmem:[%s701 + $0x1a8] sm:$0xff]
        %v3676 = vld [vmem:[%s701 + $0x1b0] sm:$0xff]
        %v3677 = vld [vmem:[%s701 + $0x1b8] sm:$0xff]
        %v3678 = vld [vmem:[%s701 + $0x1c0] sm:$0xff]
        %v3679 = vld [vmem:[%s701 + $0x1c8] sm:$0xff]
        %v3680 = vld [vmem:[%s701 + $0x1d0] sm:$0xff]
        %v3681 = vld [vmem:[%s701 + $0x1d8] sm:$0xff]
        %v3682 = vld [vmem:[%s701 + $0x1e0] sm:$0xff]
        %v3683 = vld [vmem:[%s701 + $0x1e8] sm:$0xff]
        %v3684 = vld [vmem:[%s701 + $0x1f0] sm:$0xff]
        %v3685 = vld [vmem:[%s701 + $0x1f8] sm:$0xff]
        %3686 = vmatprep.subr.mxu0 0.0
        %3687 = vmatpush1.msra.mxu0 %v3622
        %3688 = vmatprep.subr.mxu0 0.0
        %3689 = vmatpush1.msra.mxu0 %v3623
        %3690 = vmatprep.subr.mxu0 0.0
        %3691 = vmatpush1.msra.mxu0 %v3624
        %3692 = vmatprep.subr.mxu0 0.0
        %3693 = vmatpush1.msra.mxu0 %v3625
        %3694 = vmatprep.subr.mxu0 0.0
        %3695 = vmatpush1.msra.mxu0 %v3626
        %3696 = vmatprep.subr.mxu0 0.0
        %3697 = vmatpush1.msra.mxu0 %v3627
        %3698 = vmatprep.subr.mxu0 0.0
        %3699 = vmatpush1.msra.mxu0 %v3628
        %3700 = vmatprep.subr.mxu0 0.0
        %3701 = vmatpush1.msra.mxu0 %v3629
        %3702 = vmatprep.subr.mxu0 0.0
        %3703 = vmatpush1.msra.mxu0 %v3630
        %3704 = vmatprep.subr.mxu0 0.0
        %3705 = vmatpush1.msra.mxu0 %v3631
        %3706 = vmatprep.subr.mxu0 0.0
        %3707 = vmatpush1.msra.mxu0 %v3632
        %3708 = vmatprep.subr.mxu0 0.0
        %3709 = vmatpush1.msra.mxu0 %v3633
        %3710 = vmatprep.subr.mxu0 0.0
        %3711 = vmatpush1.msra.mxu0 %v3634
        %3712 = vmatprep.subr.mxu0 0.0
        %3713 = vmatpush1.msra.mxu0 %v3635
        %3714 = vmatprep.subr.mxu0 0.0
        %3715 = vmatpush1.msra.mxu0 %v3636
        %3716 = vmatprep.subr.mxu0 0.0
        %3717 = vmatpush1.msra.mxu0 %v3637
        %3718 = vmatprep.subr.mxu0 0.0
        %3719 = vmatpush1.msra.mxu0 %v3638
        %3720 = vmatprep.subr.mxu0 0.0
        %3721 = vmatpush1.msra.mxu0 %v3639
        %3722 = vmatprep.subr.mxu0 0.0
        %3723 = vmatpush1.msra.mxu0 %v3640
        %3724 = vmatprep.subr.mxu0 0.0
        %3725 = vmatpush1.msra.mxu0 %v3641
        %3726 = vmatprep.subr.mxu0 0.0
        %3727 = vmatpush1.msra.mxu0 %v3642
        %3728 = vmatprep.subr.mxu0 0.0
        %3729 = vmatpush1.msra.mxu0 %v3643
        %3730 = vmatprep.subr.mxu0 0.0
        %3731 = vmatpush1.msra.mxu0 %v3644
        %3732 = vmatprep.subr.mxu0 0.0
        %3733 = vmatpush1.msra.mxu0 %v3645
        %3734 = vmatprep.subr.mxu0 0.0
        %3735 = vmatpush1.msra.mxu0 %v3646
        %3736 = vmatprep.subr.mxu0 0.0
        %3737 = vmatpush1.msra.mxu0 %v3647
        %3738 = vmatprep.subr.mxu0 0.0
        %3739 = vmatpush1.msra.mxu0 %v3648
        %3740 = vmatprep.subr.mxu0 0.0
        %3741 = vmatpush1.msra.mxu0 %v3649
        %3742 = vmatprep.subr.mxu0 0.0
        %3743 = vmatpush1.msra.mxu0 %v3650
        %3744 = vmatprep.subr.mxu0 0.0
        %3745 = vmatpush1.msra.mxu0 %v3651
        %3746 = vmatprep.subr.mxu0 0.0
        %3747 = vmatpush1.msra.mxu0 %v3652
        %3748 = vmatprep.subr.mxu0 0.0
        %3749 = vmatpush1.msra.mxu0 %v3653
        %3750 = vmatprep.mubr.f32.mxu0 %v3607
        %3751 = vmatmul.mubr.f32.gmra.mrb[0].mxu0 %v3606
        %v3752 = vpop.f32.mrb[0].mxu0
        %v3753 = vadd.f32 0.0, %v3752
        %v3754 = vpop.f32.mrb[0].mxu0
        %3755 = vmatprep.mubr.f32.mxu0 %v3611
        %3756 = vmatmul.mubr.f32.gmra.mrb[0].mxu0 %v3610
        %v3757 = vpop.f32.mrb[0].mxu0
        %v3758 = vadd.f32 0.0, %v3757
        %v3759 = vpop.f32.mrb[0].mxu0
        %3760 = vmatprep.mubr.f32.mxu0 %v3615
        %3761 = vmatmul.mubr.f32.gmra.mrb[0].mxu0 %v3614
        %v3762 = vpop.f32.mrb[0].mxu0
        %v3763 = vadd.f32 0.0, %v3762
        %v3764 = vpop.f32.mrb[0].mxu0
        %3765 = vmatprep.mubr.f32.mxu0 %v3619
        %3766 = vmatmul.mubr.f32.gmra.mrb[0].mxu0 %v3618
        %v3767 = vpop.f32.mrb[0].mxu0
        %v3768 = vadd.f32 0.0, %v3767
        %v3769 = vpop.f32.mrb[0].mxu0
        %3770 = vdwg.mxu0
        %3771 = vmatprep.subr.mxu0 0.0
        %3772 = vmatpush1.msra.mxu0 %v3654
        %3773 = vmatprep.subr.mxu0 0.0
        %3774 = vmatpush1.msra.mxu0 %v3655
        %3775 = vmatprep.subr.mxu0 0.0
        %3776 = vmatpush1.msra.mxu0 %v3656
        %3777 = vmatprep.subr.mxu0 0.0
        %3778 = vmatpush1.msra.mxu0 %v3657
        %3779 = vmatprep.subr.mxu0 0.0
        %3780 = vmatpush1.msra.mxu0 %v3658
        %3781 = vmatprep.subr.mxu0 0.0
        %3782 = vmatpush1.msra.mxu0 %v3659
        %3783 = vmatprep.subr.mxu0 0.0
        %3784 = vmatpush1.msra.mxu0 %v3660
        %3785 = vmatprep.subr.mxu0 0.0
        %3786 = vmatpush1.msra.mxu0 %v3661
        %3787 = vmatprep.subr.mxu0 0.0
        %3788 = vmatpush1.msra.mxu0 %v3662
        %3789 = vmatprep.subr.mxu0 0.0
        %3790 = vmatpush1.msra.mxu0 %v3663
        %3791 = vmatprep.subr.mxu0 0.0
        %3792 = vmatpush1.msra.mxu0 %v3664
        %3793 = vmatprep.subr.mxu0 0.0
        %3794 = vmatpush1.msra.mxu0 %v3665
        %3795 = vmatprep.subr.mxu0 0.0
        %3796 = vmatpush1.msra.mxu0 %v3666
        %3797 = vmatprep.subr.mxu0 0.0
        %3798 = vmatpush1.msra.mxu0 %v3667
        %3799 = vmatprep.subr.mxu0 0.0
        %3800 = vmatpush1.msra.mxu0 %v3668
        %3801 = vmatprep.subr.mxu0 0.0
        %3802 = vmatpush1.msra.mxu0 %v3669
        %3803 = vmatprep.subr.mxu0 0.0
        %3804 = vmatpush1.msra.mxu0 %v3670
        %3805 = vmatprep.subr.mxu0 0.0
        %3806 = vmatpush1.msra.mxu0 %v3671
        %3807 = vmatprep.subr.mxu0 0.0
        %3808 = vmatpush1.msra.mxu0 %v3672
        %3809 = vmatprep.subr.mxu0 0.0
        %3810 = vmatpush1.msra.mxu0 %v3673
        %3811 = vmatprep.subr.mxu0 0.0
        %3812 = vmatpush1.msra.mxu0 %v3674
        %3813 = vmatprep.subr.mxu0 0.0
        %3814 = vmatpush1.msra.mxu0 %v3675
        %3815 = vmatprep.subr.mxu0 0.0
        %3816 = vmatpush1.msra.mxu0 %v3676
        %3817 = vmatprep.subr.mxu0 0.0
        %3818 = vmatpush1.msra.mxu0 %v3677
        %3819 = vmatprep.subr.mxu0 0.0
        %3820 = vmatpush1.msra.mxu0 %v3678
        %3821 = vmatprep.subr.mxu0 0.0
        %3822 = vmatpush1.msra.mxu0 %v3679
        %3823 = vmatprep.subr.mxu0 0.0
        %3824 = vmatpush1.msra.mxu0 %v3680
        %3825 = vmatprep.subr.mxu0 0.0
        %3826 = vmatpush1.msra.mxu0 %v3681
        %3827 = vmatprep.subr.mxu0 0.0
        %3828 = vmatpush1.msra.mxu0 %v3682
        %3829 = vmatprep.subr.mxu0 0.0
        %3830 = vmatpush1.msra.mxu0 %v3683
        %3831 = vmatprep.subr.mxu0 0.0
        %3832 = vmatpush1.msra.mxu0 %v3684
        %3833 = vmatprep.subr.mxu0 0.0
        %3834 = vmatpush1.msra.mxu0 %v3685
        %3835 = vmatprep.mubr.f32.mxu0 %v3609
        %3836 = vmatmul.mubr.f32.gmra.mrb[0].mxu0 %v3608
        %v3837 = vpop.f32.mrb[0].mxu0
        %v3838 = vadd.f32 %v3753, %v3837
        %v3839 = vpop.f32.mrb[0].mxu0
        %3840 = vmatprep.mubr.f32.mxu0 %v3613
        %3841 = vmatmul.mubr.f32.gmra.mrb[0].mxu0 %v3612
        %v3842 = vpop.f32.mrb[0].mxu0
        %v3843 = vadd.f32 %v3758, %v3842
        %v3844 = vpop.f32.mrb[0].mxu0
        %3845 = vmatprep.mubr.f32.mxu0 %v3617
        %3846 = vmatmul.mubr.f32.gmra.mrb[0].mxu0 %v3616
        %v3847 = vpop.f32.mrb[0].mxu0
        %v3848 = vadd.f32 %v3763, %v3847
        %v3849 = vpop.f32.mrb[0].mxu0
        %3850 = vmatprep.mubr.f32.mxu0 %v3621
        %3851 = vmatmul.mubr.f32.gmra.mrb[0].mxu0 %v3620
        %v3852 = vpop.f32.mrb[0].mxu0
        %v3853 = vadd.f32 %v3768, %v3852
        %v3854 = vpop.f32.mrb[0].mxu0
        %3855 = vdwg.mxu0
        %v3856 = vadd.f32 %v3160, %v3838
        %v3857 = vadd.f32 %v3161, %v3843
        %v3858 = vadd.f32 %v3162, %v3848
        %v3859 = vadd.f32 %v3163, %v3853
        %v3860 = vld [vmem:[%s822] sm:$0x1]
        %v3862 = vlaneseq
        %v3863 = vshrl.u32 %v3862, 7
        %v3864 = vsub.s32 0, %v3863
        %v3865 = vrot.slane %v3860, %v3864
        %v3867 = vadd.f32 %v3856, %v3865
        %v3868 = vadd.f32 %v3857, %v3865
        %v3869 = vadd.f32 %v3858, %v3865
        %v3870 = vadd.f32 %v3859, %v3865
        %3871 = vst [vmem:[#allocation2] sm:$0xff] %v3867
        %3872 = vst [vmem:[#allocation2 + $0x8] sm:$0xff] %v3868
        %3873 = vst [vmem:[#allocation2 + $0x10] sm:$0xff] %v3869
        %3874 = vst [vmem:[#allocation2 + $0x18] sm:$0xff] %v3870
        %p3875 = scmp.eq.s32.totalorder %s39, 1
        // Predicated region
        $region109: #{clip_text_encoder_forward.1} parent=91 // pred_check
          %p3876 = pneg %p3875
        $region110: #{clip_text_encoder_forward.1} parent=91 // pred_check_branch
          %3878 = sbr.rel (%p3876) target = $region112
        $region111: #{clip_text_encoder_forward.1} parent=91 // pred_region
          %v3879 = vld [vmem:[%s3] sm:$0x1]
          %v3880 = vld [vmem:[%s4] sm:$0x1]
          %3881 = vadd.xlane.f32.xlu0 %v3867
          %v3882 = vpop.xlane.xlu0 %3881
          %3883 = vadd.xlane.f32.xlu0 %v3868
          %v3884 = vpop.xlane.xlu0 %3883
          %3885 = vadd.xlane.f32.xlu0 %v3869
          %v3886 = vpop.xlane.xlu0 %3885
          %3887 = vadd.xlane.f32.xlu0 %v3870
          %v3888 = vpop.xlane.xlu0 %3887
          %v3889 = vmul.f32 %v3882, %v849
          %v3890 = vmul.f32 %v3884, %v849
          %v3891 = vmul.f32 %v3886, %v849
          %v3892 = vmul.f32 %v3888, %v849
          %v3893 = vsub.f32 %v3867, %v3889
          %v3894 = vsub.f32 %v3868, %v3890
          %v3895 = vsub.f32 %v3869, %v3891
          %v3896 = vsub.f32 %v3870, %v3892
          %v3897 = vmul.f32 %v3893, %v3893
          %v3898 = vmul.f32 %v3894, %v3894
          %v3899 = vmul.f32 %v3895, %v3895
          %v3900 = vmul.f32 %v3896, %v3896
          %3901 = vadd.xlane.f32.xlu0 %v3897
          %v3902 = vpop.xlane.xlu0 %3901
          %3903 = vadd.xlane.f32.xlu0 %v3898
          %v3904 = vpop.xlane.xlu0 %3903
          %3905 = vadd.xlane.f32.xlu0 %v3899
          %v3906 = vpop.xlane.xlu0 %3905
          %3907 = vadd.xlane.f32.xlu0 %v3900
          %v3908 = vpop.xlane.xlu0 %3907
          %v3909 = vmul.f32 %v3902, %v849
          %v3910 = vmul.f32 %v3904, %v849
          %v3911 = vmul.f32 %v3906, %v849
          %v3912 = vmul.f32 %v3908, %v849
          %v3913 = vadd.f32 %v3909, 1e-05
          %v3914 = vadd.f32 %v3910, 1e-05
          %v3915 = vadd.f32 %v3911, 1e-05
          %v3916 = vadd.f32 %v3912, 1e-05
          %v3917 = vrsqrt.pop %v3913
          %v3918 = vrsqrt.pop %v3914
          %v3919 = vrsqrt.pop %v3915
          %v3920 = vrsqrt.pop %v3916
          %v3921 = vmul.f32 %v3893, %v3917
          %v3922 = vmul.f32 %v3894, %v3918
          %v3923 = vmul.f32 %v3895, %v3919
          %v3924 = vmul.f32 %v3896, %v3920
          %v3926 = vlaneseq
          %v3927 = vshrl.u32 %v3926, 7
          %v3928 = vsub.s32 0, %v3927
          %v3929 = vrot.slane %v3879, %v3928
          %v3931 = vmul.f32 %v3921, %v3929
          %v3932 = vmul.f32 %v3922, %v3929
          %v3933 = vmul.f32 %v3923, %v3929
          %v3934 = vmul.f32 %v3924, %v3929
          %v3936 = vlaneseq
          %v3937 = vshrl.u32 %v3936, 7
          %v3938 = vsub.s32 0, %v3937
          %v3939 = vrot.slane %v3880, %v3938
          %v3941 = vadd.f32 %v3931, %v3939
          %v3942 = vadd.f32 %v3932, %v3939
          %v3943 = vadd.f32 %v3933, %v3939
          %v3944 = vadd.f32 %v3934, %v3939
          %3945 = vst [vmem:[#allocation9] sm:$0xff] %v3941
          %3946 = vst [vmem:[#allocation9 + $0x8] sm:$0xff] %v3942
          %3947 = vst [vmem:[#allocation9 + $0x10] sm:$0xff] %v3943
          %3948 = vst [vmem:[#allocation9 + $0x18] sm:$0xff] %v3944
          %v3949 = vld [vmem:[%s2] sm:$0x3]
          %v3951 = vsel %vm1167, %v3949, 0
          %3953 = vmatprep.subr.mxu0 0.0
          %3954 = vmatpush1.msra.mxu0 %v3941
          %3955 = vmatprep.subr.mxu0 0.0
          %3956 = vmatpush1.msra.mxu0 %v3942
          %3957 = vmatprep.subr.mxu0 0.0
          %3958 = vmatpush1.msra.mxu0 %v3943
          %3959 = vmatprep.subr.mxu0 0.0
          %3960 = vmatpush1.msra.mxu0 %v3944
          %3961 = vmatprep.subr.mxu0 0.0
          %3962 = vmatpush1.msra.mxu0 0.0
          %3963 = vmatprep.subr.mxu0 0.0
          %3964 = vmatpush1.msra.mxu0 0.0
          %3965 = vmatprep.subr.mxu0 0.0
          %3966 = vmatpush1.msra.mxu0 0.0
          %3967 = vmatprep.subr.mxu0 0.0
          %3968 = vmatpush1.msra.mxu0 0.0
          %3969 = vmatprep.subr.mxu0 0.0
          %3970 = vmatpush1.msra.mxu0 0.0
          %3971 = vmatprep.subr.mxu0 0.0
          %3972 = vmatpush1.msra.mxu0 0.0
          %3973 = vmatprep.subr.mxu0 0.0
          %3974 = vmatpush1.msra.mxu0 0.0
          %3975 = vmatprep.subr.mxu0 0.0
          %3976 = vmatpush1.msra.mxu0 0.0
          %3977 = vmatprep.subr.mxu0 0.0
          %3978 = vmatpush1.msra.mxu0 0.0
          %3979 = vmatprep.subr.mxu0 0.0
          %3980 = vmatpush1.msra.mxu0 0.0
          %3981 = vmatprep.subr.mxu0 0.0
          %3982 = vmatpush1.msra.mxu0 0.0
          %3983 = vmatprep.subr.mxu0 0.0
          %3984 = vmatpush1.msra.mxu0 0.0
          %3985 = vmatprep.subr.mxu0 0.0
          %3986 = vmatpush1.msra.mxu0 0.0
          %3987 = vmatprep.subr.mxu0 0.0
          %3988 = vmatpush1.msra.mxu0 0.0
          %3989 = vmatprep.subr.mxu0 0.0
          %3990 = vmatpush1.msra.mxu0 0.0
          %3991 = vmatprep.subr.mxu0 0.0
          %3992 = vmatpush1.msra.mxu0 0.0
          %3993 = vmatprep.subr.mxu0 0.0
          %3994 = vmatpush1.msra.mxu0 0.0
          %3995 = vmatprep.subr.mxu0 0.0
          %3996 = vmatpush1.msra.mxu0 0.0
          %3997 = vmatprep.subr.mxu0 0.0
          %3998 = vmatpush1.msra.mxu0 0.0
          %3999 = vmatprep.subr.mxu0 0.0
          %4000 = vmatpush1.msra.mxu0 0.0
          %4001 = vmatprep.subr.mxu0 0.0
          %4002 = vmatpush1.msra.mxu0 0.0
          %4003 = vmatprep.subr.mxu0 0.0
          %4004 = vmatpush1.msra.mxu0 0.0
          %4005 = vmatprep.subr.mxu0 0.0
          %4006 = vmatpush1.msra.mxu0 0.0
          %4007 = vmatprep.subr.mxu0 0.0
          %4008 = vmatpush1.msra.mxu0 0.0
          %4009 = vmatprep.subr.mxu0 0.0
          %4010 = vmatpush1.msra.mxu0 0.0
          %4011 = vmatprep.subr.mxu0 0.0
          %4012 = vmatpush1.msra.mxu0 0.0
          %4013 = vmatprep.subr.mxu0 0.0
          %4014 = vmatpush1.msra.mxu0 0.0
          %4015 = vmatprep.subr.mxu0 0.0
          %4016 = vmatpush1.msra.mxu0 0.0
          %4017 = vmatprep.mubr.f32.mxu0 0.0
          %4018 = vmatmul.mubr.f32.gmra.mrb[0].mxu0 %v3951
          %v4019 = vpop.f32.mrb[0].mxu0
          %v4020 = vadd.f32 0.0, %v4019
          %v4021 = vpop.f32.mrb[0].mxu0
          %4022 = vdwg.mxu0
          %v4023 = vld [vmem:[%s5] sm:$0xff]
          %v4024 = vld [vmem:[%s5 + $0x8] sm:$0xff]
          %v4025 = vld [vmem:[%s5 + $0x10] sm:$0xff]
          %v4026 = vld [vmem:[%s5 + $0x18] sm:$0xff]
          %v4027 = vld [vmem:[%s5 + $0x20] sm:$0xff]
          %v4028 = vld [vmem:[%s5 + $0x28] sm:$0xff]
          %v4029 = vld [vmem:[%s5 + $0x30] sm:$0xff]
          %v4030 = vld [vmem:[%s5 + $0x38] sm:$0xff]
          %v4031 = vld [vmem:[%s5 + $0x40] sm:$0xff]
          %v4032 = vld [vmem:[%s5 + $0x48] sm:$0xff]
          %v4033 = vld [vmem:[%s5 + $0x50] sm:$0xff]
          %v4034 = vld [vmem:[%s5 + $0x58] sm:$0xff]
          %v4035 = vld [vmem:[%s5 + $0x60] sm:$0xff]
          %v4036 = vld [vmem:[%s5 + $0x68] sm:$0xff]
          %v4037 = vld [vmem:[%s5 + $0x70] sm:$0xff]
          %v4038 = vld [vmem:[%s5 + $0x78] sm:$0xff]
          %4039 = vmatprep.subr.mxu0 0.0
          %4040 = vmatpush1.msra.mxu0 %v4023
          %4041 = vmatprep.subr.mxu0 0.0
          %4042 = vmatpush1.msra.mxu0 %v4024
          %4043 = vmatprep.subr.mxu0 0.0
          %4044 = vmatpush1.msra.mxu0 %v4025
          %4045 = vmatprep.subr.mxu0 0.0
          %4046 = vmatpush1.msra.mxu0 %v4026
          %4047 = vmatprep.subr.mxu0 0.0
          %4048 = vmatpush1.msra.mxu0 %v4027
          %4049 = vmatprep.subr.mxu0 0.0
          %4050 = vmatpush1.msra.mxu0 %v4028
          %4051 = vmatprep.subr.mxu0 0.0
          %4052 = vmatpush1.msra.mxu0 %v4029
          %4053 = vmatprep.subr.mxu0 0.0
          %4054 = vmatpush1.msra.mxu0 %v4030
          %4055 = vmatprep.subr.mxu0 0.0
          %4056 = vmatpush1.msra.mxu0 %v4031
          %4057 = vmatprep.subr.mxu0 0.0
          %4058 = vmatpush1.msra.mxu0 %v4032
          %4059 = vmatprep.subr.mxu0 0.0
          %4060 = vmatpush1.msra.mxu0 %v4033
          %4061 = vmatprep.subr.mxu0 0.0
          %4062 = vmatpush1.msra.mxu0 %v4034
          %4063 = vmatprep.subr.mxu0 0.0
          %4064 = vmatpush1.msra.mxu0 %v4035
          %4065 = vmatprep.subr.mxu0 0.0
          %4066 = vmatpush1.msra.mxu0 %v4036
          %4067 = vmatprep.subr.mxu0 0.0
          %4068 = vmatpush1.msra.mxu0 %v4037
          %4069 = vmatprep.subr.mxu0 0.0
          %4070 = vmatpush1.msra.mxu0 %v4038
          %4071 = vmatprep.subr.mxu0 0.0
          %4072 = vmatpush1.msra.mxu0 0.0
          %4073 = vmatprep.subr.mxu0 0.0
          %4074 = vmatpush1.msra.mxu0 0.0
          %4075 = vmatprep.subr.mxu0 0.0
          %4076 = vmatpush1.msra.mxu0 0.0
          %4077 = vmatprep.subr.mxu0 0.0
          %4078 = vmatpush1.msra.mxu0 0.0
          %4079 = vmatprep.subr.mxu0 0.0
          %4080 = vmatpush1.msra.mxu0 0.0
          %4081 = vmatprep.subr.mxu0 0.0
          %4082 = vmatpush1.msra.mxu0 0.0
          %4083 = vmatprep.subr.mxu0 0.0
          %4084 = vmatpush1.msra.mxu0 0.0
          %4085 = vmatprep.subr.mxu0 0.0
          %4086 = vmatpush1.msra.mxu0 0.0
          %4087 = vmatprep.subr.mxu0 0.0
          %4088 = vmatpush1.msra.mxu0 0.0
          %4089 = vmatprep.subr.mxu0 0.0
          %4090 = vmatpush1.msra.mxu0 0.0
          %4091 = vmatprep.subr.mxu0 0.0
          %4092 = vmatpush1.msra.mxu0 0.0
          %4093 = vmatprep.subr.mxu0 0.0
          %4094 = vmatpush1.msra.mxu0 0.0
          %4095 = vmatprep.subr.mxu0 0.0
          %4096 = vmatpush1.msra.mxu0 0.0
          %4097 = vmatprep.subr.mxu0 0.0
          %4098 = vmatpush1.msra.mxu0 0.0
          %4099 = vmatprep.subr.mxu0 0.0
          %4100 = vmatpush1.msra.mxu0 0.0
          %4101 = vmatprep.subr.mxu0 0.0
          %4102 = vmatpush1.msra.mxu0 0.0
          %4103 = vmatprep.mubr.f32.mxu0 0.0
          %4104 = vmatmul.mubr.f32.gmra.mrb[0].mxu0 %v4020
          %v4105 = vpop.f32.mrb[0].mxu0
          %v4106 = vadd.f32 0.0, %v4105
          %v4107 = vpop.f32.mrb[0].mxu0
          %4108 = vdwg.mxu0
          %4109 = vst [vmem:[#allocation10] sm:$0x3] %v4106
        $region112: #{clip_text_encoder_forward.1} parent=91 // pred_fallthru
          _
        // Predicated region
        $region113: #{clip_text_encoder_forward.1} parent=91 // pred_check
          %p4110 = pneg %p490
        $region114: #{clip_text_encoder_forward.1} parent=91 // pred_check_branch
          %4112 = sbr.rel (%p4110) target = $region116
        $region115: #{clip_text_encoder_forward.1} parent=91 // pred_region
          %s4114 = ssub.s32 512, 512
          %4115 = vsyncadd [#allocation5], %s4114
          %s4116 = sshll.u32 [#allocation9], 4
          %s4117 = int_to_ptr.vmem [resolvable:$true] %s4116
          %4122 = dma.vmem_to_hbm [thread:$0]  %s4117, 512, %s18, [#allocation5], 128, 128, 8
        $region116: #{clip_text_encoder_forward.1} parent=91 // pred_fallthru
          _
        // Predicated region
        $region117: #{clip_text_encoder_forward.1} parent=91 // pred_check
          %p4123 = pneg %p511
        $region118: #{clip_text_encoder_forward.1} parent=91 // pred_check_branch
          %4125 = sbr.rel (%p4123) target = $region120
        $region119: #{clip_text_encoder_forward.1} parent=91 // pred_region
          %s4127 = ssub.s32 32, 32
          %4128 = vsyncadd [#allocation11], %s4127
          %s4130 = sshll.u32 [#allocation10], 4
          %s4131 = int_to_ptr.vmem [resolvable:$true] %s4130
          %4133 = dma.vmem_to_hbm [thread:$0]  %s4131, 32, %s19, [#allocation11]
        $region120: #{clip_text_encoder_forward.1} parent=91 // pred_fallthru
          _
        // Predicated region
        $region121: #{clip_text_encoder_forward.1} parent=91 // pred_check
          %p4134 = pneg %p490
        $region122: #{clip_text_encoder_forward.1} parent=91 // pred_check_branch
          %4136 = sbr.rel (%p4134) target = $region124
        $region123: #{clip_text_encoder_forward.1} parent=91 // pred_region
          %4137 = dma.done [#allocation5], 512
        $region124: #{clip_text_encoder_forward.1} parent=91 // pred_fallthru
          _
        // Predicated region
        $region125: #{clip_text_encoder_forward.1} parent=91 // pred_check
          %p4138 = pneg %p511
        $region126: #{clip_text_encoder_forward.1} parent=91 // pred_check_branch
          %4140 = sbr.rel (%p4138) target = $region128
        $region127: #{clip_text_encoder_forward.1} parent=91 // pred_region
          %4141 = dma.done [#allocation11], 32
        $region128: #{clip_text_encoder_forward.1} parent=91 // pred_fallthru
          _
      $region92: #{clip_text_encoder_forward.1} parent=5 // pred_fallthru
        _
      %p4142 = scmp.le.s32.totalorder 2, %s34
      // Predicated region
      $region129: #{clip_text_encoder_forward.1} parent=5 // pred_check
        %p4143 = pneg %p4142
      $region130: #{clip_text_encoder_forward.1} parent=5 // pred_check_branch
        %4145 = sbr.rel (%p4143) target = $region132
      $region131: #{clip_text_encoder_forward.1} parent=5 // pred_region
        %s4146 = ssub.s32 %s34, 2
      $region132: #{clip_text_encoder_forward.1} parent=5 // pred_fallthru
        _
    $region6: #{clip_text_encoder_forward.1} parent=1 // loop_footer
      %s38 = sadd.s32 1, %s34
    $region7: #{clip_text_encoder_forward.1} parent=1 // loop_footer_branch
      %33 = sbr.rel target = $region3
    $region8: #{clip_text_encoder_forward.1} parent=1 // loop_exit
      _
    %4147 = vsyncpa [#allocation4], 1
    %s4148 = scalar_lea.sflag [#allocation4], 1
    %4149 = vsyncpa %s4148, 1
    %4150 = vsyncpa [#allocation7], 1
    %s4151 = scalar_lea.sflag [#allocation7], 1
    %4152 = vsyncpa %s4151, 1
    %4153 = vsyncpa [#allocation5], 1
    %s4154 = scalar_lea.sflag [#allocation5], 1
    %4155 = vsyncpa %s4154, 1
    %4156 = vsyncpa [#allocation11], 1

</llo_original>
